<compile_context>
chip_gen: v6e
topology: v6e:2x2x1
jax: 0.10.0
libtpu: 0.0.40
codegen_flags: <defaults>
</compile_context>

<pallas_src>
import functools

import jax
import jax.numpy as jnp
from jax.experimental import pallas as pl
from jax.experimental.pallas import tpu as pltpu

_NEG_BIG = -1e30  # finite "minus infinity": fully-masked tiles never make NaNs


def _round_up(v, m):
    return -(-v // m) * m


def prepare_bank(bank_nd, *, dtype=jnp.bfloat16, lane_multiple=128):
    """One-time bank conversion — do this where the bank is created/updated.

    Stores the memory bank K-major (D, N_pad): bf16 halves the HBM stream that
    dominates the forward pass, K-major removes the per-tile RHS reorientation
    on the MXU, and padding N to a lane multiple keeps every tile/chunk slice
    128-lane aligned.  This is NOT done per forward call.
    """
    N, D = bank_nd.shape
    n_pad = _round_up(N, lane_multiple)
    bank_km = jnp.asarray(bank_nd).T.astype(dtype)
    if n_pad > N:
        bank_km = jnp.pad(bank_km, ((0, 0), (0, n_pad - N)))
    return bank_km  # (D, n_pad)


def _pick_tiling():
    """Per-generation (bank tile lanes, core split) defaults."""
    try:
        kind = jax.devices()[0].device_kind.lower()
    except Exception:
        kind = ""
    if "v5 lite" in kind or "v5e" in kind or "v5lite" in kind:
        return 2048, 1          # ~820 GB/s: a 2 MiB bf16 tile already ~2.5 us
    if "v7" in kind:
        return 8192, 2          # 2 TensorCores, ~3.2 TB/s per TC
    if "v6" in kind or "trillium" in kind:
        return 4096, 1          # single TC, ~1.4 TB/s
    return 2048, 1              # conservative default (v4 / unknown)


def _global_loss_kernel(x_ref, blbl_ref, bank_ref, lbl_ref,
                        lse_ref, dot_ref, cnt_ref,
                        m_sc, l_sc, dot_sc, cnt_sc,
                        *, tiles_per_core, tn, n_valid, inv_beta, chunk):
    """Grid = (num_cores 'parallel', bank-tiles-per-core 'arbitrary').

    Each core streams its slice of the memory bank, carrying per-row online
    softmax state in VMEM scratch across its bank tiles:
      m_sc  : running max of logits                (B, 1)
      l_sc  : running sum of exp(logit - m)        (B, 1)
      dot_sc: running sum_j mask_ij * s_ij         (B, 1)
      cnt_sc: running sum_j mask_ij                (B, 1)
    On its last tile each core writes partial (lse, dot, cnt); the wrapper
    merges the per-core partials (O(num_cores * B) work) and takes the mean.
    """
    c = pl.program_id(0)
    k = pl.program_id(1)

    @pl.when(k == 0)
    def _():
        m_sc[...] = jnp.full_like(m_sc, _NEG_BIG)
        l_sc[...] = jnp.zeros_like(l_sc)
        dot_sc[...] = jnp.zeros_like(dot_sc)
        cnt_sc[...] = jnp.zeros_like(cnt_sc)

    x = x_ref[...]          # (B, D), resident, bank dtype (bf16 or f32)
    blbl = blbl_ref[...]    # (B, 1) int32
    tile_col0 = (c * tiles_per_core + k) * tn

    # Strip-mine the bank tile along lanes so the per-chunk temporaries
    # (s / mask / p, each (B, chunk) f32) stay a handful of vregs wide even at
    # tn = 8192.  Chunk offsets/sizes are static Python ints -> zero-cost
    # slices, and the online-softmax update is identical math per chunk.
    for c0 in range(0, tn, chunk):
        cw = min(chunk, tn - c0)

        # K-major bank tile: contract ((1,),(0,)) -> no RHS transpose.  1/beta
        # is applied here on the f32 logits (VPU has slack).
        s = jax.lax.dot_general(
            x, bank_ref[:, c0:c0 + cw],
            dimension_numbers=(((1,), (0,)), ((), ())),
            preferred_element_type=jnp.float32,
        ) * inv_beta                                          # (B, cw) f32

        # Column-validity mask: columns past the true bank size (lane padding,
        # ragged last tile, clamped duplicate blocks from the per-core split)
        # contribute nothing.
        col_ids = tile_col0 + c0 + jax.lax.broadcasted_iota(
            jnp.int32, (1, cw), 1)
        valid = col_ids < n_valid                             # (1, cw) bool
        valid_f = valid.astype(jnp.float32)

        s_m = jnp.where(valid, s, _NEG_BIG)                   # (B, cw)
        mask = jnp.logical_and(blbl == lbl_ref[:, c0:c0 + cw], valid)
        mask = mask.astype(jnp.float32)                       # (B, cw)

        # Online logsumexp over the bank dimension.
        m_new = jnp.maximum(m_sc[...], jnp.max(s_m, axis=-1, keepdims=True))
        # Keep the `* valid_f`: for a fully-masked chunk with m still at
        # _NEG_BIG, exp(s_m - m_new) evaluates to 1 and would corrupt l_sc.
        p = jnp.exp(s_m - m_new) * valid_f
        l_sc[...] = jnp.exp(m_sc[...] - m_new) * l_sc[...] + jnp.sum(
            p, axis=-1, keepdims=True)
        m_sc[...] = m_new

        # Target-weighted logits and per-row match counts.
        dot_sc[...] = dot_sc[...] + jnp.sum(mask * s_m, axis=-1, keepdims=True)
        cnt_sc[...] = cnt_sc[...] + jnp.sum(mask, axis=-1, keepdims=True)

    @pl.when(k == pl.num_programs(1) - 1)
    def _():
        lse_ref[...] = jnp.expand_dims(m_sc[...] + jnp.log(l_sc[...]), 0)
        dot_ref[...] = jnp.expand_dims(dot_sc[...], 0)
        cnt_ref[...] = jnp.expand_dims(cnt_sc[...], 0)


def global_loss(x, idx, bank_km, labels, *, beta=0.05, tn=None, num_cores=None):
    """Pallas implementation of GlobalLoss.forward(x, idx).

    `bank_km` is the K-major (D, N_pad) bank produced by prepare_bank();
    `labels` is the length-N (unpadded) label vector.
    """
    B, D = x.shape
    Db, Np = bank_km.shape
    assert D == Db
    n_valid = labels.shape[0]
    assert n_valid <= Np

    tn_def, c_def = _pick_tiling()
    tn = tn_def if tn is None else int(tn)
    C = c_def if num_cores is None else int(num_cores)

    tn_eff = int(min(tn, Np))
    if tn_eff < Np:
        tn_eff = max(128, (tn_eff // 128) * 128)  # lane-aligned bank tiles
    num_tiles = -(-Np // tn_eff)
    C = max(1, min(C, num_tiles))                 # never more cores than tiles
    tiles_per_core = -(-num_tiles // C)
    last_block = num_tiles - 1
    chunk = min(1024, tn_eff)

    # Glue (cheap, O(B*D + N)): L2-normalize x (eps matches F.normalize), cast
    # it to the bank's storage dtype for the MXU operand, gather batch labels,
    # and pad the label row to the bank's padded width.  1/beta is applied
    # in-kernel in f32 (not baked into a low-precision x).
    x_f32 = x.astype(jnp.float32)
    x_norm = x_f32 / jnp.maximum(
        jnp.linalg.norm(x_f32, axis=1, keepdims=True), 1e-12)
    x_mm = x_norm.astype(bank_km.dtype)
    batch_labels = labels[idx].astype(jnp.int32).reshape(B, 1)
    labels_i32 = labels.astype(jnp.int32)
    if Np > n_valid:
        labels_i32 = jnp.pad(labels_i32, (0, Np - n_valid))
    labels2d = labels_i32.reshape(1, Np)

    kernel = functools.partial(
        _global_loss_kernel,
        tiles_per_core=tiles_per_core, tn=tn_eff, n_valid=n_valid,
        inv_beta=float(1.0 / beta), chunk=chunk)

    def bank_map(c, k):
        return (0, jnp.minimum(c * tiles_per_core + k, last_block))

    def lbl_map(c, k):
        return (0, jnp.minimum(c * tiles_per_core + k, last_block))

    # Right-sized VMEM limit: double-buffered bank + label tiles + slack,
    # clamped to [32 MiB, 64 MiB] so it stays safe on v7x's 64 MiB VMEM.
    itemsize = jnp.dtype(bank_km.dtype).itemsize
    vmem_need = 2 * D * tn_eff * itemsize + 2 * 8 * tn_eff * 4 + (8 << 20)
    vmem_limit = int(min(max(vmem_need, 32 << 20), 64 << 20))

    lse_p, dot_p, cnt_p = pl.pallas_call(
        kernel,
        out_shape=(
            jax.ShapeDtypeStruct((C, B, 1), jnp.float32),
            jax.ShapeDtypeStruct((C, B, 1), jnp.float32),
            jax.ShapeDtypeStruct((C, B, 1), jnp.float32),
        ),
        grid_spec=pltpu.PrefetchScalarGridSpec(
            num_scalar_prefetch=0,
            grid=(C, tiles_per_core),
            in_specs=[
                pl.BlockSpec((B, D), lambda c, k: (0, 0)),     # x (resident)
                pl.BlockSpec((B, 1), lambda c, k: (0, 0)),     # labels[idx]
                # TODO(synk): try pipeline_mode=pl.Buffered(3) on the bank tile
                # on v7x once both-TC sharding is confirmed in xprof.
                pl.BlockSpec((D, tn_eff), bank_map),           # bank tile (K-major)
                pl.BlockSpec((1, tn_eff), lbl_map),            # labels tile
            ],
            out_specs=[
                pl.BlockSpec((1, B, 1), lambda c, k: (c, 0, 0)),
                pl.BlockSpec((1, B, 1), lambda c, k: (c, 0, 0)),
                pl.BlockSpec((1, B, 1), lambda c, k: (c, 0, 0)),
            ],
            scratch_shapes=[pltpu.VMEM((B, 1), jnp.float32)] * 4,
        ),
        compiler_params=pltpu.CompilerParams(
            # TODO(synk): verify in xprof that the leading axis lands on both
            # v7x TensorCores; if not, switch it to pltpu.CORE_PARALLEL.
            dimension_semantics=("parallel", "arbitrary"),
            vmem_limit_bytes=vmem_limit,
        ),
    )(x_mm, batch_labels, bank_km, labels2d)

    # Tiny per-core merge in plain JAX (a fully-masked core yields lse=-inf,
    # dot=cnt=0 and drops out of the merge).
    lse = jax.nn.logsumexp(lse_p, axis=0)         # (B, 1)
    dots = jnp.sum(dot_p, axis=0)                 # (B, 1)
    cnt = jnp.sum(cnt_p, axis=0)                  # (B, 1)
    denom = jnp.maximum(cnt, 1e-12)               # F.normalize(., p=1) eps
    loss_rows = (lse * cnt - dots) / denom        # (B, 1)
    return jnp.mean(loss_rows)


def _reference_loss(x, idx, bank_nd, labels, beta=0.05):
    """Plain-JAX reference mirroring the PyTorch forward exactly."""
    xn = x / jnp.maximum(jnp.linalg.norm(x, axis=1, keepdims=True), 1e-12)
    s = xn @ bank_nd.T / beta
    logp = jax.nn.log_softmax(s, axis=1)
    t = (labels[idx][:, None] == labels[None, :]).astype(jnp.float32)
    t = t / jnp.maximum(jnp.sum(jnp.abs(t), axis=1, keepdims=True), 1e-12)
    return -(logp * t).sum(axis=1).mean(axis=0)


if __name__ == "__main__":
    key = jax.random.PRNGKey(0)
    k_x, k_bank, k_idx = jax.random.split(key, 3)

    B, D = 8, 512          # 512-d features fixed by the module (bank is (N, 512))
    N = 2560               # small synthetic bank
    beta = 0.05

    x = jax.random.normal(k_x, (B, D), dtype=jnp.float32)
    bank_nd = jax.random.uniform(k_bank, (N, D), dtype=jnp.float32)   # torch.rand analog
    labels = jnp.arange(N, dtype=jnp.int32)                           # __init__: arange(bank_size)
    idx = jax.random.randint(k_idx, (B,), 0, N, dtype=jnp.int32)

    # --- exact-dtype check: f32 bank stored K-major (module's dtype) --------
    bank_f32 = prepare_bank(bank_nd, dtype=jnp.float32)
    loss_f32 = jax.block_until_ready(
        global_loss(x, idx, bank_f32, labels, beta=beta))
    ref_f32 = jax.block_until_ready(
        _reference_loss(x, idx, bank_nd, labels, beta=beta))
    assert jnp.isfinite(loss_f32), "f32 kernel produced non-finite loss"
    assert abs(float(loss_f32) - float(ref_f32)) <= 5e-3 + 5e-3 * abs(float(ref_f32)), (
        f"f32 mismatch: pallas={float(loss_f32)} ref={float(ref_f32)}")

    # --- production config: bank stored ONCE as bf16, K-major ---------------
    bank_bf16 = prepare_bank(bank_nd, dtype=jnp.bfloat16)
    loss_bf16 = jax.block_until_ready(
        global_loss(x, idx, bank_bf16, labels, beta=beta))
    # Reference uses the *same stored bank contents* (bf16 values, f32 math);
    # the remaining delta comes from the bf16 x operand on the MXU.
    ref_bf16 = jax.block_until_ready(_reference_loss(
        x, idx, bank_bf16[:, :N].T.astype(jnp.float32), labels, beta=beta))
    assert jnp.isfinite(loss_bf16), "bf16 kernel produced non-finite loss"
    assert abs(float(loss_bf16) - float(ref_bf16)) <= 2e-2 + 2e-2 * abs(float(ref_bf16)), (
        f"bf16 mismatch: pallas={float(loss_bf16)} ref={float(ref_bf16)}")

    print("KERNEL_OK")
</pallas_src>

<mosaic_0001>
module attributes {stable_mosaic.version = 11 : i64} {
  func.func @_global_loss_kernel(%arg0: i32, %arg1: i32, %arg2: memref<8x512xf32, #tpu.memory_space<vmem>>, %arg3: memref<8x1xi32, #tpu.memory_space<vmem>>, %arg4: memref<512x2048xf32, #tpu.memory_space<vmem>>, %arg5: memref<1x2048xi32, #tpu.memory_space<vmem>>, %arg6: memref<1x8x1xf32, #tpu.memory_space<vmem>>, %arg7: memref<1x8x1xf32, #tpu.memory_space<vmem>>, %arg8: memref<1x8x1xf32, #tpu.memory_space<vmem>>, %arg9: memref<8x1xf32, #tpu.memory_space<vmem>>, %arg10: memref<8x1xf32, #tpu.memory_space<vmem>>, %arg11: memref<8x1xf32, #tpu.memory_space<vmem>>, %arg12: memref<8x1xf32, #tpu.memory_space<vmem>>) attributes {dimension_semantics = [#tpu.dimension_semantics<parallel>, #tpu.dimension_semantics<arbitrary>], iteration_bounds = array<i64: 1, 2>, scalar_prefetch = 0 : i64, scratch_operands = 4 : i64, tpu.core_type = #tpu.core_type<tc>, window_params = [{pipeline_mode = #tpu.pipeline_mode<synchronous>, transform_indices = @transform_0, window_bounds = array<i64: 8, 512>}, {pipeline_mode = #tpu.pipeline_mode<synchronous>, transform_indices = @transform_1, window_bounds = array<i64: 8, 1>}, {transform_indices = @transform_2, window_bounds = array<i64: 512, 2048>}, {transform_indices = @transform_3, window_bounds = array<i64: 1, 2048>}, {transform_indices = @transform_4, window_bounds = array<i64: 1, 8, 1>}, {transform_indices = @transform_5, window_bounds = array<i64: 1, 8, 1>}, {transform_indices = @transform_6, window_bounds = array<i64: 1, 8, 1>}]} {
    %c0_i32 = arith.constant 0 : i32
    %0 = arith.cmpi eq, %arg1, %c0_i32 : i32
    %1 = arith.extui %0 : i1 to i32
    %c0_i32_0 = arith.constant 0 : i32
    %2 = arith.cmpi ne, %1, %c0_i32_0 : i32
    scf.if %2 {
      %cst_63 = arith.constant -1.000000e+30 : f32
      %119 = vector.broadcast %cst_63 : f32 to vector<8x1xf32>
      %c0_64 = arith.constant 0 : index
      %c0_65 = arith.constant 0 : index
      %120 = vector.load %arg9[%c0_64, %c0_65] : memref<8x1xf32, #tpu.memory_space<vmem>>, vector<8x1xf32>
      tpu.vector_store %arg9[%c0_64, %c0_65], %119 {strides = array<i32>} : memref<8x1xf32, #tpu.memory_space<vmem>>, vector<8x1xf32>,
      %cst_66 = arith.constant 0.000000e+00 : f32
      %121 = vector.broadcast %cst_66 : f32 to vector<8x1xf32>
      %c0_67 = arith.constant 0 : index
      %c0_68 = arith.constant 0 : index
      %122 = vector.load %arg10[%c0_67, %c0_68] : memref<8x1xf32, #tpu.memory_space<vmem>>, vector<8x1xf32>
      tpu.vector_store %arg10[%c0_67, %c0_68], %121 {strides = array<i32>} : memref<8x1xf32, #tpu.memory_space<vmem>>, vector<8x1xf32>,
      %cst_69 = arith.constant 0.000000e+00 : f32
      %123 = vector.broadcast %cst_69 : f32 to vector<8x1xf32>
      %c0_70 = arith.constant 0 : index
      %c0_71 = arith.constant 0 : index
      %124 = vector.load %arg11[%c0_70, %c0_71] : memref<8x1xf32, #tpu.memory_space<vmem>>, vector<8x1xf32>
      tpu.vector_store %arg11[%c0_70, %c0_71], %123 {strides = array<i32>} : memref<8x1xf32, #tpu.memory_space<vmem>>, vector<8x1xf32>,
      %cst_72 = arith.constant 0.000000e+00 : f32
      %125 = vector.broadcast %cst_72 : f32 to vector<8x1xf32>
      %c0_73 = arith.constant 0 : index
      %c0_74 = arith.constant 0 : index
      %126 = vector.load %arg12[%c0_73, %c0_74] : memref<8x1xf32, #tpu.memory_space<vmem>>, vector<8x1xf32>
      tpu.vector_store %arg12[%c0_73, %c0_74], %125 {strides = array<i32>} : memref<8x1xf32, #tpu.memory_space<vmem>>, vector<8x1xf32>,
    } else {
    }
    %c0 = arith.constant 0 : index
    %c0_1 = arith.constant 0 : index
    %3 = vector.load %arg2[%c0, %c0_1] : memref<8x512xf32, #tpu.memory_space<vmem>>, vector<8x512xf32>
    %c0_2 = arith.constant 0 : index
    %c0_3 = arith.constant 0 : index
    %4 = vector.load %arg3[%c0_2, %c0_3] : memref<8x1xi32, #tpu.memory_space<vmem>>, vector<8x1xi32>
    %c2_i32 = arith.constant 2 : i32
    %5 = arith.muli %arg0, %c2_i32 : i32
    %6 = arith.addi %5, %arg1 : i32
    %c2048_i32 = arith.constant 2048 : i32
    %7 = arith.muli %6, %c2048_i32 : i32
    %c0_4 = arith.constant 0 : index
    %c0_5 = arith.constant 0 : index
    %8 = vector.load %arg4[%c0_4, %c0_5] : memref<512x2048xf32, #tpu.memory_space<vmem>>, vector<512x1024xf32>
    %cst = arith.constant dense<0.000000e+00> : vector<8x1024xf32>
    %9 = tpu.matmul %3, %8, %cst {dimension_numbers = #tpu.dot_dimension_numbers<[1], [0], [0], [1], [0, 0, 1, 1], [], []>} : vector<8x512xf32>, vector<512x1024xf32>, vector<8x1024xf32> -> vector<8x1024xf32>
    %cst_6 = arith.constant 2.000000e+01 : f32
    %10 = vector.broadcast %cst_6 : f32 to vector<8x1024xf32>
    %11 = arith.mulf %9, %10 : vector<8x1024xf32>
    %c0_i32_7 = arith.constant 0 : i32
    %12 = arith.addi %7, %c0_i32_7 : i32
    %13 = tpu.iota {dimensions = array<i32: 1>} : vector<1x1024xi32>
    %14 = vector.broadcast %12 : i32 to vector<1x1024xi32>
    %15 = arith.addi %14, %13 : vector<1x1024xi32>
    %c2560_i32 = arith.constant 2560 : i32
    %16 = vector.broadcast %c2560_i32 : i32 to vector<1x1024xi32>
    %17 = arith.cmpi slt, %15, %16 : vector<1x1024xi32>
    %18 = arith.extui %17 : vector<1x1024xi1> to vector<1x1024xi32>
    %19 = arith.sitofp %18 : vector<1x1024xi32> to vector<1x1024xf32>
    %cst_8 = arith.constant -1.000000e+30 : f32
    %20 = vector.shape_cast %17 : vector<1x1024xi1> to vector<1x1024xi1>
    %21 = vector.broadcast %20 : vector<1x1024xi1> to vector<8x1024xi1>
    %22 = vector.broadcast %cst_8 : f32 to vector<8x1024xf32>
    %23 = arith.select %21, %11, %22 : vector<8x1024xi1>, vector<8x1024xf32>
    %c0_9 = arith.constant 0 : index
    %c0_10 = arith.constant 0 : index
    %24 = vector.load %arg5[%c0_9, %c0_10] : memref<1x2048xi32, #tpu.memory_space<vmem>>, vector<1x1024xi32>
    %25 = vector.broadcast %4 : vector<8x1xi32> to vector<8x1024xi32>
    %26 = vector.broadcast %24 : vector<1x1024xi32> to vector<8x1024xi32>
    %27 = arith.cmpi eq, %25, %26 : vector<8x1024xi32>
    %28 = vector.broadcast %17 : vector<1x1024xi1> to vector<8x1024xi1>
    %29 = arith.andi %27, %28 : vector<8x1024xi1>
    %30 = arith.extui %29 : vector<8x1024xi1> to vector<8x1024xi32>
    %31 = arith.sitofp %30 : vector<8x1024xi32> to vector<8x1024xf32>
    %c0_11 = arith.constant 0 : index
    %c0_12 = arith.constant 0 : index
    %32 = vector.load %arg9[%c0_11, %c0_12] : memref<8x1xf32, #tpu.memory_space<vmem>>, vector<8x1xf32>
    %cst_13 = arith.constant dense<0xFF800000> : vector<8xf32>
    %33 = vector.multi_reduction <maximumf>, %23, %cst_13 [1] : vector<8x1024xf32> to vector<8xf32>
    %34 = vector.shape_cast %33 : vector<8xf32> to vector<8x1xf32>
    %35 = arith.maximumf %32, %34 : vector<8x1xf32>
    %36 = vector.broadcast %35 : vector<8x1xf32> to vector<8x1024xf32>
    %37 = arith.subf %23, %36 : vector<8x1024xf32>
    %38 = math.exp %37 : vector<8x1024xf32>
    %39 = vector.broadcast %19 : vector<1x1024xf32> to vector<8x1024xf32>
    %40 = arith.mulf %38, %39 : vector<8x1024xf32>
    %c0_14 = arith.constant 0 : index
    %c0_15 = arith.constant 0 : index
    %41 = vector.load %arg9[%c0_14, %c0_15] : memref<8x1xf32, #tpu.memory_space<vmem>>, vector<8x1xf32>
    %42 = arith.subf %41, %35 : vector<8x1xf32>
    %43 = math.exp %42 : vector<8x1xf32>
    %c0_16 = arith.constant 0 : index
    %c0_17 = arith.constant 0 : index
    %44 = vector.load %arg10[%c0_16, %c0_17] : memref<8x1xf32, #tpu.memory_space<vmem>>, vector<8x1xf32>
    %45 = arith.mulf %43, %44 : vector<8x1xf32>
    %cst_18 = arith.constant dense<0.000000e+00> : vector<8xf32>
    %46 = vector.multi_reduction <add>, %40, %cst_18 [1] : vector<8x1024xf32> to vector<8xf32>
    %47 = vector.shape_cast %46 : vector<8xf32> to vector<8x1xf32>
    %48 = arith.addf %45, %47 : vector<8x1xf32>
    %c0_19 = arith.constant 0 : index
    %c0_20 = arith.constant 0 : index
    %49 = vector.load %arg10[%c0_19, %c0_20] : memref<8x1xf32, #tpu.memory_space<vmem>>, vector<8x1xf32>
    tpu.vector_store %arg10[%c0_19, %c0_20], %48 {strides = array<i32>} : memref<8x1xf32, #tpu.memory_space<vmem>>, vector<8x1xf32>,
    %c0_21 = arith.constant 0 : index
    %c0_22 = arith.constant 0 : index
    %50 = vector.load %arg9[%c0_21, %c0_22] : memref<8x1xf32, #tpu.memory_space<vmem>>, vector<8x1xf32>
    tpu.vector_store %arg9[%c0_21, %c0_22], %35 {strides = array<i32>} : memref<8x1xf32, #tpu.memory_space<vmem>>, vector<8x1xf32>,
    %c0_23 = arith.constant 0 : index
    %c0_24 = arith.constant 0 : index
    %51 = vector.load %arg11[%c0_23, %c0_24] : memref<8x1xf32, #tpu.memory_space<vmem>>, vector<8x1xf32>
    %52 = arith.mulf %31, %23 : vector<8x1024xf32>
    %cst_25 = arith.constant dense<0.000000e+00> : vector<8xf32>
    %53 = vector.multi_reduction <add>, %52, %cst_25 [1] : vector<8x1024xf32> to vector<8xf32>
    %54 = vector.shape_cast %53 : vector<8xf32> to vector<8x1xf32>
    %55 = arith.addf %51, %54 : vector<8x1xf32>
    %c0_26 = arith.constant 0 : index
    %c0_27 = arith.constant 0 : index
    %56 = vector.load %arg11[%c0_26, %c0_27] : memref<8x1xf32, #tpu.memory_space<vmem>>, vector<8x1xf32>
    tpu.vector_store %arg11[%c0_26, %c0_27], %55 {strides = array<i32>} : memref<8x1xf32, #tpu.memory_space<vmem>>, vector<8x1xf32>,
    %c0_28 = arith.constant 0 : index
    %c0_29 = arith.constant 0 : index
    %57 = vector.load %arg12[%c0_28, %c0_29] : memref<8x1xf32, #tpu.memory_space<vmem>>, vector<8x1xf32>
    %cst_30 = arith.constant dense<0.000000e+00> : vector<8xf32>
    %58 = vector.multi_reduction <add>, %31, %cst_30 [1] : vector<8x1024xf32> to vector<8xf32>
    %59 = vector.shape_cast %58 : vector<8xf32> to vector<8x1xf32>
    %60 = arith.addf %57, %59 : vector<8x1xf32>
    %c0_31 = arith.constant 0 : index
    %c0_32 = arith.constant 0 : index
    %61 = vector.load %arg12[%c0_31, %c0_32] : memref<8x1xf32, #tpu.memory_space<vmem>>, vector<8x1xf32>
    tpu.vector_store %arg12[%c0_31, %c0_32], %60 {strides = array<i32>} : memref<8x1xf32, #tpu.memory_space<vmem>>, vector<8x1xf32>,
    %c0_33 = arith.constant 0 : index
    %c1024 = arith.constant 1024 : index
    %62 = vector.load %arg4[%c0_33, %c1024] : memref<512x2048xf32, #tpu.memory_space<vmem>>, vector<512x1024xf32>
    %cst_34 = arith.constant dense<0.000000e+00> : vector<8x1024xf32>
    %63 = tpu.matmul %3, %62, %cst_34 {dimension_numbers = #tpu.dot_dimension_numbers<[1], [0], [0], [1], [0, 0, 1, 1], [], []>} : vector<8x512xf32>, vector<512x1024xf32>, vector<8x1024xf32> -> vector<8x1024xf32>
    %cst_35 = arith.constant 2.000000e+01 : f32
    %64 = vector.broadcast %cst_35 : f32 to vector<8x1024xf32>
    %65 = arith.mulf %63, %64 : vector<8x1024xf32>
    %c1024_i32 = arith.constant 1024 : i32
    %66 = arith.addi %7, %c1024_i32 : i32
    %67 = tpu.iota {dimensions = array<i32: 1>} : vector<1x1024xi32>
    %68 = vector.broadcast %66 : i32 to vector<1x1024xi32>
    %69 = arith.addi %68, %67 : vector<1x1024xi32>
    %c2560_i32_36 = arith.constant 2560 : i32
    %70 = vector.broadcast %c2560_i32_36 : i32 to vector<1x1024xi32>
    %71 = arith.cmpi slt, %69, %70 : vector<1x1024xi32>
    %72 = arith.extui %71 : vector<1x1024xi1> to vector<1x1024xi32>
    %73 = arith.sitofp %72 : vector<1x1024xi32> to vector<1x1024xf32>
    %cst_37 = arith.constant -1.000000e+30 : f32
    %74 = vector.shape_cast %71 : vector<1x1024xi1> to vector<1x1024xi1>
    %75 = vector.broadcast %74 : vector<1x1024xi1> to vector<8x1024xi1>
    %76 = vector.broadcast %cst_37 : f32 to vector<8x1024xf32>
    %77 = arith.select %75, %65, %76 : vector<8x1024xi1>, vector<8x1024xf32>
    %c0_38 = arith.constant 0 : index
    %c1024_39 = arith.constant 1024 : index
    %78 = vector.load %arg5[%c0_38, %c1024_39] : memref<1x2048xi32, #tpu.memory_space<vmem>>, vector<1x1024xi32>
    %79 = vector.broadcast %4 : vector<8x1xi32> to vector<8x1024xi32>
    %80 = vector.broadcast %78 : vector<1x1024xi32> to vector<8x1024xi32>
    %81 = arith.cmpi eq, %79, %80 : vector<8x1024xi32>
    %82 = vector.broadcast %71 : vector<1x1024xi1> to vector<8x1024xi1>
    %83 = arith.andi %81, %82 : vector<8x1024xi1>
    %84 = arith.extui %83 : vector<8x1024xi1> to vector<8x1024xi32>
    %85 = arith.sitofp %84 : vector<8x1024xi32> to vector<8x1024xf32>
    %c0_40 = arith.constant 0 : index
    %c0_41 = arith.constant 0 : index
    %86 = vector.load %arg9[%c0_40, %c0_41] : memref<8x1xf32, #tpu.memory_space<vmem>>, vector<8x1xf32>
    %cst_42 = arith.constant dense<0xFF800000> : vector<8xf32>
    %87 = vector.multi_reduction <maximumf>, %77, %cst_42 [1] : vector<8x1024xf32> to vector<8xf32>
    %88 = vector.shape_cast %87 : vector<8xf32> to vector<8x1xf32>
    %89 = arith.maximumf %86, %88 : vector<8x1xf32>
    %90 = vector.broadcast %89 : vector<8x1xf32> to vector<8x1024xf32>
    %91 = arith.subf %77, %90 : vector<8x1024xf32>
    %92 = math.exp %91 : vector<8x1024xf32>
    %93 = vector.broadcast %73 : vector<1x1024xf32> to vector<8x1024xf32>
    %94 = arith.mulf %92, %93 : vector<8x1024xf32>
    %c0_43 = arith.constant 0 : index
    %c0_44 = arith.constant 0 : index
    %95 = vector.load %arg9[%c0_43, %c0_44] : memref<8x1xf32, #tpu.memory_space<vmem>>, vector<8x1xf32>
    %96 = arith.subf %95, %89 : vector<8x1xf32>
    %97 = math.exp %96 : vector<8x1xf32>
    %c0_45 = arith.constant 0 : index
    %c0_46 = arith.constant 0 : index
    %98 = vector.load %arg10[%c0_45, %c0_46] : memref<8x1xf32, #tpu.memory_space<vmem>>, vector<8x1xf32>
    %99 = arith.mulf %97, %98 : vector<8x1xf32>
    %cst_47 = arith.constant dense<0.000000e+00> : vector<8xf32>
    %100 = vector.multi_reduction <add>, %94, %cst_47 [1] : vector<8x1024xf32> to vector<8xf32>
    %101 = vector.shape_cast %100 : vector<8xf32> to vector<8x1xf32>
    %102 = arith.addf %99, %101 : vector<8x1xf32>
    %c0_48 = arith.constant 0 : index
    %c0_49 = arith.constant 0 : index
    %103 = vector.load %arg10[%c0_48, %c0_49] : memref<8x1xf32, #tpu.memory_space<vmem>>, vector<8x1xf32>
    tpu.vector_store %arg10[%c0_48, %c0_49], %102 {strides = array<i32>} : memref<8x1xf32, #tpu.memory_space<vmem>>, vector<8x1xf32>,
    %c0_50 = arith.constant 0 : index
    %c0_51 = arith.constant 0 : index
    %104 = vector.load %arg9[%c0_50, %c0_51] : memref<8x1xf32, #tpu.memory_space<vmem>>, vector<8x1xf32>
    tpu.vector_store %arg9[%c0_50, %c0_51], %89 {strides = array<i32>} : memref<8x1xf32, #tpu.memory_space<vmem>>, vector<8x1xf32>,
    %c0_52 = arith.constant 0 : index
    %c0_53 = arith.constant 0 : index
    %105 = vector.load %arg11[%c0_52, %c0_53] : memref<8x1xf32, #tpu.memory_space<vmem>>, vector<8x1xf32>
    %106 = arith.mulf %85, %77 : vector<8x1024xf32>
    %cst_54 = arith.constant dense<0.000000e+00> : vector<8xf32>
    %107 = vector.multi_reduction <add>, %106, %cst_54 [1] : vector<8x1024xf32> to vector<8xf32>
    %108 = vector.shape_cast %107 : vector<8xf32> to vector<8x1xf32>
    %109 = arith.addf %105, %108 : vector<8x1xf32>
    %c0_55 = arith.constant 0 : index
    %c0_56 = arith.constant 0 : index
    %110 = vector.load %arg11[%c0_55, %c0_56] : memref<8x1xf32, #tpu.memory_space<vmem>>, vector<8x1xf32>
    tpu.vector_store %arg11[%c0_55, %c0_56], %109 {strides = array<i32>} : memref<8x1xf32, #tpu.memory_space<vmem>>, vector<8x1xf32>,
    %c0_57 = arith.constant 0 : index
    %c0_58 = arith.constant 0 : index
    %111 = vector.load %arg12[%c0_57, %c0_58] : memref<8x1xf32, #tpu.memory_space<vmem>>, vector<8x1xf32>
    %cst_59 = arith.constant dense<0.000000e+00> : vector<8xf32>
    %112 = vector.multi_reduction <add>, %85, %cst_59 [1] : vector<8x1024xf32> to vector<8xf32>
    %113 = vector.shape_cast %112 : vector<8xf32> to vector<8x1xf32>
    %114 = arith.addf %111, %113 : vector<8x1xf32>
    %c0_60 = arith.constant 0 : index
    %c0_61 = arith.constant 0 : index
    %115 = vector.load %arg12[%c0_60, %c0_61] : memref<8x1xf32, #tpu.memory_space<vmem>>, vector<8x1xf32>
    tpu.vector_store %arg12[%c0_60, %c0_61], %114 {strides = array<i32>} : memref<8x1xf32, #tpu.memory_space<vmem>>, vector<8x1xf32>,
    %c1_i32 = arith.constant 1 : i32
    %116 = arith.cmpi eq, %arg1, %c1_i32 : i32
    %117 = arith.extui %116 : i1 to i32
    %c0_i32_62 = arith.constant 0 : i32
    %118 = arith.cmpi ne, %117, %c0_i32_62 : i32
    scf.if %118 {
      %c0_63 = arith.constant 0 : index
      %c0_64 = arith.constant 0 : index
      %119 = vector.load %arg9[%c0_63, %c0_64] : memref<8x1xf32, #tpu.memory_space<vmem>>, vector<8x1xf32>
      %c0_65 = arith.constant 0 : index
      %c0_66 = arith.constant 0 : index
      %120 = vector.load %arg10[%c0_65, %c0_66] : memref<8x1xf32, #tpu.memory_space<vmem>>, vector<8x1xf32>
      %121 = math.log %120 : vector<8x1xf32>
      %122 = arith.addf %119, %121 : vector<8x1xf32>
      %123 = vector.shape_cast %122 : vector<8x1xf32> to vector<1x8x1xf32>
      %c0_67 = arith.constant 0 : index
      %c0_68 = arith.constant 0 : index
      %c0_69 = arith.constant 0 : index
      %124 = vector.load %arg6[%c0_67, %c0_68, %c0_69] : memref<1x8x1xf32, #tpu.memory_space<vmem>>, vector<1x8x1xf32>
      tpu.vector_store %arg6[%c0_67, %c0_68, %c0_69], %123 {strides = array<i32>} : memref<1x8x1xf32, #tpu.memory_space<vmem>>, vector<1x8x1xf32>,
      %c0_70 = arith.constant 0 : index
      %c0_71 = arith.constant 0 : index
      %125 = vector.load %arg11[%c0_70, %c0_71] : memref<8x1xf32, #tpu.memory_space<vmem>>, vector<8x1xf32>
      %126 = vector.shape_cast %125 : vector<8x1xf32> to vector<1x8x1xf32>
      %c0_72 = arith.constant 0 : index
      %c0_73 = arith.constant 0 : index
      %c0_74 = arith.constant 0 : index
      %127 = vector.load %arg7[%c0_72, %c0_73, %c0_74] : memref<1x8x1xf32, #tpu.memory_space<vmem>>, vector<1x8x1xf32>
      tpu.vector_store %arg7[%c0_72, %c0_73, %c0_74], %126 {strides = array<i32>} : memref<1x8x1xf32, #tpu.memory_space<vmem>>, vector<1x8x1xf32>,
      %c0_75 = arith.constant 0 : index
      %c0_76 = arith.constant 0 : index
      %128 = vector.load %arg12[%c0_75, %c0_76] : memref<8x1xf32, #tpu.memory_space<vmem>>, vector<8x1xf32>
      %129 = vector.shape_cast %128 : vector<8x1xf32> to vector<1x8x1xf32>
      %c0_77 = arith.constant 0 : index
      %c0_78 = arith.constant 0 : index
      %c0_79 = arith.constant 0 : index
      %130 = vector.load %arg8[%c0_77, %c0_78, %c0_79] : memref<1x8x1xf32, #tpu.memory_space<vmem>>, vector<1x8x1xf32>
      tpu.vector_store %arg8[%c0_77, %c0_78, %c0_79], %129 {strides = array<i32>} : memref<1x8x1xf32, #tpu.memory_space<vmem>>, vector<1x8x1xf32>,
    } else {
    }
    return
  }
  func.func @transform_0(%arg0: i32, %arg1: i32) -> (i32, i32) {
    %c0_i32 = arith.constant 0 : i32
    %c0_i32_0 = arith.constant 0 : i32
    %c0_i32_1 = arith.constant 0 : i32
    return %c0_i32, %c0_i32_0 : i32, i32
  }
  func.func @transform_1(%arg0: i32, %arg1: i32) -> (i32, i32) {
    %c0_i32 = arith.constant 0 : i32
    %c0_i32_0 = arith.constant 0 : i32
    %c0_i32_1 = arith.constant 0 : i32
    return %c0_i32, %c0_i32_0 : i32, i32
  }
  func.func @transform_2(%arg0: i32, %arg1: i32) -> (i32, i32) {
    %c2_i32 = arith.constant 2 : i32
    %0 = arith.muli %arg0, %c2_i32 : i32
    %1 = arith.addi %0, %arg1 : i32
    %c1_i32 = arith.constant 1 : i32
    %2 = arith.minsi %1, %c1_i32 : i32
    %c0_i32 = arith.constant 0 : i32
    %c0_i32_0 = arith.constant 0 : i32
    return %c0_i32, %2 : i32, i32
  }
  func.func @transform_3(%arg0: i32, %arg1: i32) -> (i32, i32) {
    %c2_i32 = arith.constant 2 : i32
    %0 = arith.muli %arg0, %c2_i32 : i32
    %1 = arith.addi %0, %arg1 : i32
    %c1_i32 = arith.constant 1 : i32
    %2 = arith.minsi %1, %c1_i32 : i32
    %c0_i32 = arith.constant 0 : i32
    %c0_i32_0 = arith.constant 0 : i32
    return %c0_i32, %2 : i32, i32
  }
  func.func @transform_4(%arg0: i32, %arg1: i32) -> (i32, i32, i32) {
    %c0_i32 = arith.constant 0 : i32
    %c0_i32_0 = arith.constant 0 : i32
    %c0_i32_1 = arith.constant 0 : i32
    return %arg0, %c0_i32, %c0_i32_0 : i32, i32, i32
  }
  func.func @transform_5(%arg0: i32, %arg1: i32) -> (i32, i32, i32) {
    %c0_i32 = arith.constant 0 : i32
    %c0_i32_0 = arith.constant 0 : i32
    %c0_i32_1 = arith.constant 0 : i32
    return %arg0, %c0_i32, %c0_i32_0 : i32, i32, i32
  }
  func.func @transform_6(%arg0: i32, %arg1: i32) -> (i32, i32, i32) {
    %c0_i32 = arith.constant 0 : i32
    %c0_i32_0 = arith.constant 0 : i32
    %c0_i32_1 = arith.constant 0 : i32
    return %arg0, %c0_i32, %c0_i32_0 : i32, i32, i32
  }
}

</mosaic_0001>

<llo_original>
// kernel: tpu_custom_call.1
$region0: #{tpu_custom_call.1}
  #allocation0 [shape = 'u32[]', space=smem, size = 0x4, offset = 0x4, fixed_abs, tag = 'smem constant byte address 0x4 - core index']
  #allocation1 [shape = 'u32[144,128]{1,0:T(1,128)}', space=vmem, size = 0x12000, scoped, tag = 'internal scratch']
  #allocation2 [shape = 'f32[8,1]{1,0:T(8,128)}', space=vmem, size = 0x1000, scoped, tag = 'scratch operand']
  #allocation3 [shape = 'f32[8,1]{1,0:T(8,128)}', space=vmem, size = 0x1000, scoped, tag = 'scratch operand']
  #allocation4 [shape = 'f32[8,1]{1,0:T(8,128)}', space=vmem, size = 0x1000, scoped, tag = 'scratch operand']
  #allocation5 [shape = 'f32[8,1]{1,0:T(8,128)}', space=vmem, size = 0x1000, scoped, tag = 'scratch operand']
  %s0 = inlined_call_operand.hbm [shape: f32[8,512], index: 0, kind: input, shape index: {}]
  %s1 = inlined_call_operand.vmem [shape: s32[8,1], index: 1, kind: input, shape index: {}]
  %s2 = inlined_call_operand.hbm [shape: f32[512,2560], index: 2, kind: input, shape index: {}]
  %s3 = inlined_call_operand.hbm [shape: s32[1,2560], index: 3, kind: input, shape index: {}]
  %s4 = inlined_call_operand.vmem [shape: f32[1,8,1], index: 4, kind: output, shape index: {0}]
  %s5 = inlined_call_operand.vmem [shape: f32[1,8,1], index: 5, kind: output, shape index: {1}]
  %s6 = inlined_call_operand.vmem [shape: f32[1,8,1], index: 6, kind: output, shape index: {2}]
  %7 = xla_tuple %s4, %s5, %s6
  %s8 = sld [smem:[#allocation0]]
  $region85: #{tpu_custom_call.1} parent=0
    _
  %s10 = ssub.s32 1, %s8
  %s11 = scalar_select 0, %s10, %s8
  $region1: #{tpu_custom_call.1} parent=0
    #allocation6 [shape = 'u8[16384]{0}', space=vmem, size = 0x4000, scoped, tag = 'input window, operand 0, single buffered']
    #allocation7 [shape = 's32[2]{0}', space=sflag, size = 0x8, scoped, tag = 'scoped memory for tpu_custom_call.1']
    #allocation8 [shape = 'u8[8388608]{0}', space=vmem, size = 0x800000, scoped, tag = 'input window, operand 2']
    #allocation9 [shape = 's32[2]{0}', space=sflag, size = 0x8, scoped, tag = 'scoped memory for tpu_custom_call.1']
    #allocation10 [shape = 'u8[16384]{0}', space=vmem, size = 0x4000, scoped, tag = 'input window, operand 3']
    %12 = vsyncpa [#allocation7], 0
    %13 = vsyncpa [#allocation9], 0
    %s14 = scalar_lea.sflag [#allocation9], 1
    %15 = vsyncpa %s14, 0
    loop: start=0, step=1, limit=4
    $region2: #{tpu_custom_call.1} parent=1 // loop_pre_header
      _
    $region3: #{tpu_custom_call.1} parent=1 // loop_header
      %s17 = sphi 0, %s21
      %p18 = scmp.ge.s32.totalorder %s17, 4
      %s24 = sphi 0, %s36
      %s25 = sphi 0, %s32
      %s26 = sphi 0, %s24
      %s27 = sphi 0, %s25
      %s28 = sphi 0, %s26
      %s29 = sphi 0, %s27
      %s37 = sphi 0, %s37
      %s39 = sphi 0, %s37
      %s40 = sphi 0, %s39
      %s54 = sphi 0, %s40
      %s58 = sphi 0, %s58
      %s60 = sphi 0, %s58
      %s61 = sphi 0, %s60
      %s75 = sphi 0, %s61
      %s89 = sphi 0, %s91
      %s92 = sphi 0, %s89
      %s93 = sphi 0, %s92
      %s109 = sphi 0, %s93
      %s123 = sphi 0, %s125
      %s126 = sphi 0, %s123
      %s127 = sphi 0, %s126
      %s143 = sphi 0, %s127
      %s149 = sphi 0, %s151
      %s152 = sphi 0, %s149
      %s153 = sphi 0, %s152
      %s169 = sphi 0, %s153
      %s175 = sphi 0, %s177
      %s178 = sphi 0, %s175
      %s179 = sphi 0, %s178
      %s195 = sphi 0, %s179
      %s201 = sphi 0, %s203
      %s204 = sphi 0, %s201
      %s205 = sphi 0, %s204
      %s221 = sphi 0, %s205
    $region4: #{tpu_custom_call.1} parent=1 // loop_header_branch
      %20 = sbr.rel (%p18) target = $region8
    $region5: #{tpu_custom_call.1} parent=1 // loop_body
      %s22 = ssub.s32 %s17, 1
      %s23 = ssub.s32 %s17, 2
      %s30 = sadd.s32 1, %s25
      %p31 = scmp.ge.s32.totalorder %s30, 2
      %s32 = scalar_select %p31, 0, %s30
      %s33 = sadd.s32 1, %s24
      %s34 = scalar_select %p31, %s33, %s24
      %p35 = scmp.ge.s32.totalorder %s34, 1
      %s36 = scalar_select %p35, 0, %s34
      %s38 = sadd.s32 %s37, 1
      %p41 = scmp.eq.s32.totalorder %s17, 1
      %p42 = scmp.ne.s32.totalorder %s37, %s39
      %p43 = scmp.eq.s32.totalorder %s17, 0
      %p44 = por %p42, %p43
      %p45 = scmp.ne.s32.totalorder %s37, %s39
      %p46 = scmp.eq.s32.totalorder %s22, 1
      %p47 = por %p45, %p46
      %p48 = scmp.ne.s32.totalorder %s39, %s40
      %p49 = scmp.eq.s32.totalorder %s22, 0
      %p50 = por %p48, %p49
      %p51 = scmp.ne.s32.totalorder %s39, %s40
      %p52 = scmp.eq.s32.totalorder %s23, 1
      %p53 = por %p51, %p52
      %p55 = scmp.ne.s32.totalorder %s40, %s54
      %p56 = scmp.eq.s32.totalorder %s23, 0
      %p57 = por %p55, %p56
      %s59 = sadd.s32 %s58, 1
      %p62 = scmp.eq.s32.totalorder %s17, 1
      %p63 = scmp.ne.s32.totalorder %s58, %s60
      %p64 = scmp.eq.s32.totalorder %s17, 0
      %p65 = por %p63, %p64
      %p66 = scmp.ne.s32.totalorder %s58, %s60
      %p67 = scmp.eq.s32.totalorder %s22, 1
      %p68 = por %p66, %p67
      %p69 = scmp.ne.s32.totalorder %s60, %s61
      %p70 = scmp.eq.s32.totalorder %s22, 0
      %p71 = por %p69, %p70
      %p72 = scmp.ne.s32.totalorder %s60, %s61
      %p73 = scmp.eq.s32.totalorder %s23, 1
      %p74 = por %p72, %p73
      %p76 = scmp.ne.s32.totalorder %s61, %s75
      %p77 = scmp.eq.s32.totalorder %s23, 0
      %p78 = por %p76, %p77
      %s79 = smul.u32 %s24, 2
      %s80 = sadd.s32 %s79, %s25
      %p81 = scmp.lt.s32.totalorder %s80, 1
      %s82 = scalar_select %p81, %s80, 1
      %s83 = smul.u32 %s36, 2
      %s84 = sadd.s32 %s83, %s32
      %p85 = scmp.lt.s32.totalorder %s84, 1
      %s86 = scalar_select %p85, %s84, 1
      %s87 = ssub.s32 %s82, %s86
      %p88 = scmp.eq.s32.totalorder %s87, 0
      %s90 = sadd.s32 %s89, 1
      %s91 = scalar_select %p88, %s89, %s90
      %p94 = pneg %p88
      %p95 = scmp.eq.s32.totalorder %s17, 1
      %p96 = por %p94, %p95
      %p97 = scmp.ne.s32.totalorder %s89, %s92
      %p98 = scmp.eq.s32.totalorder %s17, 0
      %p99 = por %p97, %p98
      %p100 = scmp.ne.s32.totalorder %s89, %s92
      %p101 = scmp.eq.s32.totalorder %s22, 1
      %p102 = por %p100, %p101
      %p103 = scmp.ne.s32.totalorder %s92, %s93
      %p104 = scmp.eq.s32.totalorder %s22, 0
      %p105 = por %p103, %p104
      %p106 = scmp.ne.s32.totalorder %s92, %s93
      %p107 = scmp.eq.s32.totalorder %s23, 1
      %p108 = por %p106, %p107
      %p110 = scmp.ne.s32.totalorder %s93, %s109
      %p111 = scmp.eq.s32.totalorder %s23, 0
      %p112 = por %p110, %p111
      %s113 = smul.u32 %s24, 2
      %s114 = sadd.s32 %s113, %s25
      %p115 = scmp.lt.s32.totalorder %s114, 1
      %s116 = scalar_select %p115, %s114, 1
      %s117 = smul.u32 %s36, 2
      %s118 = sadd.s32 %s117, %s32
      %p119 = scmp.lt.s32.totalorder %s118, 1
      %s120 = scalar_select %p119, %s118, 1
      %s121 = ssub.s32 %s116, %s120
      %p122 = scmp.eq.s32.totalorder %s121, 0
      %s124 = sadd.s32 %s123, 1
      %s125 = scalar_select %p122, %s123, %s124
      %p128 = pneg %p122
      %p129 = scmp.eq.s32.totalorder %s17, 1
      %p130 = por %p128, %p129
      %p131 = scmp.ne.s32.totalorder %s123, %s126
      %p132 = scmp.eq.s32.totalorder %s17, 0
      %p133 = por %p131, %p132
      %p134 = scmp.ne.s32.totalorder %s123, %s126
      %p135 = scmp.eq.s32.totalorder %s22, 1
      %p136 = por %p134, %p135
      %p137 = scmp.ne.s32.totalorder %s126, %s127
      %p138 = scmp.eq.s32.totalorder %s22, 0
      %p139 = por %p137, %p138
      %p140 = scmp.ne.s32.totalorder %s126, %s127
      %p141 = scmp.eq.s32.totalorder %s23, 1
      %p142 = por %p140, %p141
      %p144 = scmp.ne.s32.totalorder %s127, %s143
      %p145 = scmp.eq.s32.totalorder %s23, 0
      %p146 = por %p144, %p145
      %s147 = ssub.s32 %s24, %s36
      %p148 = scmp.eq.s32.totalorder %s147, 0
      %s150 = sadd.s32 %s149, 1
      %s151 = scalar_select %p148, %s149, %s150
      %p154 = pneg %p148
      %p155 = scmp.eq.s32.totalorder %s17, 1
      %p156 = por %p154, %p155
      %p157 = scmp.ne.s32.totalorder %s149, %s152
      %p158 = scmp.eq.s32.totalorder %s17, 0
      %p159 = por %p157, %p158
      %p160 = scmp.ne.s32.totalorder %s149, %s152
      %p161 = scmp.eq.s32.totalorder %s22, 1
      %p162 = por %p160, %p161
      %p163 = scmp.ne.s32.totalorder %s152, %s153
      %p164 = scmp.eq.s32.totalorder %s22, 0
      %p165 = por %p163, %p164
      %p166 = scmp.ne.s32.totalorder %s152, %s153
      %p167 = scmp.eq.s32.totalorder %s23, 1
      %p168 = por %p166, %p167
      %p170 = scmp.ne.s32.totalorder %s153, %s169
      %p171 = scmp.eq.s32.totalorder %s23, 0
      %p172 = por %p170, %p171
      %s173 = ssub.s32 %s24, %s36
      %p174 = scmp.eq.s32.totalorder %s173, 0
      %s176 = sadd.s32 %s175, 1
      %s177 = scalar_select %p174, %s175, %s176
      %p180 = pneg %p174
      %p181 = scmp.eq.s32.totalorder %s17, 1
      %p182 = por %p180, %p181
      %p183 = scmp.ne.s32.totalorder %s175, %s178
      %p184 = scmp.eq.s32.totalorder %s17, 0
      %p185 = por %p183, %p184
      %p186 = scmp.ne.s32.totalorder %s175, %s178
      %p187 = scmp.eq.s32.totalorder %s22, 1
      %p188 = por %p186, %p187
      %p189 = scmp.ne.s32.totalorder %s178, %s179
      %p190 = scmp.eq.s32.totalorder %s22, 0
      %p191 = por %p189, %p190
      %p192 = scmp.ne.s32.totalorder %s178, %s179
      %p193 = scmp.eq.s32.totalorder %s23, 1
      %p194 = por %p192, %p193
      %p196 = scmp.ne.s32.totalorder %s179, %s195
      %p197 = scmp.eq.s32.totalorder %s23, 0
      %p198 = por %p196, %p197
      %s199 = ssub.s32 %s24, %s36
      %p200 = scmp.eq.s32.totalorder %s199, 0
      %s202 = sadd.s32 %s201, 1
      %s203 = scalar_select %p200, %s201, %s202
      %p206 = pneg %p200
      %p207 = scmp.eq.s32.totalorder %s17, 1
      %p208 = por %p206, %p207
      %p209 = scmp.ne.s32.totalorder %s201, %s204
      %p210 = scmp.eq.s32.totalorder %s17, 0
      %p211 = por %p209, %p210
      %p212 = scmp.ne.s32.totalorder %s201, %s204
      %p213 = scmp.eq.s32.totalorder %s22, 1
      %p214 = por %p212, %p213
      %p215 = scmp.ne.s32.totalorder %s204, %s205
      %p216 = scmp.eq.s32.totalorder %s22, 0
      %p217 = por %p215, %p216
      %p218 = scmp.ne.s32.totalorder %s204, %s205
      %p219 = scmp.eq.s32.totalorder %s23, 1
      %p220 = por %p218, %p219
      %p222 = scmp.ne.s32.totalorder %s205, %s221
      %p223 = scmp.eq.s32.totalorder %s23, 0
      %p224 = por %p222, %p223
      %p225 = scmp.le.s32.totalorder 1, %s17
      %p226 = scmp.lt.s32.totalorder %s17, 3
      %p227 = pnand %p225, %p226
      %p228 = pneg %p227
      // Predicated region
      $region9: #{tpu_custom_call.1} parent=5 // pred_check
        _
      $region10: #{tpu_custom_call.1} parent=5 // pred_check_branch
        %230 = sbr.rel (%p227) target = $region12
      $region11: #{tpu_custom_call.1} parent=5 // pred_region
        %s231 = ssub.s32 %s17, 1
        // Predicated region
        $region13: #{tpu_custom_call.1} parent=11 // pred_check
          %p232 = pneg %p50
        $region14: #{tpu_custom_call.1} parent=11 // pred_check_branch
          %234 = sbr.rel (%p232) target = $region16
        $region15: #{tpu_custom_call.1} parent=11 // pred_region
          %s236 = ssub.s32 512, 512
          %237 = vsyncadd [#allocation7], %s236
          %s239 = sshll.u32 [#allocation6], 4
          %s240 = int_to_ptr.vmem [resolvable:$true] %s239
          %242 = dma.hbm_to_vmem [thread:$0]  %s0, 512, %s240, [#allocation7]
        $region16: #{tpu_custom_call.1} parent=11 // pred_fallthru
          _
        // Predicated region
        $region17: #{tpu_custom_call.1} parent=11 // pred_check
          %p243 = pneg %p71
        $region18: #{tpu_custom_call.1} parent=11 // pred_check_branch
          %245 = sbr.rel (%p243) target = $region20
        $region19: #{tpu_custom_call.1} parent=11 // pred_region
          _
        $region20: #{tpu_custom_call.1} parent=11 // pred_fallthru
          _
      $region12: #{tpu_custom_call.1} parent=5 // pred_fallthru
        _
      %p246 = scmp.lt.s32.totalorder %s17, 2
      // Predicated region
      $region21: #{tpu_custom_call.1} parent=5 // pred_check
        %p247 = pneg %p246
      $region22: #{tpu_custom_call.1} parent=5 // pred_check_branch
        %249 = sbr.rel (%p247) target = $region24
      $region23: #{tpu_custom_call.1} parent=5 // pred_region
        // Predicated region
        $region25: #{tpu_custom_call.1} parent=23 // pred_check
          %p250 = pneg %p99
        $region26: #{tpu_custom_call.1} parent=23 // pred_check_branch
          %252 = sbr.rel (%p250) target = $region28
        $region27: #{tpu_custom_call.1} parent=23 // pred_region
          %s253 = sand.u32 %s17, 1
          %s254 = scalar_lea.sflag [#allocation9], %s253
          %s255 = sand.u32 %s89, 1
          %s256 = smul.addr %s255, 8192
          %s257 = scalar_lea.vmem [#allocation8], %s256
          %s258 = smul.u32 %s24, 2
          %s259 = sadd.s32 %s258, %s25
          %p260 = scmp.lt.s32.totalorder %s259, 1
          %s261 = scalar_select %p260, %s259, 1
          %s262 = smul.u32 16, %s261
          %s263 = ssub.s32 20, %s262
          %p264 = scmp.lt.s32.totalorder %s263, 16
          %s265 = scalar_select %p264, %s263, 16
          %s266 = smul.u32 8192, %s265
          %s268 = ssub.s32 131072, %s266
          %269 = vsyncadd %s254, %s268
          %p270 = scmp.ne.s32.totalorder 0, %s266
          %s271 = smul.addr %s262, 128
          %s272 = scalar_lea.hbm %s2, %s271
          %s273 = smul.u32 %s265, 8
          %s274 = smul.u32 %s273, 64
          %s275 = sshll.u32 %s257, 4
          %s276 = int_to_ptr.vmem [resolvable:$true] %s275
          %s277 = sshll.u32 %s274, 4
          %281 = dma.hbm_to_vmem [thread:$0]  (%p270), %s272, %s277, %s276, %s254, 2560, 2048, %s273
        $region28: #{tpu_custom_call.1} parent=23 // pred_fallthru
          _
        // Predicated region
        $region29: #{tpu_custom_call.1} parent=23 // pred_check
          %p282 = pneg %p133
        $region30: #{tpu_custom_call.1} parent=23 // pred_check_branch
          %284 = sbr.rel (%p282) target = $region32
        $region31: #{tpu_custom_call.1} parent=23 // pred_region
          %s285 = sand.u32 %s17, 1
          %s286 = scalar_lea.sflag [#allocation9], %s285
          %s287 = sand.u32 %s123, 1
          %s288 = smul.addr %s287, 16
          %s289 = scalar_lea.vmem [#allocation10], %s288
          %s290 = smul.u32 %s24, 2
          %s291 = sadd.s32 %s290, %s25
          %p292 = scmp.lt.s32.totalorder %s291, 1
          %s293 = scalar_select %p292, %s291, 1
          %s294 = smul.u32 16, %s293
          %s295 = ssub.s32 20, %s294
          %p296 = scmp.lt.s32.totalorder %s295, 16
          %s297 = scalar_select %p296, %s295, 16
          %s298 = smul.u32 16, %s297
          %s300 = ssub.s32 256, %s298
          %301 = vsyncadd %s286, %s300
          %p302 = scmp.ne.s32.totalorder 0, %s298
          %s303 = smul.addr %s294, 16
          %s304 = scalar_lea.hbm %s3, %s303
          %s305 = sshll.u32 %s297, 4
          %s306 = sshll.u32 %s289, 4
          %s307 = int_to_ptr.vmem [resolvable:$true] %s306
          %309 = dma.hbm_to_vmem [thread:$0]  (%p302), %s304, %s305, %s307, %s286
        $region32: #{tpu_custom_call.1} parent=23 // pred_fallthru
          _
      $region24: #{tpu_custom_call.1} parent=5 // pred_fallthru
        _
      %p310 = scmp.le.s32.totalorder 1, %s17
      %p311 = scmp.lt.s32.totalorder %s17, 3
      %p312 = pnand %p310, %p311
      %p313 = pneg %p312
      // Predicated region
      $region33: #{tpu_custom_call.1} parent=5 // pred_check
        _
      $region34: #{tpu_custom_call.1} parent=5 // pred_check_branch
        %315 = sbr.rel (%p312) target = $region36
      $region35: #{tpu_custom_call.1} parent=5 // pred_region
        %s316 = ssub.s32 %s17, 1
        // Predicated region
        $region37: #{tpu_custom_call.1} parent=35 // pred_check
          %p317 = pneg %p50
        $region38: #{tpu_custom_call.1} parent=35 // pred_check_branch
          %319 = sbr.rel (%p317) target = $region40
        $region39: #{tpu_custom_call.1} parent=35 // pred_region
          %320 = dma.done [#allocation7], 512
        $region40: #{tpu_custom_call.1} parent=35 // pred_fallthru
          _
        %s321 = sand.u32 %s22, 1
        %s322 = scalar_lea.sflag [#allocation9], %s321
        %s323 = sand.u32 %s92, 1
        %s324 = smul.addr %s323, 8192
        %s325 = scalar_lea.vmem [#allocation8], %s324
        // Predicated region
        $region41: #{tpu_custom_call.1} parent=35 // pred_check
          %p326 = pneg %p105
        $region42: #{tpu_custom_call.1} parent=35 // pred_check_branch
          %328 = sbr.rel (%p326) target = $region44
        $region43: #{tpu_custom_call.1} parent=35 // pred_region
          %329 = dma.done %s322, 131072
        $region44: #{tpu_custom_call.1} parent=35 // pred_fallthru
          _
        %s330 = sand.u32 %s22, 1
        %s331 = scalar_lea.sflag [#allocation9], %s330
        %s332 = sand.u32 %s126, 1
        %s333 = smul.addr %s332, 16
        %s334 = scalar_lea.vmem [#allocation10], %s333
        // Predicated region
        $region45: #{tpu_custom_call.1} parent=35 // pred_check
          %p335 = pneg %p139
        $region46: #{tpu_custom_call.1} parent=35 // pred_check_branch
          %337 = sbr.rel (%p335) target = $region48
        $region47: #{tpu_custom_call.1} parent=35 // pred_region
          %338 = dma.done %s331, 256
        $region48: #{tpu_custom_call.1} parent=35 // pred_fallthru
          _
        %p339 = pneg %p50
        %p340 = pneg %p47
        %p341 = pneg %p71
        %p342 = pneg %p68
        %s343 = sand.u32 %s22, 1
        %s344 = scalar_lea.sflag [#allocation9], %s343
        %s345 = sand.u32 %s92, 1
        %s346 = smul.addr %s345, 8192
        %s347 = scalar_lea.vmem [#allocation8], %s346
        %p348 = pneg %p105
        %p349 = pneg %p102
        %s350 = sand.u32 %s22, 1
        %s351 = scalar_lea.sflag [#allocation9], %s350
        %s352 = sand.u32 %s126, 1
        %s353 = smul.addr %s352, 16
        %s354 = scalar_lea.vmem [#allocation10], %s353
        %p355 = pneg %p139
        %p356 = pneg %p136
        %p357 = pneg %p165
        %p358 = pneg %p162
        %p359 = scmp.lt.s32.totalorder %s26, 0
        %s360 = scalar_select %p359, %s26, 0
        %s361 = smul.addr %s360, 8
        %s362 = scalar_lea.vmem %s4, %s361
        %p363 = pneg %p191
        %p364 = pneg %p188
        %p365 = scmp.lt.s32.totalorder %s26, 0
        %s366 = scalar_select %p365, %s26, 0
        %s367 = smul.addr %s366, 8
        %s368 = scalar_lea.vmem %s5, %s367
        %p369 = pneg %p217
        %p370 = pneg %p214
        %p371 = scmp.lt.s32.totalorder %s26, 0
        %s372 = scalar_select %p371, %s26, 0
        %s373 = smul.addr %s372, 8
        %s374 = scalar_lea.vmem %s6, %s373
        %s375 = smul.u32 %s26, 2
        %s376 = sadd.s32 %s375, %s27
        %p377 = scmp.lt.s32.totalorder %s376, 1
        %s378 = scalar_select %p377, %s376, 1
        %s379 = smul.u32 16, %s378
        %s380 = ssub.s32 20, %s379
        %p381 = scmp.lt.s32.totalorder %s380, 16
        %s382 = scalar_select %p381, %s380, 16
        %s383 = smul.u32 8192, %s382
        %s384 = smul.u32 %s26, 2
        %s385 = sadd.s32 %s384, %s27
        %p386 = scmp.lt.s32.totalorder %s385, 1
        %s387 = scalar_select %p386, %s385, 1
        %s388 = smul.u32 16, %s387
        %s389 = ssub.s32 20, %s388
        %p390 = scmp.lt.s32.totalorder %s389, 16
        %s391 = scalar_select %p390, %s389, 16
        %s392 = smul.u32 16, %s391
        %p393 = scmp.lt.s32.totalorder %s26, 0
        %s394 = scalar_select %p393, %s26, 0
        %s395 = smul.addr %s394, 8
        %s396 = scalar_lea.vmem %s4, %s395
        %p397 = scmp.lt.s32.totalorder %s26, 0
        %s398 = scalar_select %p397, %s26, 0
        %s399 = smul.addr %s398, 8
        %s400 = scalar_lea.vmem %s5, %s399
        %p401 = scmp.lt.s32.totalorder %s26, 0
        %s402 = scalar_select %p401, %s26, 0
        %s403 = smul.addr %s402, 8
        %s404 = scalar_lea.vmem %s6, %s403
        %p405 = scmp.eq.s32.totalorder %s27, 0
        // Predicated region
        $region49: #{tpu_custom_call.1} parent=35 // pred_check
          %p406 = pneg %p405
        $region50: #{tpu_custom_call.1} parent=35 // pred_check_branch
          %408 = sbr.rel (%p406) target = $region52
        $region51: #{tpu_custom_call.1} parent=35 // pred_region
          %vm409 = vcmask 7168
          %410 = vst.msk [vmem:[#allocation2] sm:$0xff] %vm409, -1e+30
          %411 = vst.msk [vmem:[#allocation3] sm:$0xff] %vm409, 0.0
          %412 = vst.msk [vmem:[#allocation4] sm:$0xff] %vm409, 0.0
          %413 = vst.msk [vmem:[#allocation5] sm:$0xff] %vm409, 0.0
        $region52: #{tpu_custom_call.1} parent=35 // pred_fallthru
          _
        %v414 = vld [vmem:[#allocation6] sm:$0xff]
        %v415 = vld [vmem:[#allocation6 + $0x8] sm:$0xff]
        %v416 = vld [vmem:[#allocation6 + $0x10] sm:$0xff]
        %v417 = vld [vmem:[#allocation6 + $0x18] sm:$0xff]
        %v418 = vld [vmem:[%s1] sm:$0xff]
        %s419 = smul.u32 %s26, 2
        %s420 = sadd.s32 %s419, %s27
        %s421 = smul.u32 %s420, 2048
        %v422 = vld [vmem:[%s325] sm:$0xff]
        %v423 = vld [vmem:[%s325 + $0x8] sm:$0xff]
        %v424 = vld [vmem:[%s325 + $0x10] sm:$0xff]
        %v425 = vld [vmem:[%s325 + $0x18] sm:$0xff]
        %v426 = vld [vmem:[%s325 + $0x20] sm:$0xff]
        %v427 = vld [vmem:[%s325 + $0x28] sm:$0xff]
        %v428 = vld [vmem:[%s325 + $0x30] sm:$0xff]
        %v429 = vld [vmem:[%s325 + $0x38] sm:$0xff]
        %v430 = vld [vmem:[%s325 + $0x80] sm:$0xff]
        %v431 = vld [vmem:[%s325 + $0x88] sm:$0xff]
        %v432 = vld [vmem:[%s325 + $0x90] sm:$0xff]
        %v433 = vld [vmem:[%s325 + $0x98] sm:$0xff]
        %v434 = vld [vmem:[%s325 + $0xa0] sm:$0xff]
        %v435 = vld [vmem:[%s325 + $0xa8] sm:$0xff]
        %v436 = vld [vmem:[%s325 + $0xb0] sm:$0xff]
        %v437 = vld [vmem:[%s325 + $0xb8] sm:$0xff]
        %v438 = vld [vmem:[%s325 + $0x100] sm:$0xff]
        %v439 = vld [vmem:[%s325 + $0x108] sm:$0xff]
        %v440 = vld [vmem:[%s325 + $0x110] sm:$0xff]
        %v441 = vld [vmem:[%s325 + $0x118] sm:$0xff]
        %v442 = vld [vmem:[%s325 + $0x120] sm:$0xff]
        %v443 = vld [vmem:[%s325 + $0x128] sm:$0xff]
        %v444 = vld [vmem:[%s325 + $0x130] sm:$0xff]
        %v445 = vld [vmem:[%s325 + $0x138] sm:$0xff]
        %v446 = vld [vmem:[%s325 + $0x180] sm:$0xff]
        %v447 = vld [vmem:[%s325 + $0x188] sm:$0xff]
        %v448 = vld [vmem:[%s325 + $0x190] sm:$0xff]
        %v449 = vld [vmem:[%s325 + $0x198] sm:$0xff]
        %v450 = vld [vmem:[%s325 + $0x1a0] sm:$0xff]
        %v451 = vld [vmem:[%s325 + $0x1a8] sm:$0xff]
        %v452 = vld [vmem:[%s325 + $0x1b0] sm:$0xff]
        %v453 = vld [vmem:[%s325 + $0x1b8] sm:$0xff]
        %v454 = vld [vmem:[%s325 + $0x200] sm:$0xff]
        %v455 = vld [vmem:[%s325 + $0x208] sm:$0xff]
        %v456 = vld [vmem:[%s325 + $0x210] sm:$0xff]
        %v457 = vld [vmem:[%s325 + $0x218] sm:$0xff]
        %v458 = vld [vmem:[%s325 + $0x220] sm:$0xff]
        %v459 = vld [vmem:[%s325 + $0x228] sm:$0xff]
        %v460 = vld [vmem:[%s325 + $0x230] sm:$0xff]
        %v461 = vld [vmem:[%s325 + $0x238] sm:$0xff]
        %v462 = vld [vmem:[%s325 + $0x280] sm:$0xff]
        %v463 = vld [vmem:[%s325 + $0x288] sm:$0xff]
        %v464 = vld [vmem:[%s325 + $0x290] sm:$0xff]
        %v465 = vld [vmem:[%s325 + $0x298] sm:$0xff]
        %v466 = vld [vmem:[%s325 + $0x2a0] sm:$0xff]
        %v467 = vld [vmem:[%s325 + $0x2a8] sm:$0xff]
        %v468 = vld [vmem:[%s325 + $0x2b0] sm:$0xff]
        %v469 = vld [vmem:[%s325 + $0x2b8] sm:$0xff]
        %v470 = vld [vmem:[%s325 + $0x300] sm:$0xff]
        %v471 = vld [vmem:[%s325 + $0x308] sm:$0xff]
        %v472 = vld [vmem:[%s325 + $0x310] sm:$0xff]
        %v473 = vld [vmem:[%s325 + $0x318] sm:$0xff]
        %v474 = vld [vmem:[%s325 + $0x320] sm:$0xff]
        %v475 = vld [vmem:[%s325 + $0x328] sm:$0xff]
        %v476 = vld [vmem:[%s325 + $0x330] sm:$0xff]
        %v477 = vld [vmem:[%s325 + $0x338] sm:$0xff]
        %v478 = vld [vmem:[%s325 + $0x380] sm:$0xff]
        %v479 = vld [vmem:[%s325 + $0x388] sm:$0xff]
        %v480 = vld [vmem:[%s325 + $0x390] sm:$0xff]
        %v481 = vld [vmem:[%s325 + $0x398] sm:$0xff]
        %v482 = vld [vmem:[%s325 + $0x3a0] sm:$0xff]
        %v483 = vld [vmem:[%s325 + $0x3a8] sm:$0xff]
        %v484 = vld [vmem:[%s325 + $0x3b0] sm:$0xff]
        %v485 = vld [vmem:[%s325 + $0x3b8] sm:$0xff]
        %v486 = vld [vmem:[%s325 + $0x400] sm:$0xff]
        %v487 = vld [vmem:[%s325 + $0x408] sm:$0xff]
        %v488 = vld [vmem:[%s325 + $0x410] sm:$0xff]
        %v489 = vld [vmem:[%s325 + $0x418] sm:$0xff]
        %v490 = vld [vmem:[%s325 + $0x420] sm:$0xff]
        %v491 = vld [vmem:[%s325 + $0x428] sm:$0xff]
        %v492 = vld [vmem:[%s325 + $0x430] sm:$0xff]
        %v493 = vld [vmem:[%s325 + $0x438] sm:$0xff]
        %v494 = vld [vmem:[%s325 + $0x480] sm:$0xff]
        %v495 = vld [vmem:[%s325 + $0x488] sm:$0xff]
        %v496 = vld [vmem:[%s325 + $0x490] sm:$0xff]
        %v497 = vld [vmem:[%s325 + $0x498] sm:$0xff]
        %v498 = vld [vmem:[%s325 + $0x4a0] sm:$0xff]
        %v499 = vld [vmem:[%s325 + $0x4a8] sm:$0xff]
        %v500 = vld [vmem:[%s325 + $0x4b0] sm:$0xff]
        %v501 = vld [vmem:[%s325 + $0x4b8] sm:$0xff]
        %v502 = vld [vmem:[%s325 + $0x500] sm:$0xff]
        %v503 = vld [vmem:[%s325 + $0x508] sm:$0xff]
        %v504 = vld [vmem:[%s325 + $0x510] sm:$0xff]
        %v505 = vld [vmem:[%s325 + $0x518] sm:$0xff]
        %v506 = vld [vmem:[%s325 + $0x520] sm:$0xff]
        %v507 = vld [vmem:[%s325 + $0x528] sm:$0xff]
        %v508 = vld [vmem:[%s325 + $0x530] sm:$0xff]
        %v509 = vld [vmem:[%s325 + $0x538] sm:$0xff]
        %v510 = vld [vmem:[%s325 + $0x580] sm:$0xff]
        %v511 = vld [vmem:[%s325 + $0x588] sm:$0xff]
        %v512 = vld [vmem:[%s325 + $0x590] sm:$0xff]
        %v513 = vld [vmem:[%s325 + $0x598] sm:$0xff]
        %v514 = vld [vmem:[%s325 + $0x5a0] sm:$0xff]
        %v515 = vld [vmem:[%s325 + $0x5a8] sm:$0xff]
        %v516 = vld [vmem:[%s325 + $0x5b0] sm:$0xff]
        %v517 = vld [vmem:[%s325 + $0x5b8] sm:$0xff]
        %v518 = vld [vmem:[%s325 + $0x600] sm:$0xff]
        %v519 = vld [vmem:[%s325 + $0x608] sm:$0xff]
        %v520 = vld [vmem:[%s325 + $0x610] sm:$0xff]
        %v521 = vld [vmem:[%s325 + $0x618] sm:$0xff]
        %v522 = vld [vmem:[%s325 + $0x620] sm:$0xff]
        %v523 = vld [vmem:[%s325 + $0x628] sm:$0xff]
        %v524 = vld [vmem:[%s325 + $0x630] sm:$0xff]
        %v525 = vld [vmem:[%s325 + $0x638] sm:$0xff]
        %v526 = vld [vmem:[%s325 + $0x680] sm:$0xff]
        %v527 = vld [vmem:[%s325 + $0x688] sm:$0xff]
        %v528 = vld [vmem:[%s325 + $0x690] sm:$0xff]
        %v529 = vld [vmem:[%s325 + $0x698] sm:$0xff]
        %v530 = vld [vmem:[%s325 + $0x6a0] sm:$0xff]
        %v531 = vld [vmem:[%s325 + $0x6a8] sm:$0xff]
        %v532 = vld [vmem:[%s325 + $0x6b0] sm:$0xff]
        %v533 = vld [vmem:[%s325 + $0x6b8] sm:$0xff]
        %v534 = vld [vmem:[%s325 + $0x700] sm:$0xff]
        %v535 = vld [vmem:[%s325 + $0x708] sm:$0xff]
        %v536 = vld [vmem:[%s325 + $0x710] sm:$0xff]
        %v537 = vld [vmem:[%s325 + $0x718] sm:$0xff]
        %v538 = vld [vmem:[%s325 + $0x720] sm:$0xff]
        %v539 = vld [vmem:[%s325 + $0x728] sm:$0xff]
        %v540 = vld [vmem:[%s325 + $0x730] sm:$0xff]
        %v541 = vld [vmem:[%s325 + $0x738] sm:$0xff]
        %v542 = vld [vmem:[%s325 + $0x780] sm:$0xff]
        %v543 = vld [vmem:[%s325 + $0x788] sm:$0xff]
        %v544 = vld [vmem:[%s325 + $0x790] sm:$0xff]
        %v545 = vld [vmem:[%s325 + $0x798] sm:$0xff]
        %v546 = vld [vmem:[%s325 + $0x7a0] sm:$0xff]
        %v547 = vld [vmem:[%s325 + $0x7a8] sm:$0xff]
        %v548 = vld [vmem:[%s325 + $0x7b0] sm:$0xff]
        %v549 = vld [vmem:[%s325 + $0x7b8] sm:$0xff]
        %v550 = vld [vmem:[%s325 + $0x800] sm:$0xff]
        %v551 = vld [vmem:[%s325 + $0x808] sm:$0xff]
        %v552 = vld [vmem:[%s325 + $0x810] sm:$0xff]
        %v553 = vld [vmem:[%s325 + $0x818] sm:$0xff]
        %v554 = vld [vmem:[%s325 + $0x820] sm:$0xff]
        %v555 = vld [vmem:[%s325 + $0x828] sm:$0xff]
        %v556 = vld [vmem:[%s325 + $0x830] sm:$0xff]
        %v557 = vld [vmem:[%s325 + $0x838] sm:$0xff]
        %v558 = vld [vmem:[%s325 + $0x880] sm:$0xff]
        %v559 = vld [vmem:[%s325 + $0x888] sm:$0xff]
        %v560 = vld [vmem:[%s325 + $0x890] sm:$0xff]
        %v561 = vld [vmem:[%s325 + $0x898] sm:$0xff]
        %v562 = vld [vmem:[%s325 + $0x8a0] sm:$0xff]
        %v563 = vld [vmem:[%s325 + $0x8a8] sm:$0xff]
        %v564 = vld [vmem:[%s325 + $0x8b0] sm:$0xff]
        %v565 = vld [vmem:[%s325 + $0x8b8] sm:$0xff]
        %v566 = vld [vmem:[%s325 + $0x900] sm:$0xff]
        %v567 = vld [vmem:[%s325 + $0x908] sm:$0xff]
        %v568 = vld [vmem:[%s325 + $0x910] sm:$0xff]
        %v569 = vld [vmem:[%s325 + $0x918] sm:$0xff]
        %v570 = vld [vmem:[%s325 + $0x920] sm:$0xff]
        %v571 = vld [vmem:[%s325 + $0x928] sm:$0xff]
        %v572 = vld [vmem:[%s325 + $0x930] sm:$0xff]
        %v573 = vld [vmem:[%s325 + $0x938] sm:$0xff]
        %v574 = vld [vmem:[%s325 + $0x980] sm:$0xff]
        %v575 = vld [vmem:[%s325 + $0x988] sm:$0xff]
        %v576 = vld [vmem:[%s325 + $0x990] sm:$0xff]
        %v577 = vld [vmem:[%s325 + $0x998] sm:$0xff]
        %v578 = vld [vmem:[%s325 + $0x9a0] sm:$0xff]
        %v579 = vld [vmem:[%s325 + $0x9a8] sm:$0xff]
        %v580 = vld [vmem:[%s325 + $0x9b0] sm:$0xff]
        %v581 = vld [vmem:[%s325 + $0x9b8] sm:$0xff]
        %v582 = vld [vmem:[%s325 + $0xa00] sm:$0xff]
        %v583 = vld [vmem:[%s325 + $0xa08] sm:$0xff]
        %v584 = vld [vmem:[%s325 + $0xa10] sm:$0xff]
        %v585 = vld [vmem:[%s325 + $0xa18] sm:$0xff]
        %v586 = vld [vmem:[%s325 + $0xa20] sm:$0xff]
        %v587 = vld [vmem:[%s325 + $0xa28] sm:$0xff]
        %v588 = vld [vmem:[%s325 + $0xa30] sm:$0xff]
        %v589 = vld [vmem:[%s325 + $0xa38] sm:$0xff]
        %v590 = vld [vmem:[%s325 + $0xa80] sm:$0xff]
        %v591 = vld [vmem:[%s325 + $0xa88] sm:$0xff]
        %v592 = vld [vmem:[%s325 + $0xa90] sm:$0xff]
        %v593 = vld [vmem:[%s325 + $0xa98] sm:$0xff]
        %v594 = vld [vmem:[%s325 + $0xaa0] sm:$0xff]
        %v595 = vld [vmem:[%s325 + $0xaa8] sm:$0xff]
        %v596 = vld [vmem:[%s325 + $0xab0] sm:$0xff]
        %v597 = vld [vmem:[%s325 + $0xab8] sm:$0xff]
        %v598 = vld [vmem:[%s325 + $0xb00] sm:$0xff]
        %v599 = vld [vmem:[%s325 + $0xb08] sm:$0xff]
        %v600 = vld [vmem:[%s325 + $0xb10] sm:$0xff]
        %v601 = vld [vmem:[%s325 + $0xb18] sm:$0xff]
        %v602 = vld [vmem:[%s325 + $0xb20] sm:$0xff]
        %v603 = vld [vmem:[%s325 + $0xb28] sm:$0xff]
        %v604 = vld [vmem:[%s325 + $0xb30] sm:$0xff]
        %v605 = vld [vmem:[%s325 + $0xb38] sm:$0xff]
        %v606 = vld [vmem:[%s325 + $0xb80] sm:$0xff]
        %v607 = vld [vmem:[%s325 + $0xb88] sm:$0xff]
        %v608 = vld [vmem:[%s325 + $0xb90] sm:$0xff]
        %v609 = vld [vmem:[%s325 + $0xb98] sm:$0xff]
        %v610 = vld [vmem:[%s325 + $0xba0] sm:$0xff]
        %v611 = vld [vmem:[%s325 + $0xba8] sm:$0xff]
        %v612 = vld [vmem:[%s325 + $0xbb0] sm:$0xff]
        %v613 = vld [vmem:[%s325 + $0xbb8] sm:$0xff]
        %v614 = vld [vmem:[%s325 + $0xc00] sm:$0xff]
        %v615 = vld [vmem:[%s325 + $0xc08] sm:$0xff]
        %v616 = vld [vmem:[%s325 + $0xc10] sm:$0xff]
        %v617 = vld [vmem:[%s325 + $0xc18] sm:$0xff]
        %v618 = vld [vmem:[%s325 + $0xc20] sm:$0xff]
        %v619 = vld [vmem:[%s325 + $0xc28] sm:$0xff]
        %v620 = vld [vmem:[%s325 + $0xc30] sm:$0xff]
        %v621 = vld [vmem:[%s325 + $0xc38] sm:$0xff]
        %v622 = vld [vmem:[%s325 + $0xc80] sm:$0xff]
        %v623 = vld [vmem:[%s325 + $0xc88] sm:$0xff]
        %v624 = vld [vmem:[%s325 + $0xc90] sm:$0xff]
        %v625 = vld [vmem:[%s325 + $0xc98] sm:$0xff]
        %v626 = vld [vmem:[%s325 + $0xca0] sm:$0xff]
        %v627 = vld [vmem:[%s325 + $0xca8] sm:$0xff]
        %v628 = vld [vmem:[%s325 + $0xcb0] sm:$0xff]
        %v629 = vld [vmem:[%s325 + $0xcb8] sm:$0xff]
        %v630 = vld [vmem:[%s325 + $0xd00] sm:$0xff]
        %v631 = vld [vmem:[%s325 + $0xd08] sm:$0xff]
        %v632 = vld [vmem:[%s325 + $0xd10] sm:$0xff]
        %v633 = vld [vmem:[%s325 + $0xd18] sm:$0xff]
        %v634 = vld [vmem:[%s325 + $0xd20] sm:$0xff]
        %v635 = vld [vmem:[%s325 + $0xd28] sm:$0xff]
        %v636 = vld [vmem:[%s325 + $0xd30] sm:$0xff]
        %v637 = vld [vmem:[%s325 + $0xd38] sm:$0xff]
        %v638 = vld [vmem:[%s325 + $0xd80] sm:$0xff]
        %v639 = vld [vmem:[%s325 + $0xd88] sm:$0xff]
        %v640 = vld [vmem:[%s325 + $0xd90] sm:$0xff]
        %v641 = vld [vmem:[%s325 + $0xd98] sm:$0xff]
        %v642 = vld [vmem:[%s325 + $0xda0] sm:$0xff]
        %v643 = vld [vmem:[%s325 + $0xda8] sm:$0xff]
        %v644 = vld [vmem:[%s325 + $0xdb0] sm:$0xff]
        %v645 = vld [vmem:[%s325 + $0xdb8] sm:$0xff]
        %v646 = vld [vmem:[%s325 + $0xe00] sm:$0xff]
        %v647 = vld [vmem:[%s325 + $0xe08] sm:$0xff]
        %v648 = vld [vmem:[%s325 + $0xe10] sm:$0xff]
        %v649 = vld [vmem:[%s325 + $0xe18] sm:$0xff]
        %v650 = vld [vmem:[%s325 + $0xe20] sm:$0xff]
        %v651 = vld [vmem:[%s325 + $0xe28] sm:$0xff]
        %v652 = vld [vmem:[%s325 + $0xe30] sm:$0xff]
        %v653 = vld [vmem:[%s325 + $0xe38] sm:$0xff]
        %v654 = vld [vmem:[%s325 + $0xe80] sm:$0xff]
        %v655 = vld [vmem:[%s325 + $0xe88] sm:$0xff]
        %v656 = vld [vmem:[%s325 + $0xe90] sm:$0xff]
        %v657 = vld [vmem:[%s325 + $0xe98] sm:$0xff]
        %v658 = vld [vmem:[%s325 + $0xea0] sm:$0xff]
        %v659 = vld [vmem:[%s325 + $0xea8] sm:$0xff]
        %v660 = vld [vmem:[%s325 + $0xeb0] sm:$0xff]
        %v661 = vld [vmem:[%s325 + $0xeb8] sm:$0xff]
        %v662 = vld [vmem:[%s325 + $0xf00] sm:$0xff]
        %v663 = vld [vmem:[%s325 + $0xf08] sm:$0xff]
        %v664 = vld [vmem:[%s325 + $0xf10] sm:$0xff]
        %v665 = vld [vmem:[%s325 + $0xf18] sm:$0xff]
        %v666 = vld [vmem:[%s325 + $0xf20] sm:$0xff]
        %v667 = vld [vmem:[%s325 + $0xf28] sm:$0xff]
        %v668 = vld [vmem:[%s325 + $0xf30] sm:$0xff]
        %v669 = vld [vmem:[%s325 + $0xf38] sm:$0xff]
        %v670 = vld [vmem:[%s325 + $0xf80] sm:$0xff]
        %v671 = vld [vmem:[%s325 + $0xf88] sm:$0xff]
        %v672 = vld [vmem:[%s325 + $0xf90] sm:$0xff]
        %v673 = vld [vmem:[%s325 + $0xf98] sm:$0xff]
        %v674 = vld [vmem:[%s325 + $0xfa0] sm:$0xff]
        %v675 = vld [vmem:[%s325 + $0xfa8] sm:$0xff]
        %v676 = vld [vmem:[%s325 + $0xfb0] sm:$0xff]
        %v677 = vld [vmem:[%s325 + $0xfb8] sm:$0xff]
        %v678 = vld [vmem:[%s325 + $0x1000] sm:$0xff]
        %v679 = vld [vmem:[%s325 + $0x1008] sm:$0xff]
        %v680 = vld [vmem:[%s325 + $0x1010] sm:$0xff]
        %v681 = vld [vmem:[%s325 + $0x1018] sm:$0xff]
        %v682 = vld [vmem:[%s325 + $0x1020] sm:$0xff]
        %v683 = vld [vmem:[%s325 + $0x1028] sm:$0xff]
        %v684 = vld [vmem:[%s325 + $0x1030] sm:$0xff]
        %v685 = vld [vmem:[%s325 + $0x1038] sm:$0xff]
        %v686 = vld [vmem:[%s325 + $0x1080] sm:$0xff]
        %v687 = vld [vmem:[%s325 + $0x1088] sm:$0xff]
        %v688 = vld [vmem:[%s325 + $0x1090] sm:$0xff]
        %v689 = vld [vmem:[%s325 + $0x1098] sm:$0xff]
        %v690 = vld [vmem:[%s325 + $0x10a0] sm:$0xff]
        %v691 = vld [vmem:[%s325 + $0x10a8] sm:$0xff]
        %v692 = vld [vmem:[%s325 + $0x10b0] sm:$0xff]
        %v693 = vld [vmem:[%s325 + $0x10b8] sm:$0xff]
        %v694 = vld [vmem:[%s325 + $0x1100] sm:$0xff]
        %v695 = vld [vmem:[%s325 + $0x1108] sm:$0xff]
        %v696 = vld [vmem:[%s325 + $0x1110] sm:$0xff]
        %v697 = vld [vmem:[%s325 + $0x1118] sm:$0xff]
        %v698 = vld [vmem:[%s325 + $0x1120] sm:$0xff]
        %v699 = vld [vmem:[%s325 + $0x1128] sm:$0xff]
        %v700 = vld [vmem:[%s325 + $0x1130] sm:$0xff]
        %v701 = vld [vmem:[%s325 + $0x1138] sm:$0xff]
        %v702 = vld [vmem:[%s325 + $0x1180] sm:$0xff]
        %v703 = vld [vmem:[%s325 + $0x1188] sm:$0xff]
        %v704 = vld [vmem:[%s325 + $0x1190] sm:$0xff]
        %v705 = vld [vmem:[%s325 + $0x1198] sm:$0xff]
        %v706 = vld [vmem:[%s325 + $0x11a0] sm:$0xff]
        %v707 = vld [vmem:[%s325 + $0x11a8] sm:$0xff]
        %v708 = vld [vmem:[%s325 + $0x11b0] sm:$0xff]
        %v709 = vld [vmem:[%s325 + $0x11b8] sm:$0xff]
        %v710 = vld [vmem:[%s325 + $0x1200] sm:$0xff]
        %v711 = vld [vmem:[%s325 + $0x1208] sm:$0xff]
        %v712 = vld [vmem:[%s325 + $0x1210] sm:$0xff]
        %v713 = vld [vmem:[%s325 + $0x1218] sm:$0xff]
        %v714 = vld [vmem:[%s325 + $0x1220] sm:$0xff]
        %v715 = vld [vmem:[%s325 + $0x1228] sm:$0xff]
        %v716 = vld [vmem:[%s325 + $0x1230] sm:$0xff]
        %v717 = vld [vmem:[%s325 + $0x1238] sm:$0xff]
        %v718 = vld [vmem:[%s325 + $0x1280] sm:$0xff]
        %v719 = vld [vmem:[%s325 + $0x1288] sm:$0xff]
        %v720 = vld [vmem:[%s325 + $0x1290] sm:$0xff]
        %v721 = vld [vmem:[%s325 + $0x1298] sm:$0xff]
        %v722 = vld [vmem:[%s325 + $0x12a0] sm:$0xff]
        %v723 = vld [vmem:[%s325 + $0x12a8] sm:$0xff]
        %v724 = vld [vmem:[%s325 + $0x12b0] sm:$0xff]
        %v725 = vld [vmem:[%s325 + $0x12b8] sm:$0xff]
        %v726 = vld [vmem:[%s325 + $0x1300] sm:$0xff]
        %v727 = vld [vmem:[%s325 + $0x1308] sm:$0xff]
        %v728 = vld [vmem:[%s325 + $0x1310] sm:$0xff]
        %v729 = vld [vmem:[%s325 + $0x1318] sm:$0xff]
        %v730 = vld [vmem:[%s325 + $0x1320] sm:$0xff]
        %v731 = vld [vmem:[%s325 + $0x1328] sm:$0xff]
        %v732 = vld [vmem:[%s325 + $0x1330] sm:$0xff]
        %v733 = vld [vmem:[%s325 + $0x1338] sm:$0xff]
        %v734 = vld [vmem:[%s325 + $0x1380] sm:$0xff]
        %v735 = vld [vmem:[%s325 + $0x1388] sm:$0xff]
        %v736 = vld [vmem:[%s325 + $0x1390] sm:$0xff]
        %v737 = vld [vmem:[%s325 + $0x1398] sm:$0xff]
        %v738 = vld [vmem:[%s325 + $0x13a0] sm:$0xff]
        %v739 = vld [vmem:[%s325 + $0x13a8] sm:$0xff]
        %v740 = vld [vmem:[%s325 + $0x13b0] sm:$0xff]
        %v741 = vld [vmem:[%s325 + $0x13b8] sm:$0xff]
        %v742 = vld [vmem:[%s325 + $0x1400] sm:$0xff]
        %v743 = vld [vmem:[%s325 + $0x1408] sm:$0xff]
        %v744 = vld [vmem:[%s325 + $0x1410] sm:$0xff]
        %v745 = vld [vmem:[%s325 + $0x1418] sm:$0xff]
        %v746 = vld [vmem:[%s325 + $0x1420] sm:$0xff]
        %v747 = vld [vmem:[%s325 + $0x1428] sm:$0xff]
        %v748 = vld [vmem:[%s325 + $0x1430] sm:$0xff]
        %v749 = vld [vmem:[%s325 + $0x1438] sm:$0xff]
        %v750 = vld [vmem:[%s325 + $0x1480] sm:$0xff]
        %v751 = vld [vmem:[%s325 + $0x1488] sm:$0xff]
        %v752 = vld [vmem:[%s325 + $0x1490] sm:$0xff]
        %v753 = vld [vmem:[%s325 + $0x1498] sm:$0xff]
        %v754 = vld [vmem:[%s325 + $0x14a0] sm:$0xff]
        %v755 = vld [vmem:[%s325 + $0x14a8] sm:$0xff]
        %v756 = vld [vmem:[%s325 + $0x14b0] sm:$0xff]
        %v757 = vld [vmem:[%s325 + $0x14b8] sm:$0xff]
        %v758 = vld [vmem:[%s325 + $0x1500] sm:$0xff]
        %v759 = vld [vmem:[%s325 + $0x1508] sm:$0xff]
        %v760 = vld [vmem:[%s325 + $0x1510] sm:$0xff]
        %v761 = vld [vmem:[%s325 + $0x1518] sm:$0xff]
        %v762 = vld [vmem:[%s325 + $0x1520] sm:$0xff]
        %v763 = vld [vmem:[%s325 + $0x1528] sm:$0xff]
        %v764 = vld [vmem:[%s325 + $0x1530] sm:$0xff]
        %v765 = vld [vmem:[%s325 + $0x1538] sm:$0xff]
        %v766 = vld [vmem:[%s325 + $0x1580] sm:$0xff]
        %v767 = vld [vmem:[%s325 + $0x1588] sm:$0xff]
        %v768 = vld [vmem:[%s325 + $0x1590] sm:$0xff]
        %v769 = vld [vmem:[%s325 + $0x1598] sm:$0xff]
        %v770 = vld [vmem:[%s325 + $0x15a0] sm:$0xff]
        %v771 = vld [vmem:[%s325 + $0x15a8] sm:$0xff]
        %v772 = vld [vmem:[%s325 + $0x15b0] sm:$0xff]
        %v773 = vld [vmem:[%s325 + $0x15b8] sm:$0xff]
        %v774 = vld [vmem:[%s325 + $0x1600] sm:$0xff]
        %v775 = vld [vmem:[%s325 + $0x1608] sm:$0xff]
        %v776 = vld [vmem:[%s325 + $0x1610] sm:$0xff]
        %v777 = vld [vmem:[%s325 + $0x1618] sm:$0xff]
        %v778 = vld [vmem:[%s325 + $0x1620] sm:$0xff]
        %v779 = vld [vmem:[%s325 + $0x1628] sm:$0xff]
        %v780 = vld [vmem:[%s325 + $0x1630] sm:$0xff]
        %v781 = vld [vmem:[%s325 + $0x1638] sm:$0xff]
        %v782 = vld [vmem:[%s325 + $0x1680] sm:$0xff]
        %v783 = vld [vmem:[%s325 + $0x1688] sm:$0xff]
        %v784 = vld [vmem:[%s325 + $0x1690] sm:$0xff]
        %v785 = vld [vmem:[%s325 + $0x1698] sm:$0xff]
        %v786 = vld [vmem:[%s325 + $0x16a0] sm:$0xff]
        %v787 = vld [vmem:[%s325 + $0x16a8] sm:$0xff]
        %v788 = vld [vmem:[%s325 + $0x16b0] sm:$0xff]
        %v789 = vld [vmem:[%s325 + $0x16b8] sm:$0xff]
        %v790 = vld [vmem:[%s325 + $0x1700] sm:$0xff]
        %v791 = vld [vmem:[%s325 + $0x1708] sm:$0xff]
        %v792 = vld [vmem:[%s325 + $0x1710] sm:$0xff]
        %v793 = vld [vmem:[%s325 + $0x1718] sm:$0xff]
        %v794 = vld [vmem:[%s325 + $0x1720] sm:$0xff]
        %v795 = vld [vmem:[%s325 + $0x1728] sm:$0xff]
        %v796 = vld [vmem:[%s325 + $0x1730] sm:$0xff]
        %v797 = vld [vmem:[%s325 + $0x1738] sm:$0xff]
        %v798 = vld [vmem:[%s325 + $0x1780] sm:$0xff]
        %v799 = vld [vmem:[%s325 + $0x1788] sm:$0xff]
        %v800 = vld [vmem:[%s325 + $0x1790] sm:$0xff]
        %v801 = vld [vmem:[%s325 + $0x1798] sm:$0xff]
        %v802 = vld [vmem:[%s325 + $0x17a0] sm:$0xff]
        %v803 = vld [vmem:[%s325 + $0x17a8] sm:$0xff]
        %v804 = vld [vmem:[%s325 + $0x17b0] sm:$0xff]
        %v805 = vld [vmem:[%s325 + $0x17b8] sm:$0xff]
        %v806 = vld [vmem:[%s325 + $0x1800] sm:$0xff]
        %v807 = vld [vmem:[%s325 + $0x1808] sm:$0xff]
        %v808 = vld [vmem:[%s325 + $0x1810] sm:$0xff]
        %v809 = vld [vmem:[%s325 + $0x1818] sm:$0xff]
        %v810 = vld [vmem:[%s325 + $0x1820] sm:$0xff]
        %v811 = vld [vmem:[%s325 + $0x1828] sm:$0xff]
        %v812 = vld [vmem:[%s325 + $0x1830] sm:$0xff]
        %v813 = vld [vmem:[%s325 + $0x1838] sm:$0xff]
        %v814 = vld [vmem:[%s325 + $0x1880] sm:$0xff]
        %v815 = vld [vmem:[%s325 + $0x1888] sm:$0xff]
        %v816 = vld [vmem:[%s325 + $0x1890] sm:$0xff]
        %v817 = vld [vmem:[%s325 + $0x1898] sm:$0xff]
        %v818 = vld [vmem:[%s325 + $0x18a0] sm:$0xff]
        %v819 = vld [vmem:[%s325 + $0x18a8] sm:$0xff]
        %v820 = vld [vmem:[%s325 + $0x18b0] sm:$0xff]
        %v821 = vld [vmem:[%s325 + $0x18b8] sm:$0xff]
        %v822 = vld [vmem:[%s325 + $0x1900] sm:$0xff]
        %v823 = vld [vmem:[%s325 + $0x1908] sm:$0xff]
        %v824 = vld [vmem:[%s325 + $0x1910] sm:$0xff]
        %v825 = vld [vmem:[%s325 + $0x1918] sm:$0xff]
        %v826 = vld [vmem:[%s325 + $0x1920] sm:$0xff]
        %v827 = vld [vmem:[%s325 + $0x1928] sm:$0xff]
        %v828 = vld [vmem:[%s325 + $0x1930] sm:$0xff]
        %v829 = vld [vmem:[%s325 + $0x1938] sm:$0xff]
        %v830 = vld [vmem:[%s325 + $0x1980] sm:$0xff]
        %v831 = vld [vmem:[%s325 + $0x1988] sm:$0xff]
        %v832 = vld [vmem:[%s325 + $0x1990] sm:$0xff]
        %v833 = vld [vmem:[%s325 + $0x1998] sm:$0xff]
        %v834 = vld [vmem:[%s325 + $0x19a0] sm:$0xff]
        %v835 = vld [vmem:[%s325 + $0x19a8] sm:$0xff]
        %v836 = vld [vmem:[%s325 + $0x19b0] sm:$0xff]
        %v837 = vld [vmem:[%s325 + $0x19b8] sm:$0xff]
        %v838 = vld [vmem:[%s325 + $0x1a00] sm:$0xff]
        %v839 = vld [vmem:[%s325 + $0x1a08] sm:$0xff]
        %v840 = vld [vmem:[%s325 + $0x1a10] sm:$0xff]
        %v841 = vld [vmem:[%s325 + $0x1a18] sm:$0xff]
        %v842 = vld [vmem:[%s325 + $0x1a20] sm:$0xff]
        %v843 = vld [vmem:[%s325 + $0x1a28] sm:$0xff]
        %v844 = vld [vmem:[%s325 + $0x1a30] sm:$0xff]
        %v845 = vld [vmem:[%s325 + $0x1a38] sm:$0xff]
        %v846 = vld [vmem:[%s325 + $0x1a80] sm:$0xff]
        %v847 = vld [vmem:[%s325 + $0x1a88] sm:$0xff]
        %v848 = vld [vmem:[%s325 + $0x1a90] sm:$0xff]
        %v849 = vld [vmem:[%s325 + $0x1a98] sm:$0xff]
        %v850 = vld [vmem:[%s325 + $0x1aa0] sm:$0xff]
        %v851 = vld [vmem:[%s325 + $0x1aa8] sm:$0xff]
        %v852 = vld [vmem:[%s325 + $0x1ab0] sm:$0xff]
        %v853 = vld [vmem:[%s325 + $0x1ab8] sm:$0xff]
        %v854 = vld [vmem:[%s325 + $0x1b00] sm:$0xff]
        %v855 = vld [vmem:[%s325 + $0x1b08] sm:$0xff]
        %v856 = vld [vmem:[%s325 + $0x1b10] sm:$0xff]
        %v857 = vld [vmem:[%s325 + $0x1b18] sm:$0xff]
        %v858 = vld [vmem:[%s325 + $0x1b20] sm:$0xff]
        %v859 = vld [vmem:[%s325 + $0x1b28] sm:$0xff]
        %v860 = vld [vmem:[%s325 + $0x1b30] sm:$0xff]
        %v861 = vld [vmem:[%s325 + $0x1b38] sm:$0xff]
        %v862 = vld [vmem:[%s325 + $0x1b80] sm:$0xff]
        %v863 = vld [vmem:[%s325 + $0x1b88] sm:$0xff]
        %v864 = vld [vmem:[%s325 + $0x1b90] sm:$0xff]
        %v865 = vld [vmem:[%s325 + $0x1b98] sm:$0xff]
        %v866 = vld [vmem:[%s325 + $0x1ba0] sm:$0xff]
        %v867 = vld [vmem:[%s325 + $0x1ba8] sm:$0xff]
        %v868 = vld [vmem:[%s325 + $0x1bb0] sm:$0xff]
        %v869 = vld [vmem:[%s325 + $0x1bb8] sm:$0xff]
        %v870 = vld [vmem:[%s325 + $0x1c00] sm:$0xff]
        %v871 = vld [vmem:[%s325 + $0x1c08] sm:$0xff]
        %v872 = vld [vmem:[%s325 + $0x1c10] sm:$0xff]
        %v873 = vld [vmem:[%s325 + $0x1c18] sm:$0xff]
        %v874 = vld [vmem:[%s325 + $0x1c20] sm:$0xff]
        %v875 = vld [vmem:[%s325 + $0x1c28] sm:$0xff]
        %v876 = vld [vmem:[%s325 + $0x1c30] sm:$0xff]
        %v877 = vld [vmem:[%s325 + $0x1c38] sm:$0xff]
        %v878 = vld [vmem:[%s325 + $0x1c80] sm:$0xff]
        %v879 = vld [vmem:[%s325 + $0x1c88] sm:$0xff]
        %v880 = vld [vmem:[%s325 + $0x1c90] sm:$0xff]
        %v881 = vld [vmem:[%s325 + $0x1c98] sm:$0xff]
        %v882 = vld [vmem:[%s325 + $0x1ca0] sm:$0xff]
        %v883 = vld [vmem:[%s325 + $0x1ca8] sm:$0xff]
        %v884 = vld [vmem:[%s325 + $0x1cb0] sm:$0xff]
        %v885 = vld [vmem:[%s325 + $0x1cb8] sm:$0xff]
        %v886 = vld [vmem:[%s325 + $0x1d00] sm:$0xff]
        %v887 = vld [vmem:[%s325 + $0x1d08] sm:$0xff]
        %v888 = vld [vmem:[%s325 + $0x1d10] sm:$0xff]
        %v889 = vld [vmem:[%s325 + $0x1d18] sm:$0xff]
        %v890 = vld [vmem:[%s325 + $0x1d20] sm:$0xff]
        %v891 = vld [vmem:[%s325 + $0x1d28] sm:$0xff]
        %v892 = vld [vmem:[%s325 + $0x1d30] sm:$0xff]
        %v893 = vld [vmem:[%s325 + $0x1d38] sm:$0xff]
        %v894 = vld [vmem:[%s325 + $0x1d80] sm:$0xff]
        %v895 = vld [vmem:[%s325 + $0x1d88] sm:$0xff]
        %v896 = vld [vmem:[%s325 + $0x1d90] sm:$0xff]
        %v897 = vld [vmem:[%s325 + $0x1d98] sm:$0xff]
        %v898 = vld [vmem:[%s325 + $0x1da0] sm:$0xff]
        %v899 = vld [vmem:[%s325 + $0x1da8] sm:$0xff]
        %v900 = vld [vmem:[%s325 + $0x1db0] sm:$0xff]
        %v901 = vld [vmem:[%s325 + $0x1db8] sm:$0xff]
        %v902 = vld [vmem:[%s325 + $0x1e00] sm:$0xff]
        %v903 = vld [vmem:[%s325 + $0x1e08] sm:$0xff]
        %v904 = vld [vmem:[%s325 + $0x1e10] sm:$0xff]
        %v905 = vld [vmem:[%s325 + $0x1e18] sm:$0xff]
        %v906 = vld [vmem:[%s325 + $0x1e20] sm:$0xff]
        %v907 = vld [vmem:[%s325 + $0x1e28] sm:$0xff]
        %v908 = vld [vmem:[%s325 + $0x1e30] sm:$0xff]
        %v909 = vld [vmem:[%s325 + $0x1e38] sm:$0xff]
        %v910 = vld [vmem:[%s325 + $0x1e80] sm:$0xff]
        %v911 = vld [vmem:[%s325 + $0x1e88] sm:$0xff]
        %v912 = vld [vmem:[%s325 + $0x1e90] sm:$0xff]
        %v913 = vld [vmem:[%s325 + $0x1e98] sm:$0xff]
        %v914 = vld [vmem:[%s325 + $0x1ea0] sm:$0xff]
        %v915 = vld [vmem:[%s325 + $0x1ea8] sm:$0xff]
        %v916 = vld [vmem:[%s325 + $0x1eb0] sm:$0xff]
        %v917 = vld [vmem:[%s325 + $0x1eb8] sm:$0xff]
        %v918 = vld [vmem:[%s325 + $0x1f00] sm:$0xff]
        %v919 = vld [vmem:[%s325 + $0x1f08] sm:$0xff]
        %v920 = vld [vmem:[%s325 + $0x1f10] sm:$0xff]
        %v921 = vld [vmem:[%s325 + $0x1f18] sm:$0xff]
        %v922 = vld [vmem:[%s325 + $0x1f20] sm:$0xff]
        %v923 = vld [vmem:[%s325 + $0x1f28] sm:$0xff]
        %v924 = vld [vmem:[%s325 + $0x1f30] sm:$0xff]
        %v925 = vld [vmem:[%s325 + $0x1f38] sm:$0xff]
        %v926 = vld [vmem:[%s325 + $0x1f80] sm:$0xff]
        %v927 = vld [vmem:[%s325 + $0x1f88] sm:$0xff]
        %v928 = vld [vmem:[%s325 + $0x1f90] sm:$0xff]
        %v929 = vld [vmem:[%s325 + $0x1f98] sm:$0xff]
        %v930 = vld [vmem:[%s325 + $0x1fa0] sm:$0xff]
        %v931 = vld [vmem:[%s325 + $0x1fa8] sm:$0xff]
        %v932 = vld [vmem:[%s325 + $0x1fb0] sm:$0xff]
        %v933 = vld [vmem:[%s325 + $0x1fb8] sm:$0xff]
        %934 = vmatprep.subr.mxu0 %v543
        %935 = vmatpush1.msra.mxu0 %v542
        %936 = vmatprep.subr.mxu0 %v535
        %937 = vmatpush1.msra.mxu0 %v534
        %938 = vmatprep.subr.mxu0 %v527
        %939 = vmatpush1.msra.mxu0 %v526
        %940 = vmatprep.subr.mxu0 %v519
        %941 = vmatpush1.msra.mxu0 %v518
        %942 = vmatprep.subr.mxu0 %v511
        %943 = vmatpush1.msra.mxu0 %v510
        %944 = vmatprep.subr.mxu0 %v503
        %945 = vmatpush1.msra.mxu0 %v502
        %946 = vmatprep.subr.mxu0 %v495
        %947 = vmatpush1.msra.mxu0 %v494
        %948 = vmatprep.subr.mxu0 %v487
        %949 = vmatpush1.msra.mxu0 %v486
        %950 = vmatprep.subr.mxu0 %v479
        %951 = vmatpush1.msra.mxu0 %v478
        %952 = vmatprep.subr.mxu0 %v471
        %953 = vmatpush1.msra.mxu0 %v470
        %954 = vmatprep.subr.mxu0 %v463
        %955 = vmatpush1.msra.mxu0 %v462
        %956 = vmatprep.subr.mxu0 %v455
        %957 = vmatpush1.msra.mxu0 %v454
        %958 = vmatprep.subr.mxu0 %v447
        %959 = vmatpush1.msra.mxu0 %v446
        %960 = vmatprep.subr.mxu0 %v439
        %961 = vmatpush1.msra.mxu0 %v438
        %962 = vmatprep.subr.mxu0 %v431
        %963 = vmatpush1.msra.mxu0 %v430
        %964 = vmatprep.subr.mxu0 %v423
        %965 = vmatpush1.msra.mxu0 %v422
        %966 = vmatprep.subr.mxu0 %v671
        %967 = vmatpush2.msra.mxu0 %v670
        %968 = vmatprep.subr.mxu0 %v663
        %969 = vmatpush2.msra.mxu0 %v662
        %970 = vmatprep.subr.mxu0 %v655
        %971 = vmatpush2.msra.mxu0 %v654
        %972 = vmatprep.subr.mxu0 %v647
        %973 = vmatpush2.msra.mxu0 %v646
        %974 = vmatprep.subr.mxu0 %v639
        %975 = vmatpush2.msra.mxu0 %v638
        %976 = vmatprep.subr.mxu0 %v631
        %977 = vmatpush2.msra.mxu0 %v630
        %978 = vmatprep.subr.mxu0 %v623
        %979 = vmatpush2.msra.mxu0 %v622
        %980 = vmatprep.subr.mxu0 %v615
        %981 = vmatpush2.msra.mxu0 %v614
        %982 = vmatprep.subr.mxu0 %v607
        %983 = vmatpush2.msra.mxu0 %v606
        %984 = vmatprep.subr.mxu0 %v599
        %985 = vmatpush2.msra.mxu0 %v598
        %986 = vmatprep.subr.mxu0 %v591
        %987 = vmatpush2.msra.mxu0 %v590
        %988 = vmatprep.subr.mxu0 %v583
        %989 = vmatpush2.msra.mxu0 %v582
        %990 = vmatprep.subr.mxu0 %v575
        %991 = vmatpush2.msra.mxu0 %v574
        %992 = vmatprep.subr.mxu0 %v567
        %993 = vmatpush2.msra.mxu0 %v566
        %994 = vmatprep.subr.mxu0 %v559
        %995 = vmatpush2.msra.mxu0 %v558
        %996 = vmatprep.subr.mxu0 %v551
        %997 = vmatpush2.msra.mxu0 %v550
        %998 = vmatprep.mubr.f32.mxu0 %v415
        %999 = vmatmul.mubr.f32.gmra.mxu0 %v414
        %v1000 = vpop.f32.mrf.mxu0
        %v1001 = vadd.f32 0.0, %v1000
        %v1002 = vpop.f32.mrf.mxu0
        %v1003 = vadd.f32 0.0, %v1002
        %1004 = vdwg.mxu0
        %1005 = vmatprep.subr.mxu0 %v799
        %1006 = vmatpush1.msra.mxu0 %v798
        %1007 = vmatprep.subr.mxu0 %v791
        %1008 = vmatpush1.msra.mxu0 %v790
        %1009 = vmatprep.subr.mxu0 %v783
        %1010 = vmatpush1.msra.mxu0 %v782
        %1011 = vmatprep.subr.mxu0 %v775
        %1012 = vmatpush1.msra.mxu0 %v774
        %1013 = vmatprep.subr.mxu0 %v767
        %1014 = vmatpush1.msra.mxu0 %v766
        %1015 = vmatprep.subr.mxu0 %v759
        %1016 = vmatpush1.msra.mxu0 %v758
        %1017 = vmatprep.subr.mxu0 %v751
        %1018 = vmatpush1.msra.mxu0 %v750
        %1019 = vmatprep.subr.mxu0 %v743
        %1020 = vmatpush1.msra.mxu0 %v742
        %1021 = vmatprep.subr.mxu0 %v735
        %1022 = vmatpush1.msra.mxu0 %v734
        %1023 = vmatprep.subr.mxu0 %v727
        %1024 = vmatpush1.msra.mxu0 %v726
        %1025 = vmatprep.subr.mxu0 %v719
        %1026 = vmatpush1.msra.mxu0 %v718
        %1027 = vmatprep.subr.mxu0 %v711
        %1028 = vmatpush1.msra.mxu0 %v710
        %1029 = vmatprep.subr.mxu0 %v703
        %1030 = vmatpush1.msra.mxu0 %v702
        %1031 = vmatprep.subr.mxu0 %v695
        %1032 = vmatpush1.msra.mxu0 %v694
        %1033 = vmatprep.subr.mxu0 %v687
        %1034 = vmatpush1.msra.mxu0 %v686
        %1035 = vmatprep.subr.mxu0 %v679
        %1036 = vmatpush1.msra.mxu0 %v678
        %1037 = vmatprep.subr.mxu0 %v927
        %1038 = vmatpush2.msra.mxu0 %v926
        %1039 = vmatprep.subr.mxu0 %v919
        %1040 = vmatpush2.msra.mxu0 %v918
        %1041 = vmatprep.subr.mxu0 %v911
        %1042 = vmatpush2.msra.mxu0 %v910
        %1043 = vmatprep.subr.mxu0 %v903
        %1044 = vmatpush2.msra.mxu0 %v902
        %1045 = vmatprep.subr.mxu0 %v895
        %1046 = vmatpush2.msra.mxu0 %v894
        %1047 = vmatprep.subr.mxu0 %v887
        %1048 = vmatpush2.msra.mxu0 %v886
        %1049 = vmatprep.subr.mxu0 %v879
        %1050 = vmatpush2.msra.mxu0 %v878
        %1051 = vmatprep.subr.mxu0 %v871
        %1052 = vmatpush2.msra.mxu0 %v870
        %1053 = vmatprep.subr.mxu0 %v863
        %1054 = vmatpush2.msra.mxu0 %v862
        %1055 = vmatprep.subr.mxu0 %v855
        %1056 = vmatpush2.msra.mxu0 %v854
        %1057 = vmatprep.subr.mxu0 %v847
        %1058 = vmatpush2.msra.mxu0 %v846
        %1059 = vmatprep.subr.mxu0 %v839
        %1060 = vmatpush2.msra.mxu0 %v838
        %1061 = vmatprep.subr.mxu0 %v831
        %1062 = vmatpush2.msra.mxu0 %v830
        %1063 = vmatprep.subr.mxu0 %v823
        %1064 = vmatpush2.msra.mxu0 %v822
        %1065 = vmatprep.subr.mxu0 %v815
        %1066 = vmatpush2.msra.mxu0 %v814
        %1067 = vmatprep.subr.mxu0 %v807
        %1068 = vmatpush2.msra.mxu0 %v806
        %1069 = vmatprep.mubr.f32.mxu0 %v417
        %1070 = vmatmul.mubr.f32.gmra.mxu0 %v416
        %v1071 = vpop.f32.mrf.mxu0
        %v1072 = vadd.f32 %v1001, %v1071
        %v1073 = vpop.f32.mrf.mxu0
        %v1074 = vadd.f32 %v1003, %v1073
        %1075 = vdwg.mxu0
        %1076 = vmatprep.subr.mxu0 %v545
        %1077 = vmatpush1.msra.mxu0 %v544
        %1078 = vmatprep.subr.mxu0 %v537
        %1079 = vmatpush1.msra.mxu0 %v536
        %1080 = vmatprep.subr.mxu0 %v529
        %1081 = vmatpush1.msra.mxu0 %v528
        %1082 = vmatprep.subr.mxu0 %v521
        %1083 = vmatpush1.msra.mxu0 %v520
        %1084 = vmatprep.subr.mxu0 %v513
        %1085 = vmatpush1.msra.mxu0 %v512
        %1086 = vmatprep.subr.mxu0 %v505
        %1087 = vmatpush1.msra.mxu0 %v504
        %1088 = vmatprep.subr.mxu0 %v497
        %1089 = vmatpush1.msra.mxu0 %v496
        %1090 = vmatprep.subr.mxu0 %v489
        %1091 = vmatpush1.msra.mxu0 %v488
        %1092 = vmatprep.subr.mxu0 %v481
        %1093 = vmatpush1.msra.mxu0 %v480
        %1094 = vmatprep.subr.mxu0 %v473
        %1095 = vmatpush1.msra.mxu0 %v472
        %1096 = vmatprep.subr.mxu0 %v465
        %1097 = vmatpush1.msra.mxu0 %v464
        %1098 = vmatprep.subr.mxu0 %v457
        %1099 = vmatpush1.msra.mxu0 %v456
        %1100 = vmatprep.subr.mxu0 %v449
        %1101 = vmatpush1.msra.mxu0 %v448
        %1102 = vmatprep.subr.mxu0 %v441
        %1103 = vmatpush1.msra.mxu0 %v440
        %1104 = vmatprep.subr.mxu0 %v433
        %1105 = vmatpush1.msra.mxu0 %v432
        %1106 = vmatprep.subr.mxu0 %v425
        %1107 = vmatpush1.msra.mxu0 %v424
        %1108 = vmatprep.subr.mxu0 %v673
        %1109 = vmatpush2.msra.mxu0 %v672
        %1110 = vmatprep.subr.mxu0 %v665
        %1111 = vmatpush2.msra.mxu0 %v664
        %1112 = vmatprep.subr.mxu0 %v657
        %1113 = vmatpush2.msra.mxu0 %v656
        %1114 = vmatprep.subr.mxu0 %v649
        %1115 = vmatpush2.msra.mxu0 %v648
        %1116 = vmatprep.subr.mxu0 %v641
        %1117 = vmatpush2.msra.mxu0 %v640
        %1118 = vmatprep.subr.mxu0 %v633
        %1119 = vmatpush2.msra.mxu0 %v632
        %1120 = vmatprep.subr.mxu0 %v625
        %1121 = vmatpush2.msra.mxu0 %v624
        %1122 = vmatprep.subr.mxu0 %v617
        %1123 = vmatpush2.msra.mxu0 %v616
        %1124 = vmatprep.subr.mxu0 %v609
        %1125 = vmatpush2.msra.mxu0 %v608
        %1126 = vmatprep.subr.mxu0 %v601
        %1127 = vmatpush2.msra.mxu0 %v600
        %1128 = vmatprep.subr.mxu0 %v593
        %1129 = vmatpush2.msra.mxu0 %v592
        %1130 = vmatprep.subr.mxu0 %v585
        %1131 = vmatpush2.msra.mxu0 %v584
        %1132 = vmatprep.subr.mxu0 %v577
        %1133 = vmatpush2.msra.mxu0 %v576
        %1134 = vmatprep.subr.mxu0 %v569
        %1135 = vmatpush2.msra.mxu0 %v568
        %1136 = vmatprep.subr.mxu0 %v561
        %1137 = vmatpush2.msra.mxu0 %v560
        %1138 = vmatprep.subr.mxu0 %v553
        %1139 = vmatpush2.msra.mxu0 %v552
        %1140 = vmatprep.mubr.f32.mxu0 %v415
        %1141 = vmatmul.mubr.f32.gmra.mxu0 %v414
        %v1142 = vpop.f32.mrf.mxu0
        %v1143 = vadd.f32 0.0, %v1142
        %v1144 = vpop.f32.mrf.mxu0
        %v1145 = vadd.f32 0.0, %v1144
        %1146 = vdwg.mxu0
        %1147 = vmatprep.subr.mxu0 %v801
        %1148 = vmatpush1.msra.mxu0 %v800
        %1149 = vmatprep.subr.mxu0 %v793
        %1150 = vmatpush1.msra.mxu0 %v792
        %1151 = vmatprep.subr.mxu0 %v785
        %1152 = vmatpush1.msra.mxu0 %v784
        %1153 = vmatprep.subr.mxu0 %v777
        %1154 = vmatpush1.msra.mxu0 %v776
        %1155 = vmatprep.subr.mxu0 %v769
        %1156 = vmatpush1.msra.mxu0 %v768
        %1157 = vmatprep.subr.mxu0 %v761
        %1158 = vmatpush1.msra.mxu0 %v760
        %1159 = vmatprep.subr.mxu0 %v753
        %1160 = vmatpush1.msra.mxu0 %v752
        %1161 = vmatprep.subr.mxu0 %v745
        %1162 = vmatpush1.msra.mxu0 %v744
        %1163 = vmatprep.subr.mxu0 %v737
        %1164 = vmatpush1.msra.mxu0 %v736
        %1165 = vmatprep.subr.mxu0 %v729
        %1166 = vmatpush1.msra.mxu0 %v728
        %1167 = vmatprep.subr.mxu0 %v721
        %1168 = vmatpush1.msra.mxu0 %v720
        %1169 = vmatprep.subr.mxu0 %v713
        %1170 = vmatpush1.msra.mxu0 %v712
        %1171 = vmatprep.subr.mxu0 %v705
        %1172 = vmatpush1.msra.mxu0 %v704
        %1173 = vmatprep.subr.mxu0 %v697
        %1174 = vmatpush1.msra.mxu0 %v696
        %1175 = vmatprep.subr.mxu0 %v689
        %1176 = vmatpush1.msra.mxu0 %v688
        %1177 = vmatprep.subr.mxu0 %v681
        %1178 = vmatpush1.msra.mxu0 %v680
        %1179 = vmatprep.subr.mxu0 %v929
        %1180 = vmatpush2.msra.mxu0 %v928
        %1181 = vmatprep.subr.mxu0 %v921
        %1182 = vmatpush2.msra.mxu0 %v920
        %1183 = vmatprep.subr.mxu0 %v913
        %1184 = vmatpush2.msra.mxu0 %v912
        %1185 = vmatprep.subr.mxu0 %v905
        %1186 = vmatpush2.msra.mxu0 %v904
        %1187 = vmatprep.subr.mxu0 %v897
        %1188 = vmatpush2.msra.mxu0 %v896
        %1189 = vmatprep.subr.mxu0 %v889
        %1190 = vmatpush2.msra.mxu0 %v888
        %1191 = vmatprep.subr.mxu0 %v881
        %1192 = vmatpush2.msra.mxu0 %v880
        %1193 = vmatprep.subr.mxu0 %v873
        %1194 = vmatpush2.msra.mxu0 %v872
        %1195 = vmatprep.subr.mxu0 %v865
        %1196 = vmatpush2.msra.mxu0 %v864
        %1197 = vmatprep.subr.mxu0 %v857
        %1198 = vmatpush2.msra.mxu0 %v856
        %1199 = vmatprep.subr.mxu0 %v849
        %1200 = vmatpush2.msra.mxu0 %v848
        %1201 = vmatprep.subr.mxu0 %v841
        %1202 = vmatpush2.msra.mxu0 %v840
        %1203 = vmatprep.subr.mxu0 %v833
        %1204 = vmatpush2.msra.mxu0 %v832
        %1205 = vmatprep.subr.mxu0 %v825
        %1206 = vmatpush2.msra.mxu0 %v824
        %1207 = vmatprep.subr.mxu0 %v817
        %1208 = vmatpush2.msra.mxu0 %v816
        %1209 = vmatprep.subr.mxu0 %v809
        %1210 = vmatpush2.msra.mxu0 %v808
        %1211 = vmatprep.mubr.f32.mxu0 %v417
        %1212 = vmatmul.mubr.f32.gmra.mxu0 %v416
        %v1213 = vpop.f32.mrf.mxu0
        %v1214 = vadd.f32 %v1143, %v1213
        %v1215 = vpop.f32.mrf.mxu0
        %v1216 = vadd.f32 %v1145, %v1215
        %1217 = vdwg.mxu0
        %1218 = vmatprep.subr.mxu0 %v547
        %1219 = vmatpush1.msra.mxu0 %v546
        %1220 = vmatprep.subr.mxu0 %v539
        %1221 = vmatpush1.msra.mxu0 %v538
        %1222 = vmatprep.subr.mxu0 %v531
        %1223 = vmatpush1.msra.mxu0 %v530
        %1224 = vmatprep.subr.mxu0 %v523
        %1225 = vmatpush1.msra.mxu0 %v522
        %1226 = vmatprep.subr.mxu0 %v515
        %1227 = vmatpush1.msra.mxu0 %v514
        %1228 = vmatprep.subr.mxu0 %v507
        %1229 = vmatpush1.msra.mxu0 %v506
        %1230 = vmatprep.subr.mxu0 %v499
        %1231 = vmatpush1.msra.mxu0 %v498
        %1232 = vmatprep.subr.mxu0 %v491
        %1233 = vmatpush1.msra.mxu0 %v490
        %1234 = vmatprep.subr.mxu0 %v483
        %1235 = vmatpush1.msra.mxu0 %v482
        %1236 = vmatprep.subr.mxu0 %v475
        %1237 = vmatpush1.msra.mxu0 %v474
        %1238 = vmatprep.subr.mxu0 %v467
        %1239 = vmatpush1.msra.mxu0 %v466
        %1240 = vmatprep.subr.mxu0 %v459
        %1241 = vmatpush1.msra.mxu0 %v458
        %1242 = vmatprep.subr.mxu0 %v451
        %1243 = vmatpush1.msra.mxu0 %v450
        %1244 = vmatprep.subr.mxu0 %v443
        %1245 = vmatpush1.msra.mxu0 %v442
        %1246 = vmatprep.subr.mxu0 %v435
        %1247 = vmatpush1.msra.mxu0 %v434
        %1248 = vmatprep.subr.mxu0 %v427
        %1249 = vmatpush1.msra.mxu0 %v426
        %1250 = vmatprep.subr.mxu0 %v675
        %1251 = vmatpush2.msra.mxu0 %v674
        %1252 = vmatprep.subr.mxu0 %v667
        %1253 = vmatpush2.msra.mxu0 %v666
        %1254 = vmatprep.subr.mxu0 %v659
        %1255 = vmatpush2.msra.mxu0 %v658
        %1256 = vmatprep.subr.mxu0 %v651
        %1257 = vmatpush2.msra.mxu0 %v650
        %1258 = vmatprep.subr.mxu0 %v643
        %1259 = vmatpush2.msra.mxu0 %v642
        %1260 = vmatprep.subr.mxu0 %v635
        %1261 = vmatpush2.msra.mxu0 %v634
        %1262 = vmatprep.subr.mxu0 %v627
        %1263 = vmatpush2.msra.mxu0 %v626
        %1264 = vmatprep.subr.mxu0 %v619
        %1265 = vmatpush2.msra.mxu0 %v618
        %1266 = vmatprep.subr.mxu0 %v611
        %1267 = vmatpush2.msra.mxu0 %v610
        %1268 = vmatprep.subr.mxu0 %v603
        %1269 = vmatpush2.msra.mxu0 %v602
        %1270 = vmatprep.subr.mxu0 %v595
        %1271 = vmatpush2.msra.mxu0 %v594
        %1272 = vmatprep.subr.mxu0 %v587
        %1273 = vmatpush2.msra.mxu0 %v586
        %1274 = vmatprep.subr.mxu0 %v579
        %1275 = vmatpush2.msra.mxu0 %v578
        %1276 = vmatprep.subr.mxu0 %v571
        %1277 = vmatpush2.msra.mxu0 %v570
        %1278 = vmatprep.subr.mxu0 %v563
        %1279 = vmatpush2.msra.mxu0 %v562
        %1280 = vmatprep.subr.mxu0 %v555
        %1281 = vmatpush2.msra.mxu0 %v554
        %1282 = vmatprep.mubr.f32.mxu0 %v415
        %1283 = vmatmul.mubr.f32.gmra.mxu0 %v414
        %v1284 = vpop.f32.mrf.mxu0
        %v1285 = vadd.f32 0.0, %v1284
        %v1286 = vpop.f32.mrf.mxu0
        %v1287 = vadd.f32 0.0, %v1286
        %1288 = vdwg.mxu0
        %1289 = vmatprep.subr.mxu0 %v803
        %1290 = vmatpush1.msra.mxu0 %v802
        %1291 = vmatprep.subr.mxu0 %v795
        %1292 = vmatpush1.msra.mxu0 %v794
        %1293 = vmatprep.subr.mxu0 %v787
        %1294 = vmatpush1.msra.mxu0 %v786
        %1295 = vmatprep.subr.mxu0 %v779
        %1296 = vmatpush1.msra.mxu0 %v778
        %1297 = vmatprep.subr.mxu0 %v771
        %1298 = vmatpush1.msra.mxu0 %v770
        %1299 = vmatprep.subr.mxu0 %v763
        %1300 = vmatpush1.msra.mxu0 %v762
        %1301 = vmatprep.subr.mxu0 %v755
        %1302 = vmatpush1.msra.mxu0 %v754
        %1303 = vmatprep.subr.mxu0 %v747
        %1304 = vmatpush1.msra.mxu0 %v746
        %1305 = vmatprep.subr.mxu0 %v739
        %1306 = vmatpush1.msra.mxu0 %v738
        %1307 = vmatprep.subr.mxu0 %v731
        %1308 = vmatpush1.msra.mxu0 %v730
        %1309 = vmatprep.subr.mxu0 %v723
        %1310 = vmatpush1.msra.mxu0 %v722
        %1311 = vmatprep.subr.mxu0 %v715
        %1312 = vmatpush1.msra.mxu0 %v714
        %1313 = vmatprep.subr.mxu0 %v707
        %1314 = vmatpush1.msra.mxu0 %v706
        %1315 = vmatprep.subr.mxu0 %v699
        %1316 = vmatpush1.msra.mxu0 %v698
        %1317 = vmatprep.subr.mxu0 %v691
        %1318 = vmatpush1.msra.mxu0 %v690
        %1319 = vmatprep.subr.mxu0 %v683
        %1320 = vmatpush1.msra.mxu0 %v682
        %1321 = vmatprep.subr.mxu0 %v931
        %1322 = vmatpush2.msra.mxu0 %v930
        %1323 = vmatprep.subr.mxu0 %v923
        %1324 = vmatpush2.msra.mxu0 %v922
        %1325 = vmatprep.subr.mxu0 %v915
        %1326 = vmatpush2.msra.mxu0 %v914
        %1327 = vmatprep.subr.mxu0 %v907
        %1328 = vmatpush2.msra.mxu0 %v906
        %1329 = vmatprep.subr.mxu0 %v899
        %1330 = vmatpush2.msra.mxu0 %v898
        %1331 = vmatprep.subr.mxu0 %v891
        %1332 = vmatpush2.msra.mxu0 %v890
        %1333 = vmatprep.subr.mxu0 %v883
        %1334 = vmatpush2.msra.mxu0 %v882
        %1335 = vmatprep.subr.mxu0 %v875
        %1336 = vmatpush2.msra.mxu0 %v874
        %1337 = vmatprep.subr.mxu0 %v867
        %1338 = vmatpush2.msra.mxu0 %v866
        %1339 = vmatprep.subr.mxu0 %v859
        %1340 = vmatpush2.msra.mxu0 %v858
        %1341 = vmatprep.subr.mxu0 %v851
        %1342 = vmatpush2.msra.mxu0 %v850
        %1343 = vmatprep.subr.mxu0 %v843
        %1344 = vmatpush2.msra.mxu0 %v842
        %1345 = vmatprep.subr.mxu0 %v835
        %1346 = vmatpush2.msra.mxu0 %v834
        %1347 = vmatprep.subr.mxu0 %v827
        %1348 = vmatpush2.msra.mxu0 %v826
        %1349 = vmatprep.subr.mxu0 %v819
        %1350 = vmatpush2.msra.mxu0 %v818
        %1351 = vmatprep.subr.mxu0 %v811
        %1352 = vmatpush2.msra.mxu0 %v810
        %1353 = vmatprep.mubr.f32.mxu0 %v417
        %1354 = vmatmul.mubr.f32.gmra.mxu0 %v416
        %v1355 = vpop.f32.mrf.mxu0
        %v1356 = vadd.f32 %v1285, %v1355
        %v1357 = vpop.f32.mrf.mxu0
        %v1358 = vadd.f32 %v1287, %v1357
        %1359 = vdwg.mxu0
        %1360 = vmatprep.subr.mxu0 %v549
        %1361 = vmatpush1.msra.mxu0 %v548
        %1362 = vmatprep.subr.mxu0 %v541
        %1363 = vmatpush1.msra.mxu0 %v540
        %1364 = vmatprep.subr.mxu0 %v533
        %1365 = vmatpush1.msra.mxu0 %v532
        %1366 = vmatprep.subr.mxu0 %v525
        %1367 = vmatpush1.msra.mxu0 %v524
        %1368 = vmatprep.subr.mxu0 %v517
        %1369 = vmatpush1.msra.mxu0 %v516
        %1370 = vmatprep.subr.mxu0 %v509
        %1371 = vmatpush1.msra.mxu0 %v508
        %1372 = vmatprep.subr.mxu0 %v501
        %1373 = vmatpush1.msra.mxu0 %v500
        %1374 = vmatprep.subr.mxu0 %v493
        %1375 = vmatpush1.msra.mxu0 %v492
        %1376 = vmatprep.subr.mxu0 %v485
        %1377 = vmatpush1.msra.mxu0 %v484
        %1378 = vmatprep.subr.mxu0 %v477
        %1379 = vmatpush1.msra.mxu0 %v476
        %1380 = vmatprep.subr.mxu0 %v469
        %1381 = vmatpush1.msra.mxu0 %v468
        %1382 = vmatprep.subr.mxu0 %v461
        %1383 = vmatpush1.msra.mxu0 %v460
        %1384 = vmatprep.subr.mxu0 %v453
        %1385 = vmatpush1.msra.mxu0 %v452
        %1386 = vmatprep.subr.mxu0 %v445
        %1387 = vmatpush1.msra.mxu0 %v444
        %1388 = vmatprep.subr.mxu0 %v437
        %1389 = vmatpush1.msra.mxu0 %v436
        %1390 = vmatprep.subr.mxu0 %v429
        %1391 = vmatpush1.msra.mxu0 %v428
        %1392 = vmatprep.subr.mxu0 %v677
        %1393 = vmatpush2.msra.mxu0 %v676
        %1394 = vmatprep.subr.mxu0 %v669
        %1395 = vmatpush2.msra.mxu0 %v668
        %1396 = vmatprep.subr.mxu0 %v661
        %1397 = vmatpush2.msra.mxu0 %v660
        %1398 = vmatprep.subr.mxu0 %v653
        %1399 = vmatpush2.msra.mxu0 %v652
        %1400 = vmatprep.subr.mxu0 %v645
        %1401 = vmatpush2.msra.mxu0 %v644
        %1402 = vmatprep.subr.mxu0 %v637
        %1403 = vmatpush2.msra.mxu0 %v636
        %1404 = vmatprep.subr.mxu0 %v629
        %1405 = vmatpush2.msra.mxu0 %v628
        %1406 = vmatprep.subr.mxu0 %v621
        %1407 = vmatpush2.msra.mxu0 %v620
        %1408 = vmatprep.subr.mxu0 %v613
        %1409 = vmatpush2.msra.mxu0 %v612
        %1410 = vmatprep.subr.mxu0 %v605
        %1411 = vmatpush2.msra.mxu0 %v604
        %1412 = vmatprep.subr.mxu0 %v597
        %1413 = vmatpush2.msra.mxu0 %v596
        %1414 = vmatprep.subr.mxu0 %v589
        %1415 = vmatpush2.msra.mxu0 %v588
        %1416 = vmatprep.subr.mxu0 %v581
        %1417 = vmatpush2.msra.mxu0 %v580
        %1418 = vmatprep.subr.mxu0 %v573
        %1419 = vmatpush2.msra.mxu0 %v572
        %1420 = vmatprep.subr.mxu0 %v565
        %1421 = vmatpush2.msra.mxu0 %v564
        %1422 = vmatprep.subr.mxu0 %v557
        %1423 = vmatpush2.msra.mxu0 %v556
        %1424 = vmatprep.mubr.f32.mxu0 %v415
        %1425 = vmatmul.mubr.f32.gmra.mxu0 %v414
        %v1426 = vpop.f32.mrf.mxu0
        %v1427 = vadd.f32 0.0, %v1426
        %v1428 = vpop.f32.mrf.mxu0
        %v1429 = vadd.f32 0.0, %v1428
        %1430 = vdwg.mxu0
        %1431 = vmatprep.subr.mxu0 %v805
        %1432 = vmatpush1.msra.mxu0 %v804
        %1433 = vmatprep.subr.mxu0 %v797
        %1434 = vmatpush1.msra.mxu0 %v796
        %1435 = vmatprep.subr.mxu0 %v789
        %1436 = vmatpush1.msra.mxu0 %v788
        %1437 = vmatprep.subr.mxu0 %v781
        %1438 = vmatpush1.msra.mxu0 %v780
        %1439 = vmatprep.subr.mxu0 %v773
        %1440 = vmatpush1.msra.mxu0 %v772
        %1441 = vmatprep.subr.mxu0 %v765
        %1442 = vmatpush1.msra.mxu0 %v764
        %1443 = vmatprep.subr.mxu0 %v757
        %1444 = vmatpush1.msra.mxu0 %v756
        %1445 = vmatprep.subr.mxu0 %v749
        %1446 = vmatpush1.msra.mxu0 %v748
        %1447 = vmatprep.subr.mxu0 %v741
        %1448 = vmatpush1.msra.mxu0 %v740
        %1449 = vmatprep.subr.mxu0 %v733
        %1450 = vmatpush1.msra.mxu0 %v732
        %1451 = vmatprep.subr.mxu0 %v725
        %1452 = vmatpush1.msra.mxu0 %v724
        %1453 = vmatprep.subr.mxu0 %v717
        %1454 = vmatpush1.msra.mxu0 %v716
        %1455 = vmatprep.subr.mxu0 %v709
        %1456 = vmatpush1.msra.mxu0 %v708
        %1457 = vmatprep.subr.mxu0 %v701
        %1458 = vmatpush1.msra.mxu0 %v700
        %1459 = vmatprep.subr.mxu0 %v693
        %1460 = vmatpush1.msra.mxu0 %v692
        %1461 = vmatprep.subr.mxu0 %v685
        %1462 = vmatpush1.msra.mxu0 %v684
        %1463 = vmatprep.subr.mxu0 %v933
        %1464 = vmatpush2.msra.mxu0 %v932
        %1465 = vmatprep.subr.mxu0 %v925
        %1466 = vmatpush2.msra.mxu0 %v924
        %1467 = vmatprep.subr.mxu0 %v917
        %1468 = vmatpush2.msra.mxu0 %v916
        %1469 = vmatprep.subr.mxu0 %v909
        %1470 = vmatpush2.msra.mxu0 %v908
        %1471 = vmatprep.subr.mxu0 %v901
        %1472 = vmatpush2.msra.mxu0 %v900
        %1473 = vmatprep.subr.mxu0 %v893
        %1474 = vmatpush2.msra.mxu0 %v892
        %1475 = vmatprep.subr.mxu0 %v885
        %1476 = vmatpush2.msra.mxu0 %v884
        %1477 = vmatprep.subr.mxu0 %v877
        %1478 = vmatpush2.msra.mxu0 %v876
        %1479 = vmatprep.subr.mxu0 %v869
        %1480 = vmatpush2.msra.mxu0 %v868
        %1481 = vmatprep.subr.mxu0 %v861
        %1482 = vmatpush2.msra.mxu0 %v860
        %1483 = vmatprep.subr.mxu0 %v853
        %1484 = vmatpush2.msra.mxu0 %v852
        %1485 = vmatprep.subr.mxu0 %v845
        %1486 = vmatpush2.msra.mxu0 %v844
        %1487 = vmatprep.subr.mxu0 %v837
        %1488 = vmatpush2.msra.mxu0 %v836
        %1489 = vmatprep.subr.mxu0 %v829
        %1490 = vmatpush2.msra.mxu0 %v828
        %1491 = vmatprep.subr.mxu0 %v821
        %1492 = vmatpush2.msra.mxu0 %v820
        %1493 = vmatprep.subr.mxu0 %v813
        %1494 = vmatpush2.msra.mxu0 %v812
        %1495 = vmatprep.mubr.f32.mxu0 %v417
        %1496 = vmatmul.mubr.f32.gmra.mxu0 %v416
        %v1497 = vpop.f32.mrf.mxu0
        %v1498 = vadd.f32 %v1427, %v1497
        %v1499 = vpop.f32.mrf.mxu0
        %v1500 = vadd.f32 %v1429, %v1499
        %1501 = vdwg.mxu0
        %v1502 = vmul.f32 %v1072, 20.0
        %v1503 = vmul.f32 %v1074, 20.0
        %v1504 = vmul.f32 %v1214, 20.0
        %v1505 = vmul.f32 %v1216, 20.0
        %v1506 = vmul.f32 %v1356, 20.0
        %v1507 = vmul.f32 %v1358, 20.0
        %v1508 = vmul.f32 %v1498, 20.0
        %v1509 = vmul.f32 %v1500, 20.0
        %v1510 = vlaneseq
        %v1511 = vand.u32 %v1510, 127
        %v1512 = vadd.s32 %v1511, 128
        %v1513 = vadd.s32 %v1511, 256
        %v1514 = vadd.s32 %v1511, 384
        %v1515 = vadd.s32 %v1511, 512
        %v1516 = vadd.s32 %v1511, 640
        %v1517 = vadd.s32 %v1511, 768
        %v1518 = vadd.s32 %v1511, 896
        %v1519 = vstv %s421
        %v1520 = vadd.s32 %v1519, %v1511
        %v1521 = vadd.s32 %v1519, %v1512
        %v1522 = vadd.s32 %v1519, %v1513
        %v1523 = vadd.s32 %v1519, %v1514
        %v1524 = vadd.s32 %v1519, %v1515
        %v1525 = vadd.s32 %v1519, %v1516
        %v1526 = vadd.s32 %v1519, %v1517
        %v1527 = vadd.s32 %v1519, %v1518
        %vm1528 = vcmp.lt.s32.totalorder %v1520, 2560
        %vm1529 = vcmp.lt.s32.totalorder %v1521, 2560
        %vm1530 = vcmp.lt.s32.totalorder %v1522, 2560
        %vm1531 = vcmp.lt.s32.totalorder %v1523, 2560
        %vm1532 = vcmp.lt.s32.totalorder %v1524, 2560
        %vm1533 = vcmp.lt.s32.totalorder %v1525, 2560
        %vm1534 = vcmp.lt.s32.totalorder %v1526, 2560
        %vm1535 = vcmp.lt.s32.totalorder %v1527, 2560
        %v1536 = vsel %vm1528, 1, 0
        %v1537 = vsel %vm1529, 1, 0
        %v1538 = vsel %vm1530, 1, 0
        %v1539 = vsel %vm1531, 1, 0
        %v1540 = vsel %vm1532, 1, 0
        %v1541 = vsel %vm1533, 1, 0
        %v1542 = vsel %vm1534, 1, 0
        %v1543 = vsel %vm1535, 1, 0
        %v1544 = vcvt.s32.f32 %v1536
        %v1545 = vcvt.s32.f32 %v1537
        %v1546 = vcvt.s32.f32 %v1538
        %v1547 = vcvt.s32.f32 %v1539
        %v1548 = vcvt.s32.f32 %v1540
        %v1549 = vcvt.s32.f32 %v1541
        %v1550 = vcvt.s32.f32 %v1542
        %v1551 = vcvt.s32.f32 %v1543
        %vm1552 = vcmp.eq.s32.totalorder %v1536, 1
        %vm1553 = vcmp.eq.s32.totalorder %v1537, 1
        %vm1554 = vcmp.eq.s32.totalorder %v1538, 1
        %vm1555 = vcmp.eq.s32.totalorder %v1539, 1
        %vm1556 = vcmp.eq.s32.totalorder %v1540, 1
        %vm1557 = vcmp.eq.s32.totalorder %v1541, 1
        %vm1558 = vcmp.eq.s32.totalorder %v1542, 1
        %vm1559 = vcmp.eq.s32.totalorder %v1543, 1
        %v1560 = vsel %vm1552, %v1502, -1e+30
        %v1561 = vsel %vm1553, %v1503, -1e+30
        %v1562 = vsel %vm1554, %v1504, -1e+30
        %v1563 = vsel %vm1555, %v1505, -1e+30
        %v1564 = vsel %vm1556, %v1506, -1e+30
        %v1565 = vsel %vm1557, %v1507, -1e+30
        %v1566 = vsel %vm1558, %v1508, -1e+30
        %v1567 = vsel %vm1559, %v1509, -1e+30
        %v1568 = vld [vmem:[%s334] sm:$0xff]
        %1569 = vset.pattern.permute.xlu0 0
        %1570 = vperm.xlu0 %1569, %v418
        %v1571 = vpop.permute.xlu0 %1570
        %v1572 = vlaneseq
        %v1573 = vshrl.u32 %v1572, 7
        %v1574 = vsub.s32 0, %v1573
        %v1575 = vrot.slane %v1568, %v1574
        %v1576 = vlaneseq
        %v1577 = vshrl.u32 %v1576, 7
        %v1578 = vsub.s32 1, %v1577
        %v1579 = vrot.slane %v1568, %v1578
        %v1580 = vlaneseq
        %v1581 = vshrl.u32 %v1580, 7
        %v1582 = vsub.s32 2, %v1581
        %v1583 = vrot.slane %v1568, %v1582
        %v1584 = vlaneseq
        %v1585 = vshrl.u32 %v1584, 7
        %v1586 = vsub.s32 3, %v1585
        %v1587 = vrot.slane %v1568, %v1586
        %v1588 = vlaneseq
        %v1589 = vshrl.u32 %v1588, 7
        %v1590 = vsub.s32 4, %v1589
        %v1591 = vrot.slane %v1568, %v1590
        %v1592 = vlaneseq
        %v1593 = vshrl.u32 %v1592, 7
        %v1594 = vsub.s32 5, %v1593
        %v1595 = vrot.slane %v1568, %v1594
        %v1596 = vlaneseq
        %v1597 = vshrl.u32 %v1596, 7
        %v1598 = vsub.s32 6, %v1597
        %v1599 = vrot.slane %v1568, %v1598
        %v1600 = vlaneseq
        %v1601 = vshrl.u32 %v1600, 7
        %v1602 = vsub.s32 7, %v1601
        %v1603 = vrot.slane %v1568, %v1602
        %vm1604 = vcmp.eq.s32.totalorder %v1571, %v1575
        %vm1605 = vcmp.eq.s32.totalorder %v1571, %v1579
        %vm1606 = vcmp.eq.s32.totalorder %v1571, %v1583
        %vm1607 = vcmp.eq.s32.totalorder %v1571, %v1587
        %vm1608 = vcmp.eq.s32.totalorder %v1571, %v1591
        %vm1609 = vcmp.eq.s32.totalorder %v1571, %v1595
        %vm1610 = vcmp.eq.s32.totalorder %v1571, %v1599
        %vm1611 = vcmp.eq.s32.totalorder %v1571, %v1603
        %vm1612 = vmand %vm1604, %vm1552
        %vm1613 = vmand %vm1605, %vm1553
        %vm1614 = vmand %vm1606, %vm1554
        %vm1615 = vmand %vm1607, %vm1555
        %vm1616 = vmand %vm1608, %vm1556
        %vm1617 = vmand %vm1609, %vm1557
        %vm1618 = vmand %vm1610, %vm1558
        %vm1619 = vmand %vm1611, %vm1559
        %v1620 = vsel %vm1612, 1, 0
        %v1621 = vsel %vm1613, 1, 0
        %v1622 = vsel %vm1614, 1, 0
        %v1623 = vsel %vm1615, 1, 0
        %v1624 = vsel %vm1616, 1, 0
        %v1625 = vsel %vm1617, 1, 0
        %v1626 = vsel %vm1618, 1, 0
        %v1627 = vsel %vm1619, 1, 0
        %v1628 = vcvt.s32.f32 %v1620
        %v1629 = vcvt.s32.f32 %v1621
        %v1630 = vcvt.s32.f32 %v1622
        %v1631 = vcvt.s32.f32 %v1623
        %v1632 = vcvt.s32.f32 %v1624
        %v1633 = vcvt.s32.f32 %v1625
        %v1634 = vcvt.s32.f32 %v1626
        %v1635 = vcvt.s32.f32 %v1627
        %v1636 = vld [vmem:[#allocation2] sm:$0xff]
        %v1637 = vmax.f32 %v1560, %v1564
        %v1638 = vmax.f32 %v1561, %v1565
        %v1639 = vmax.f32 %v1562, %v1566
        %v1640 = vmax.f32 %v1563, %v1567
        %v1641 = vmax.f32 %v1637, %v1638
        %v1642 = vmax.f32 %v1639, %v1640
        %v1643 = vmax.f32 %v1641, %v1642
        %1644 = vmax.xlane.f32.xlu0 %v1643
        %v1645 = vpop.xlane.xlu0 %1644
        %v1646 = vmax.f32 %v1636, %v1645
        %1648 = vset.pattern.permute.xlu0 0
        %1649 = vperm.xlu0 %1648, %v1646
        %v1650 = vpop.permute.xlu0 %1649
        %v1652 = vsub.f32 %v1560, %v1650
        %v1653 = vsub.f32 %v1561, %v1650
        %v1654 = vsub.f32 %v1562, %v1650
        %v1655 = vsub.f32 %v1563, %v1650
        %v1656 = vsub.f32 %v1564, %v1650
        %v1657 = vsub.f32 %v1565, %v1650
        %v1658 = vsub.f32 %v1566, %v1650
        %v1659 = vsub.f32 %v1567, %v1650
        %v1660 = vmul.f32 %v1652, 1.442695
        %v1661 = vpow.pop %v1660
        %v1662 = vmul.f32 %v1653, 1.442695
        %v1663 = vpow.pop %v1662
        %v1664 = vmul.f32 %v1654, 1.442695
        %v1665 = vpow.pop %v1664
        %v1666 = vmul.f32 %v1655, 1.442695
        %v1667 = vpow.pop %v1666
        %v1668 = vmul.f32 %v1656, 1.442695
        %v1669 = vpow.pop %v1668
        %v1670 = vmul.f32 %v1657, 1.442695
        %v1671 = vpow.pop %v1670
        %v1672 = vmul.f32 %v1658, 1.442695
        %v1673 = vpow.pop %v1672
        %v1674 = vmul.f32 %v1659, 1.442695
        %v1675 = vpow.pop %v1674
        %v1676 = vmul.f32 %v1661, %v1544
        %v1677 = vmul.f32 %v1663, %v1545
        %v1678 = vmul.f32 %v1665, %v1546
        %v1679 = vmul.f32 %v1667, %v1547
        %v1680 = vmul.f32 %v1669, %v1548
        %v1681 = vmul.f32 %v1671, %v1549
        %v1682 = vmul.f32 %v1673, %v1550
        %v1683 = vmul.f32 %v1675, %v1551
        %v1684 = vsub.f32 %v1636, %v1646
        %v1685 = vmul.f32 %v1684, 1.442695
        %v1686 = vpow.pop %v1685
        %v1687 = vld [vmem:[#allocation3] sm:$0xff]
        %v1688 = vmul.f32 %v1686, %v1687
        %v1689 = vadd.f32 %v1676, %v1677
        %v1690 = vadd.f32 %v1689, %v1678
        %v1691 = vadd.f32 %v1690, %v1679
        %v1692 = vadd.f32 %v1691, %v1680
        %v1693 = vadd.f32 %v1692, %v1681
        %v1694 = vadd.f32 %v1693, %v1682
        %v1695 = vadd.f32 %v1694, %v1683
        %1696 = vadd.xlane.f32.xlu0 %v1695
        %v1697 = vpop.xlane.xlu0 %1696
        %v1698 = vadd.f32 %v1688, %v1697
        %vm1699 = vcmask 7168
        %1700 = vst.msk [vmem:[#allocation3] sm:$0xff] %vm1699, %v1698
        %1701 = vst.msk [vmem:[#allocation2] sm:$0xff] %vm1699, %v1646
        %v1702 = vld [vmem:[#allocation4] sm:$0xff]
        %v1703 = vmul.f32 %v1628, %v1560
        %v1704 = vmul.f32 %v1629, %v1561
        %v1705 = vmul.f32 %v1630, %v1562
        %v1706 = vmul.f32 %v1631, %v1563
        %v1707 = vmul.f32 %v1632, %v1564
        %v1708 = vmul.f32 %v1633, %v1565
        %v1709 = vmul.f32 %v1634, %v1566
        %v1710 = vmul.f32 %v1635, %v1567
        %v1711 = vadd.f32 %v1703, %v1704
        %v1712 = vadd.f32 %v1711, %v1705
        %v1713 = vadd.f32 %v1712, %v1706
        %v1714 = vadd.f32 %v1713, %v1707
        %v1715 = vadd.f32 %v1714, %v1708
        %v1716 = vadd.f32 %v1715, %v1709
        %v1717 = vadd.f32 %v1716, %v1710
        %1718 = vadd.xlane.f32.xlu0 %v1717
        %v1719 = vpop.xlane.xlu0 %1718
        %v1720 = vadd.f32 %v1702, %v1719
        %1721 = vst.msk [vmem:[#allocation4] sm:$0xff] %vm1699, %v1720
        %v1722 = vld [vmem:[#allocation5] sm:$0xff]
        %v1723 = vadd.f32 %v1628, %v1629
        %v1724 = vadd.f32 %v1723, %v1630
        %v1725 = vadd.f32 %v1724, %v1631
        %v1726 = vadd.f32 %v1725, %v1632
        %v1727 = vadd.f32 %v1726, %v1633
        %v1728 = vadd.f32 %v1727, %v1634
        %v1729 = vadd.f32 %v1728, %v1635
        %1730 = vadd.xlane.f32.xlu0 %v1729
        %v1731 = vpop.xlane.xlu0 %1730
        %v1732 = vadd.f32 %v1722, %v1731
        %1733 = vst.msk [vmem:[#allocation5] sm:$0xff] %vm1699, %v1732
        %v1734 = vld [vmem:[%s325 + $0x40] sm:$0xff]
        %v1735 = vld [vmem:[%s325 + $0x48] sm:$0xff]
        %v1736 = vld [vmem:[%s325 + $0x50] sm:$0xff]
        %v1737 = vld [vmem:[%s325 + $0x58] sm:$0xff]
        %v1738 = vld [vmem:[%s325 + $0x60] sm:$0xff]
        %v1739 = vld [vmem:[%s325 + $0x68] sm:$0xff]
        %v1740 = vld [vmem:[%s325 + $0x70] sm:$0xff]
        %v1741 = vld [vmem:[%s325 + $0x78] sm:$0xff]
        %v1742 = vld [vmem:[%s325 + $0xc0] sm:$0xff]
        %v1743 = vld [vmem:[%s325 + $0xc8] sm:$0xff]
        %v1744 = vld [vmem:[%s325 + $0xd0] sm:$0xff]
        %v1745 = vld [vmem:[%s325 + $0xd8] sm:$0xff]
        %v1746 = vld [vmem:[%s325 + $0xe0] sm:$0xff]
        %v1747 = vld [vmem:[%s325 + $0xe8] sm:$0xff]
        %v1748 = vld [vmem:[%s325 + $0xf0] sm:$0xff]
        %v1749 = vld [vmem:[%s325 + $0xf8] sm:$0xff]
        %v1750 = vld [vmem:[%s325 + $0x140] sm:$0xff]
        %v1751 = vld [vmem:[%s325 + $0x148] sm:$0xff]
        %v1752 = vld [vmem:[%s325 + $0x150] sm:$0xff]
        %v1753 = vld [vmem:[%s325 + $0x158] sm:$0xff]
        %v1754 = vld [vmem:[%s325 + $0x160] sm:$0xff]
        %v1755 = vld [vmem:[%s325 + $0x168] sm:$0xff]
        %v1756 = vld [vmem:[%s325 + $0x170] sm:$0xff]
        %v1757 = vld [vmem:[%s325 + $0x178] sm:$0xff]
        %v1758 = vld [vmem:[%s325 + $0x1c0] sm:$0xff]
        %v1759 = vld [vmem:[%s325 + $0x1c8] sm:$0xff]
        %v1760 = vld [vmem:[%s325 + $0x1d0] sm:$0xff]
        %v1761 = vld [vmem:[%s325 + $0x1d8] sm:$0xff]
        %v1762 = vld [vmem:[%s325 + $0x1e0] sm:$0xff]
        %v1763 = vld [vmem:[%s325 + $0x1e8] sm:$0xff]
        %v1764 = vld [vmem:[%s325 + $0x1f0] sm:$0xff]
        %v1765 = vld [vmem:[%s325 + $0x1f8] sm:$0xff]
        %v1766 = vld [vmem:[%s325 + $0x240] sm:$0xff]
        %v1767 = vld [vmem:[%s325 + $0x248] sm:$0xff]
        %v1768 = vld [vmem:[%s325 + $0x250] sm:$0xff]
        %v1769 = vld [vmem:[%s325 + $0x258] sm:$0xff]
        %v1770 = vld [vmem:[%s325 + $0x260] sm:$0xff]
        %v1771 = vld [vmem:[%s325 + $0x268] sm:$0xff]
        %v1772 = vld [vmem:[%s325 + $0x270] sm:$0xff]
        %v1773 = vld [vmem:[%s325 + $0x278] sm:$0xff]
        %v1774 = vld [vmem:[%s325 + $0x2c0] sm:$0xff]
        %v1775 = vld [vmem:[%s325 + $0x2c8] sm:$0xff]
        %v1776 = vld [vmem:[%s325 + $0x2d0] sm:$0xff]
        %v1777 = vld [vmem:[%s325 + $0x2d8] sm:$0xff]
        %v1778 = vld [vmem:[%s325 + $0x2e0] sm:$0xff]
        %v1779 = vld [vmem:[%s325 + $0x2e8] sm:$0xff]
        %v1780 = vld [vmem:[%s325 + $0x2f0] sm:$0xff]
        %v1781 = vld [vmem:[%s325 + $0x2f8] sm:$0xff]
        %v1782 = vld [vmem:[%s325 + $0x340] sm:$0xff]
        %v1783 = vld [vmem:[%s325 + $0x348] sm:$0xff]
        %v1784 = vld [vmem:[%s325 + $0x350] sm:$0xff]
        %v1785 = vld [vmem:[%s325 + $0x358] sm:$0xff]
        %v1786 = vld [vmem:[%s325 + $0x360] sm:$0xff]
        %v1787 = vld [vmem:[%s325 + $0x368] sm:$0xff]
        %v1788 = vld [vmem:[%s325 + $0x370] sm:$0xff]
        %v1789 = vld [vmem:[%s325 + $0x378] sm:$0xff]
        %v1790 = vld [vmem:[%s325 + $0x3c0] sm:$0xff]
        %v1791 = vld [vmem:[%s325 + $0x3c8] sm:$0xff]
        %v1792 = vld [vmem:[%s325 + $0x3d0] sm:$0xff]
        %v1793 = vld [vmem:[%s325 + $0x3d8] sm:$0xff]
        %v1794 = vld [vmem:[%s325 + $0x3e0] sm:$0xff]
        %v1795 = vld [vmem:[%s325 + $0x3e8] sm:$0xff]
        %v1796 = vld [vmem:[%s325 + $0x3f0] sm:$0xff]
        %v1797 = vld [vmem:[%s325 + $0x3f8] sm:$0xff]
        %v1798 = vld [vmem:[%s325 + $0x440] sm:$0xff]
        %v1799 = vld [vmem:[%s325 + $0x448] sm:$0xff]
        %v1800 = vld [vmem:[%s325 + $0x450] sm:$0xff]
        %v1801 = vld [vmem:[%s325 + $0x458] sm:$0xff]
        %v1802 = vld [vmem:[%s325 + $0x460] sm:$0xff]
        %v1803 = vld [vmem:[%s325 + $0x468] sm:$0xff]
        %v1804 = vld [vmem:[%s325 + $0x470] sm:$0xff]
        %v1805 = vld [vmem:[%s325 + $0x478] sm:$0xff]
        %v1806 = vld [vmem:[%s325 + $0x4c0] sm:$0xff]
        %v1807 = vld [vmem:[%s325 + $0x4c8] sm:$0xff]
        %v1808 = vld [vmem:[%s325 + $0x4d0] sm:$0xff]
        %v1809 = vld [vmem:[%s325 + $0x4d8] sm:$0xff]
        %v1810 = vld [vmem:[%s325 + $0x4e0] sm:$0xff]
        %v1811 = vld [vmem:[%s325 + $0x4e8] sm:$0xff]
        %v1812 = vld [vmem:[%s325 + $0x4f0] sm:$0xff]
        %v1813 = vld [vmem:[%s325 + $0x4f8] sm:$0xff]
        %v1814 = vld [vmem:[%s325 + $0x540] sm:$0xff]
        %v1815 = vld [vmem:[%s325 + $0x548] sm:$0xff]
        %v1816 = vld [vmem:[%s325 + $0x550] sm:$0xff]
        %v1817 = vld [vmem:[%s325 + $0x558] sm:$0xff]
        %v1818 = vld [vmem:[%s325 + $0x560] sm:$0xff]
        %v1819 = vld [vmem:[%s325 + $0x568] sm:$0xff]
        %v1820 = vld [vmem:[%s325 + $0x570] sm:$0xff]
        %v1821 = vld [vmem:[%s325 + $0x578] sm:$0xff]
        %v1822 = vld [vmem:[%s325 + $0x5c0] sm:$0xff]
        %v1823 = vld [vmem:[%s325 + $0x5c8] sm:$0xff]
        %v1824 = vld [vmem:[%s325 + $0x5d0] sm:$0xff]
        %v1825 = vld [vmem:[%s325 + $0x5d8] sm:$0xff]
        %v1826 = vld [vmem:[%s325 + $0x5e0] sm:$0xff]
        %v1827 = vld [vmem:[%s325 + $0x5e8] sm:$0xff]
        %v1828 = vld [vmem:[%s325 + $0x5f0] sm:$0xff]
        %v1829 = vld [vmem:[%s325 + $0x5f8] sm:$0xff]
        %v1830 = vld [vmem:[%s325 + $0x640] sm:$0xff]
        %v1831 = vld [vmem:[%s325 + $0x648] sm:$0xff]
        %v1832 = vld [vmem:[%s325 + $0x650] sm:$0xff]
        %v1833 = vld [vmem:[%s325 + $0x658] sm:$0xff]
        %v1834 = vld [vmem:[%s325 + $0x660] sm:$0xff]
        %v1835 = vld [vmem:[%s325 + $0x668] sm:$0xff]
        %v1836 = vld [vmem:[%s325 + $0x670] sm:$0xff]
        %v1837 = vld [vmem:[%s325 + $0x678] sm:$0xff]
        %v1838 = vld [vmem:[%s325 + $0x6c0] sm:$0xff]
        %v1839 = vld [vmem:[%s325 + $0x6c8] sm:$0xff]
        %v1840 = vld [vmem:[%s325 + $0x6d0] sm:$0xff]
        %v1841 = vld [vmem:[%s325 + $0x6d8] sm:$0xff]
        %v1842 = vld [vmem:[%s325 + $0x6e0] sm:$0xff]
        %v1843 = vld [vmem:[%s325 + $0x6e8] sm:$0xff]
        %v1844 = vld [vmem:[%s325 + $0x6f0] sm:$0xff]
        %v1845 = vld [vmem:[%s325 + $0x6f8] sm:$0xff]
        %v1846 = vld [vmem:[%s325 + $0x740] sm:$0xff]
        %v1847 = vld [vmem:[%s325 + $0x748] sm:$0xff]
        %v1848 = vld [vmem:[%s325 + $0x750] sm:$0xff]
        %v1849 = vld [vmem:[%s325 + $0x758] sm:$0xff]
        %v1850 = vld [vmem:[%s325 + $0x760] sm:$0xff]
        %v1851 = vld [vmem:[%s325 + $0x768] sm:$0xff]
        %v1852 = vld [vmem:[%s325 + $0x770] sm:$0xff]
        %v1853 = vld [vmem:[%s325 + $0x778] sm:$0xff]
        %v1854 = vld [vmem:[%s325 + $0x7c0] sm:$0xff]
        %v1855 = vld [vmem:[%s325 + $0x7c8] sm:$0xff]
        %v1856 = vld [vmem:[%s325 + $0x7d0] sm:$0xff]
        %v1857 = vld [vmem:[%s325 + $0x7d8] sm:$0xff]
        %v1858 = vld [vmem:[%s325 + $0x7e0] sm:$0xff]
        %v1859 = vld [vmem:[%s325 + $0x7e8] sm:$0xff]
        %v1860 = vld [vmem:[%s325 + $0x7f0] sm:$0xff]
        %v1861 = vld [vmem:[%s325 + $0x7f8] sm:$0xff]
        %v1862 = vld [vmem:[%s325 + $0x840] sm:$0xff]
        %v1863 = vld [vmem:[%s325 + $0x848] sm:$0xff]
        %v1864 = vld [vmem:[%s325 + $0x850] sm:$0xff]
        %v1865 = vld [vmem:[%s325 + $0x858] sm:$0xff]
        %v1866 = vld [vmem:[%s325 + $0x860] sm:$0xff]
        %v1867 = vld [vmem:[%s325 + $0x868] sm:$0xff]
        %v1868 = vld [vmem:[%s325 + $0x870] sm:$0xff]
        %v1869 = vld [vmem:[%s325 + $0x878] sm:$0xff]
        %v1870 = vld [vmem:[%s325 + $0x8c0] sm:$0xff]
        %v1871 = vld [vmem:[%s325 + $0x8c8] sm:$0xff]
        %v1872 = vld [vmem:[%s325 + $0x8d0] sm:$0xff]
        %v1873 = vld [vmem:[%s325 + $0x8d8] sm:$0xff]
        %v1874 = vld [vmem:[%s325 + $0x8e0] sm:$0xff]
        %v1875 = vld [vmem:[%s325 + $0x8e8] sm:$0xff]
        %v1876 = vld [vmem:[%s325 + $0x8f0] sm:$0xff]
        %v1877 = vld [vmem:[%s325 + $0x8f8] sm:$0xff]
        %v1878 = vld [vmem:[%s325 + $0x940] sm:$0xff]
        %v1879 = vld [vmem:[%s325 + $0x948] sm:$0xff]
        %v1880 = vld [vmem:[%s325 + $0x950] sm:$0xff]
        %v1881 = vld [vmem:[%s325 + $0x958] sm:$0xff]
        %v1882 = vld [vmem:[%s325 + $0x960] sm:$0xff]
        %v1883 = vld [vmem:[%s325 + $0x968] sm:$0xff]
        %v1884 = vld [vmem:[%s325 + $0x970] sm:$0xff]
        %v1885 = vld [vmem:[%s325 + $0x978] sm:$0xff]
        %v1886 = vld [vmem:[%s325 + $0x9c0] sm:$0xff]
        %v1887 = vld [vmem:[%s325 + $0x9c8] sm:$0xff]
        %v1888 = vld [vmem:[%s325 + $0x9d0] sm:$0xff]
        %v1889 = vld [vmem:[%s325 + $0x9d8] sm:$0xff]
        %v1890 = vld [vmem:[%s325 + $0x9e0] sm:$0xff]
        %v1891 = vld [vmem:[%s325 + $0x9e8] sm:$0xff]
        %v1892 = vld [vmem:[%s325 + $0x9f0] sm:$0xff]
        %v1893 = vld [vmem:[%s325 + $0x9f8] sm:$0xff]
        %v1894 = vld [vmem:[%s325 + $0xa40] sm:$0xff]
        %v1895 = vld [vmem:[%s325 + $0xa48] sm:$0xff]
        %v1896 = vld [vmem:[%s325 + $0xa50] sm:$0xff]
        %v1897 = vld [vmem:[%s325 + $0xa58] sm:$0xff]
        %v1898 = vld [vmem:[%s325 + $0xa60] sm:$0xff]
        %v1899 = vld [vmem:[%s325 + $0xa68] sm:$0xff]
        %v1900 = vld [vmem:[%s325 + $0xa70] sm:$0xff]
        %v1901 = vld [vmem:[%s325 + $0xa78] sm:$0xff]
        %v1902 = vld [vmem:[%s325 + $0xac0] sm:$0xff]
        %v1903 = vld [vmem:[%s325 + $0xac8] sm:$0xff]
        %v1904 = vld [vmem:[%s325 + $0xad0] sm:$0xff]
        %v1905 = vld [vmem:[%s325 + $0xad8] sm:$0xff]
        %v1906 = vld [vmem:[%s325 + $0xae0] sm:$0xff]
        %v1907 = vld [vmem:[%s325 + $0xae8] sm:$0xff]
        %v1908 = vld [vmem:[%s325 + $0xaf0] sm:$0xff]
        %v1909 = vld [vmem:[%s325 + $0xaf8] sm:$0xff]
        %v1910 = vld [vmem:[%s325 + $0xb40] sm:$0xff]
        %v1911 = vld [vmem:[%s325 + $0xb48] sm:$0xff]
        %v1912 = vld [vmem:[%s325 + $0xb50] sm:$0xff]
        %v1913 = vld [vmem:[%s325 + $0xb58] sm:$0xff]
        %v1914 = vld [vmem:[%s325 + $0xb60] sm:$0xff]
        %v1915 = vld [vmem:[%s325 + $0xb68] sm:$0xff]
        %v1916 = vld [vmem:[%s325 + $0xb70] sm:$0xff]
        %v1917 = vld [vmem:[%s325 + $0xb78] sm:$0xff]
        %v1918 = vld [vmem:[%s325 + $0xbc0] sm:$0xff]
        %v1919 = vld [vmem:[%s325 + $0xbc8] sm:$0xff]
        %v1920 = vld [vmem:[%s325 + $0xbd0] sm:$0xff]
        %v1921 = vld [vmem:[%s325 + $0xbd8] sm:$0xff]
        %v1922 = vld [vmem:[%s325 + $0xbe0] sm:$0xff]
        %v1923 = vld [vmem:[%s325 + $0xbe8] sm:$0xff]
        %v1924 = vld [vmem:[%s325 + $0xbf0] sm:$0xff]
        %v1925 = vld [vmem:[%s325 + $0xbf8] sm:$0xff]
        %v1926 = vld [vmem:[%s325 + $0xc40] sm:$0xff]
        %v1927 = vld [vmem:[%s325 + $0xc48] sm:$0xff]
        %v1928 = vld [vmem:[%s325 + $0xc50] sm:$0xff]
        %v1929 = vld [vmem:[%s325 + $0xc58] sm:$0xff]
        %v1930 = vld [vmem:[%s325 + $0xc60] sm:$0xff]
        %v1931 = vld [vmem:[%s325 + $0xc68] sm:$0xff]
        %v1932 = vld [vmem:[%s325 + $0xc70] sm:$0xff]
        %v1933 = vld [vmem:[%s325 + $0xc78] sm:$0xff]
        %v1934 = vld [vmem:[%s325 + $0xcc0] sm:$0xff]
        %v1935 = vld [vmem:[%s325 + $0xcc8] sm:$0xff]
        %v1936 = vld [vmem:[%s325 + $0xcd0] sm:$0xff]
        %v1937 = vld [vmem:[%s325 + $0xcd8] sm:$0xff]
        %v1938 = vld [vmem:[%s325 + $0xce0] sm:$0xff]
        %v1939 = vld [vmem:[%s325 + $0xce8] sm:$0xff]
        %v1940 = vld [vmem:[%s325 + $0xcf0] sm:$0xff]
        %v1941 = vld [vmem:[%s325 + $0xcf8] sm:$0xff]
        %v1942 = vld [vmem:[%s325 + $0xd40] sm:$0xff]
        %v1943 = vld [vmem:[%s325 + $0xd48] sm:$0xff]
        %v1944 = vld [vmem:[%s325 + $0xd50] sm:$0xff]
        %v1945 = vld [vmem:[%s325 + $0xd58] sm:$0xff]
        %v1946 = vld [vmem:[%s325 + $0xd60] sm:$0xff]
        %v1947 = vld [vmem:[%s325 + $0xd68] sm:$0xff]
        %v1948 = vld [vmem:[%s325 + $0xd70] sm:$0xff]
        %v1949 = vld [vmem:[%s325 + $0xd78] sm:$0xff]
        %v1950 = vld [vmem:[%s325 + $0xdc0] sm:$0xff]
        %v1951 = vld [vmem:[%s325 + $0xdc8] sm:$0xff]
        %v1952 = vld [vmem:[%s325 + $0xdd0] sm:$0xff]
        %v1953 = vld [vmem:[%s325 + $0xdd8] sm:$0xff]
        %v1954 = vld [vmem:[%s325 + $0xde0] sm:$0xff]
        %v1955 = vld [vmem:[%s325 + $0xde8] sm:$0xff]
        %v1956 = vld [vmem:[%s325 + $0xdf0] sm:$0xff]
        %v1957 = vld [vmem:[%s325 + $0xdf8] sm:$0xff]
        %v1958 = vld [vmem:[%s325 + $0xe40] sm:$0xff]
        %v1959 = vld [vmem:[%s325 + $0xe48] sm:$0xff]
        %v1960 = vld [vmem:[%s325 + $0xe50] sm:$0xff]
        %v1961 = vld [vmem:[%s325 + $0xe58] sm:$0xff]
        %v1962 = vld [vmem:[%s325 + $0xe60] sm:$0xff]
        %v1963 = vld [vmem:[%s325 + $0xe68] sm:$0xff]
        %v1964 = vld [vmem:[%s325 + $0xe70] sm:$0xff]
        %v1965 = vld [vmem:[%s325 + $0xe78] sm:$0xff]
        %v1966 = vld [vmem:[%s325 + $0xec0] sm:$0xff]
        %v1967 = vld [vmem:[%s325 + $0xec8] sm:$0xff]
        %v1968 = vld [vmem:[%s325 + $0xed0] sm:$0xff]
        %v1969 = vld [vmem:[%s325 + $0xed8] sm:$0xff]
        %v1970 = vld [vmem:[%s325 + $0xee0] sm:$0xff]
        %v1971 = vld [vmem:[%s325 + $0xee8] sm:$0xff]
        %v1972 = vld [vmem:[%s325 + $0xef0] sm:$0xff]
        %v1973 = vld [vmem:[%s325 + $0xef8] sm:$0xff]
        %v1974 = vld [vmem:[%s325 + $0xf40] sm:$0xff]
        %v1975 = vld [vmem:[%s325 + $0xf48] sm:$0xff]
        %v1976 = vld [vmem:[%s325 + $0xf50] sm:$0xff]
        %v1977 = vld [vmem:[%s325 + $0xf58] sm:$0xff]
        %v1978 = vld [vmem:[%s325 + $0xf60] sm:$0xff]
        %v1979 = vld [vmem:[%s325 + $0xf68] sm:$0xff]
        %v1980 = vld [vmem:[%s325 + $0xf70] sm:$0xff]
        %v1981 = vld [vmem:[%s325 + $0xf78] sm:$0xff]
        %v1982 = vld [vmem:[%s325 + $0xfc0] sm:$0xff]
        %v1983 = vld [vmem:[%s325 + $0xfc8] sm:$0xff]
        %v1984 = vld [vmem:[%s325 + $0xfd0] sm:$0xff]
        %v1985 = vld [vmem:[%s325 + $0xfd8] sm:$0xff]
        %v1986 = vld [vmem:[%s325 + $0xfe0] sm:$0xff]
        %v1987 = vld [vmem:[%s325 + $0xfe8] sm:$0xff]
        %v1988 = vld [vmem:[%s325 + $0xff0] sm:$0xff]
        %v1989 = vld [vmem:[%s325 + $0xff8] sm:$0xff]
        %v1990 = vld [vmem:[%s325 + $0x1040] sm:$0xff]
        %v1991 = vld [vmem:[%s325 + $0x1048] sm:$0xff]
        %v1992 = vld [vmem:[%s325 + $0x1050] sm:$0xff]
        %v1993 = vld [vmem:[%s325 + $0x1058] sm:$0xff]
        %v1994 = vld [vmem:[%s325 + $0x1060] sm:$0xff]
        %v1995 = vld [vmem:[%s325 + $0x1068] sm:$0xff]
        %v1996 = vld [vmem:[%s325 + $0x1070] sm:$0xff]
        %v1997 = vld [vmem:[%s325 + $0x1078] sm:$0xff]
        %v1998 = vld [vmem:[%s325 + $0x10c0] sm:$0xff]
        %v1999 = vld [vmem:[%s325 + $0x10c8] sm:$0xff]
        %v2000 = vld [vmem:[%s325 + $0x10d0] sm:$0xff]
        %v2001 = vld [vmem:[%s325 + $0x10d8] sm:$0xff]
        %v2002 = vld [vmem:[%s325 + $0x10e0] sm:$0xff]
        %v2003 = vld [vmem:[%s325 + $0x10e8] sm:$0xff]
        %v2004 = vld [vmem:[%s325 + $0x10f0] sm:$0xff]
        %v2005 = vld [vmem:[%s325 + $0x10f8] sm:$0xff]
        %v2006 = vld [vmem:[%s325 + $0x1140] sm:$0xff]
        %v2007 = vld [vmem:[%s325 + $0x1148] sm:$0xff]
        %v2008 = vld [vmem:[%s325 + $0x1150] sm:$0xff]
        %v2009 = vld [vmem:[%s325 + $0x1158] sm:$0xff]
        %v2010 = vld [vmem:[%s325 + $0x1160] sm:$0xff]
        %v2011 = vld [vmem:[%s325 + $0x1168] sm:$0xff]
        %v2012 = vld [vmem:[%s325 + $0x1170] sm:$0xff]
        %v2013 = vld [vmem:[%s325 + $0x1178] sm:$0xff]
        %v2014 = vld [vmem:[%s325 + $0x11c0] sm:$0xff]
        %v2015 = vld [vmem:[%s325 + $0x11c8] sm:$0xff]
        %v2016 = vld [vmem:[%s325 + $0x11d0] sm:$0xff]
        %v2017 = vld [vmem:[%s325 + $0x11d8] sm:$0xff]
        %v2018 = vld [vmem:[%s325 + $0x11e0] sm:$0xff]
        %v2019 = vld [vmem:[%s325 + $0x11e8] sm:$0xff]
        %v2020 = vld [vmem:[%s325 + $0x11f0] sm:$0xff]
        %v2021 = vld [vmem:[%s325 + $0x11f8] sm:$0xff]
        %v2022 = vld [vmem:[%s325 + $0x1240] sm:$0xff]
        %v2023 = vld [vmem:[%s325 + $0x1248] sm:$0xff]
        %v2024 = vld [vmem:[%s325 + $0x1250] sm:$0xff]
        %v2025 = vld [vmem:[%s325 + $0x1258] sm:$0xff]
        %v2026 = vld [vmem:[%s325 + $0x1260] sm:$0xff]
        %v2027 = vld [vmem:[%s325 + $0x1268] sm:$0xff]
        %v2028 = vld [vmem:[%s325 + $0x1270] sm:$0xff]
        %v2029 = vld [vmem:[%s325 + $0x1278] sm:$0xff]
        %v2030 = vld [vmem:[%s325 + $0x12c0] sm:$0xff]
        %v2031 = vld [vmem:[%s325 + $0x12c8] sm:$0xff]
        %v2032 = vld [vmem:[%s325 + $0x12d0] sm:$0xff]
        %v2033 = vld [vmem:[%s325 + $0x12d8] sm:$0xff]
        %v2034 = vld [vmem:[%s325 + $0x12e0] sm:$0xff]
        %v2035 = vld [vmem:[%s325 + $0x12e8] sm:$0xff]
        %v2036 = vld [vmem:[%s325 + $0x12f0] sm:$0xff]
        %v2037 = vld [vmem:[%s325 + $0x12f8] sm:$0xff]
        %v2038 = vld [vmem:[%s325 + $0x1340] sm:$0xff]
        %v2039 = vld [vmem:[%s325 + $0x1348] sm:$0xff]
        %v2040 = vld [vmem:[%s325 + $0x1350] sm:$0xff]
        %v2041 = vld [vmem:[%s325 + $0x1358] sm:$0xff]
        %v2042 = vld [vmem:[%s325 + $0x1360] sm:$0xff]
        %v2043 = vld [vmem:[%s325 + $0x1368] sm:$0xff]
        %v2044 = vld [vmem:[%s325 + $0x1370] sm:$0xff]
        %v2045 = vld [vmem:[%s325 + $0x1378] sm:$0xff]
        %v2046 = vld [vmem:[%s325 + $0x13c0] sm:$0xff]
        %v2047 = vld [vmem:[%s325 + $0x13c8] sm:$0xff]
        %v2048 = vld [vmem:[%s325 + $0x13d0] sm:$0xff]
        %v2049 = vld [vmem:[%s325 + $0x13d8] sm:$0xff]
        %v2050 = vld [vmem:[%s325 + $0x13e0] sm:$0xff]
        %v2051 = vld [vmem:[%s325 + $0x13e8] sm:$0xff]
        %v2052 = vld [vmem:[%s325 + $0x13f0] sm:$0xff]
        %v2053 = vld [vmem:[%s325 + $0x13f8] sm:$0xff]
        %v2054 = vld [vmem:[%s325 + $0x1440] sm:$0xff]
        %v2055 = vld [vmem:[%s325 + $0x1448] sm:$0xff]
        %v2056 = vld [vmem:[%s325 + $0x1450] sm:$0xff]
        %v2057 = vld [vmem:[%s325 + $0x1458] sm:$0xff]
        %v2058 = vld [vmem:[%s325 + $0x1460] sm:$0xff]
        %v2059 = vld [vmem:[%s325 + $0x1468] sm:$0xff]
        %v2060 = vld [vmem:[%s325 + $0x1470] sm:$0xff]
        %v2061 = vld [vmem:[%s325 + $0x1478] sm:$0xff]
        %v2062 = vld [vmem:[%s325 + $0x14c0] sm:$0xff]
        %v2063 = vld [vmem:[%s325 + $0x14c8] sm:$0xff]
        %v2064 = vld [vmem:[%s325 + $0x14d0] sm:$0xff]
        %v2065 = vld [vmem:[%s325 + $0x14d8] sm:$0xff]
        %v2066 = vld [vmem:[%s325 + $0x14e0] sm:$0xff]
        %v2067 = vld [vmem:[%s325 + $0x14e8] sm:$0xff]
        %v2068 = vld [vmem:[%s325 + $0x14f0] sm:$0xff]
        %v2069 = vld [vmem:[%s325 + $0x14f8] sm:$0xff]
        %v2070 = vld [vmem:[%s325 + $0x1540] sm:$0xff]
        %v2071 = vld [vmem:[%s325 + $0x1548] sm:$0xff]
        %v2072 = vld [vmem:[%s325 + $0x1550] sm:$0xff]
        %v2073 = vld [vmem:[%s325 + $0x1558] sm:$0xff]
        %v2074 = vld [vmem:[%s325 + $0x1560] sm:$0xff]
        %v2075 = vld [vmem:[%s325 + $0x1568] sm:$0xff]
        %v2076 = vld [vmem:[%s325 + $0x1570] sm:$0xff]
        %v2077 = vld [vmem:[%s325 + $0x1578] sm:$0xff]
        %v2078 = vld [vmem:[%s325 + $0x15c0] sm:$0xff]
        %v2079 = vld [vmem:[%s325 + $0x15c8] sm:$0xff]
        %v2080 = vld [vmem:[%s325 + $0x15d0] sm:$0xff]
        %v2081 = vld [vmem:[%s325 + $0x15d8] sm:$0xff]
        %v2082 = vld [vmem:[%s325 + $0x15e0] sm:$0xff]
        %v2083 = vld [vmem:[%s325 + $0x15e8] sm:$0xff]
        %v2084 = vld [vmem:[%s325 + $0x15f0] sm:$0xff]
        %v2085 = vld [vmem:[%s325 + $0x15f8] sm:$0xff]
        %v2086 = vld [vmem:[%s325 + $0x1640] sm:$0xff]
        %v2087 = vld [vmem:[%s325 + $0x1648] sm:$0xff]
        %v2088 = vld [vmem:[%s325 + $0x1650] sm:$0xff]
        %v2089 = vld [vmem:[%s325 + $0x1658] sm:$0xff]
        %v2090 = vld [vmem:[%s325 + $0x1660] sm:$0xff]
        %v2091 = vld [vmem:[%s325 + $0x1668] sm:$0xff]
        %v2092 = vld [vmem:[%s325 + $0x1670] sm:$0xff]
        %v2093 = vld [vmem:[%s325 + $0x1678] sm:$0xff]
        %v2094 = vld [vmem:[%s325 + $0x16c0] sm:$0xff]
        %v2095 = vld [vmem:[%s325 + $0x16c8] sm:$0xff]
        %v2096 = vld [vmem:[%s325 + $0x16d0] sm:$0xff]
        %v2097 = vld [vmem:[%s325 + $0x16d8] sm:$0xff]
        %v2098 = vld [vmem:[%s325 + $0x16e0] sm:$0xff]
        %v2099 = vld [vmem:[%s325 + $0x16e8] sm:$0xff]
        %v2100 = vld [vmem:[%s325 + $0x16f0] sm:$0xff]
        %v2101 = vld [vmem:[%s325 + $0x16f8] sm:$0xff]
        %v2102 = vld [vmem:[%s325 + $0x1740] sm:$0xff]
        %v2103 = vld [vmem:[%s325 + $0x1748] sm:$0xff]
        %v2104 = vld [vmem:[%s325 + $0x1750] sm:$0xff]
        %v2105 = vld [vmem:[%s325 + $0x1758] sm:$0xff]
        %v2106 = vld [vmem:[%s325 + $0x1760] sm:$0xff]
        %v2107 = vld [vmem:[%s325 + $0x1768] sm:$0xff]
        %v2108 = vld [vmem:[%s325 + $0x1770] sm:$0xff]
        %v2109 = vld [vmem:[%s325 + $0x1778] sm:$0xff]
        %v2110 = vld [vmem:[%s325 + $0x17c0] sm:$0xff]
        %v2111 = vld [vmem:[%s325 + $0x17c8] sm:$0xff]
        %v2112 = vld [vmem:[%s325 + $0x17d0] sm:$0xff]
        %v2113 = vld [vmem:[%s325 + $0x17d8] sm:$0xff]
        %v2114 = vld [vmem:[%s325 + $0x17e0] sm:$0xff]
        %v2115 = vld [vmem:[%s325 + $0x17e8] sm:$0xff]
        %v2116 = vld [vmem:[%s325 + $0x17f0] sm:$0xff]
        %v2117 = vld [vmem:[%s325 + $0x17f8] sm:$0xff]
        %v2118 = vld [vmem:[%s325 + $0x1840] sm:$0xff]
        %v2119 = vld [vmem:[%s325 + $0x1848] sm:$0xff]
        %v2120 = vld [vmem:[%s325 + $0x1850] sm:$0xff]
        %v2121 = vld [vmem:[%s325 + $0x1858] sm:$0xff]
        %v2122 = vld [vmem:[%s325 + $0x1860] sm:$0xff]
        %v2123 = vld [vmem:[%s325 + $0x1868] sm:$0xff]
        %v2124 = vld [vmem:[%s325 + $0x1870] sm:$0xff]
        %v2125 = vld [vmem:[%s325 + $0x1878] sm:$0xff]
        %v2126 = vld [vmem:[%s325 + $0x18c0] sm:$0xff]
        %v2127 = vld [vmem:[%s325 + $0x18c8] sm:$0xff]
        %v2128 = vld [vmem:[%s325 + $0x18d0] sm:$0xff]
        %v2129 = vld [vmem:[%s325 + $0x18d8] sm:$0xff]
        %v2130 = vld [vmem:[%s325 + $0x18e0] sm:$0xff]
        %v2131 = vld [vmem:[%s325 + $0x18e8] sm:$0xff]
        %v2132 = vld [vmem:[%s325 + $0x18f0] sm:$0xff]
        %v2133 = vld [vmem:[%s325 + $0x18f8] sm:$0xff]
        %v2134 = vld [vmem:[%s325 + $0x1940] sm:$0xff]
        %v2135 = vld [vmem:[%s325 + $0x1948] sm:$0xff]
        %v2136 = vld [vmem:[%s325 + $0x1950] sm:$0xff]
        %v2137 = vld [vmem:[%s325 + $0x1958] sm:$0xff]
        %v2138 = vld [vmem:[%s325 + $0x1960] sm:$0xff]
        %v2139 = vld [vmem:[%s325 + $0x1968] sm:$0xff]
        %v2140 = vld [vmem:[%s325 + $0x1970] sm:$0xff]
        %v2141 = vld [vmem:[%s325 + $0x1978] sm:$0xff]
        %v2142 = vld [vmem:[%s325 + $0x19c0] sm:$0xff]
        %v2143 = vld [vmem:[%s325 + $0x19c8] sm:$0xff]
        %v2144 = vld [vmem:[%s325 + $0x19d0] sm:$0xff]
        %v2145 = vld [vmem:[%s325 + $0x19d8] sm:$0xff]
        %v2146 = vld [vmem:[%s325 + $0x19e0] sm:$0xff]
        %v2147 = vld [vmem:[%s325 + $0x19e8] sm:$0xff]
        %v2148 = vld [vmem:[%s325 + $0x19f0] sm:$0xff]
        %v2149 = vld [vmem:[%s325 + $0x19f8] sm:$0xff]
        %v2150 = vld [vmem:[%s325 + $0x1a40] sm:$0xff]
        %v2151 = vld [vmem:[%s325 + $0x1a48] sm:$0xff]
        %v2152 = vld [vmem:[%s325 + $0x1a50] sm:$0xff]
        %v2153 = vld [vmem:[%s325 + $0x1a58] sm:$0xff]
        %v2154 = vld [vmem:[%s325 + $0x1a60] sm:$0xff]
        %v2155 = vld [vmem:[%s325 + $0x1a68] sm:$0xff]
        %v2156 = vld [vmem:[%s325 + $0x1a70] sm:$0xff]
        %v2157 = vld [vmem:[%s325 + $0x1a78] sm:$0xff]
        %v2158 = vld [vmem:[%s325 + $0x1ac0] sm:$0xff]
        %v2159 = vld [vmem:[%s325 + $0x1ac8] sm:$0xff]
        %v2160 = vld [vmem:[%s325 + $0x1ad0] sm:$0xff]
        %v2161 = vld [vmem:[%s325 + $0x1ad8] sm:$0xff]
        %v2162 = vld [vmem:[%s325 + $0x1ae0] sm:$0xff]
        %v2163 = vld [vmem:[%s325 + $0x1ae8] sm:$0xff]
        %v2164 = vld [vmem:[%s325 + $0x1af0] sm:$0xff]
        %v2165 = vld [vmem:[%s325 + $0x1af8] sm:$0xff]
        %v2166 = vld [vmem:[%s325 + $0x1b40] sm:$0xff]
        %v2167 = vld [vmem:[%s325 + $0x1b48] sm:$0xff]
        %v2168 = vld [vmem:[%s325 + $0x1b50] sm:$0xff]
        %v2169 = vld [vmem:[%s325 + $0x1b58] sm:$0xff]
        %v2170 = vld [vmem:[%s325 + $0x1b60] sm:$0xff]
        %v2171 = vld [vmem:[%s325 + $0x1b68] sm:$0xff]
        %v2172 = vld [vmem:[%s325 + $0x1b70] sm:$0xff]
        %v2173 = vld [vmem:[%s325 + $0x1b78] sm:$0xff]
        %v2174 = vld [vmem:[%s325 + $0x1bc0] sm:$0xff]
        %v2175 = vld [vmem:[%s325 + $0x1bc8] sm:$0xff]
        %v2176 = vld [vmem:[%s325 + $0x1bd0] sm:$0xff]
        %v2177 = vld [vmem:[%s325 + $0x1bd8] sm:$0xff]
        %v2178 = vld [vmem:[%s325 + $0x1be0] sm:$0xff]
        %v2179 = vld [vmem:[%s325 + $0x1be8] sm:$0xff]
        %v2180 = vld [vmem:[%s325 + $0x1bf0] sm:$0xff]
        %v2181 = vld [vmem:[%s325 + $0x1bf8] sm:$0xff]
        %v2182 = vld [vmem:[%s325 + $0x1c40] sm:$0xff]
        %v2183 = vld [vmem:[%s325 + $0x1c48] sm:$0xff]
        %v2184 = vld [vmem:[%s325 + $0x1c50] sm:$0xff]
        %v2185 = vld [vmem:[%s325 + $0x1c58] sm:$0xff]
        %v2186 = vld [vmem:[%s325 + $0x1c60] sm:$0xff]
        %v2187 = vld [vmem:[%s325 + $0x1c68] sm:$0xff]
        %v2188 = vld [vmem:[%s325 + $0x1c70] sm:$0xff]
        %v2189 = vld [vmem:[%s325 + $0x1c78] sm:$0xff]
        %v2190 = vld [vmem:[%s325 + $0x1cc0] sm:$0xff]
        %v2191 = vld [vmem:[%s325 + $0x1cc8] sm:$0xff]
        %v2192 = vld [vmem:[%s325 + $0x1cd0] sm:$0xff]
        %v2193 = vld [vmem:[%s325 + $0x1cd8] sm:$0xff]
        %v2194 = vld [vmem:[%s325 + $0x1ce0] sm:$0xff]
        %v2195 = vld [vmem:[%s325 + $0x1ce8] sm:$0xff]
        %v2196 = vld [vmem:[%s325 + $0x1cf0] sm:$0xff]
        %v2197 = vld [vmem:[%s325 + $0x1cf8] sm:$0xff]
        %v2198 = vld [vmem:[%s325 + $0x1d40] sm:$0xff]
        %v2199 = vld [vmem:[%s325 + $0x1d48] sm:$0xff]
        %v2200 = vld [vmem:[%s325 + $0x1d50] sm:$0xff]
        %v2201 = vld [vmem:[%s325 + $0x1d58] sm:$0xff]
        %v2202 = vld [vmem:[%s325 + $0x1d60] sm:$0xff]
        %v2203 = vld [vmem:[%s325 + $0x1d68] sm:$0xff]
        %v2204 = vld [vmem:[%s325 + $0x1d70] sm:$0xff]
        %v2205 = vld [vmem:[%s325 + $0x1d78] sm:$0xff]
        %v2206 = vld [vmem:[%s325 + $0x1dc0] sm:$0xff]
        %v2207 = vld [vmem:[%s325 + $0x1dc8] sm:$0xff]
        %v2208 = vld [vmem:[%s325 + $0x1dd0] sm:$0xff]
        %v2209 = vld [vmem:[%s325 + $0x1dd8] sm:$0xff]
        %v2210 = vld [vmem:[%s325 + $0x1de0] sm:$0xff]
        %v2211 = vld [vmem:[%s325 + $0x1de8] sm:$0xff]
        %v2212 = vld [vmem:[%s325 + $0x1df0] sm:$0xff]
        %v2213 = vld [vmem:[%s325 + $0x1df8] sm:$0xff]
        %v2214 = vld [vmem:[%s325 + $0x1e40] sm:$0xff]
        %v2215 = vld [vmem:[%s325 + $0x1e48] sm:$0xff]
        %v2216 = vld [vmem:[%s325 + $0x1e50] sm:$0xff]
        %v2217 = vld [vmem:[%s325 + $0x1e58] sm:$0xff]
        %v2218 = vld [vmem:[%s325 + $0x1e60] sm:$0xff]
        %v2219 = vld [vmem:[%s325 + $0x1e68] sm:$0xff]
        %v2220 = vld [vmem:[%s325 + $0x1e70] sm:$0xff]
        %v2221 = vld [vmem:[%s325 + $0x1e78] sm:$0xff]
        %v2222 = vld [vmem:[%s325 + $0x1ec0] sm:$0xff]
        %v2223 = vld [vmem:[%s325 + $0x1ec8] sm:$0xff]
        %v2224 = vld [vmem:[%s325 + $0x1ed0] sm:$0xff]
        %v2225 = vld [vmem:[%s325 + $0x1ed8] sm:$0xff]
        %v2226 = vld [vmem:[%s325 + $0x1ee0] sm:$0xff]
        %v2227 = vld [vmem:[%s325 + $0x1ee8] sm:$0xff]
        %v2228 = vld [vmem:[%s325 + $0x1ef0] sm:$0xff]
        %v2229 = vld [vmem:[%s325 + $0x1ef8] sm:$0xff]
        %v2230 = vld [vmem:[%s325 + $0x1f40] sm:$0xff]
        %v2231 = vld [vmem:[%s325 + $0x1f48] sm:$0xff]
        %v2232 = vld [vmem:[%s325 + $0x1f50] sm:$0xff]
        %v2233 = vld [vmem:[%s325 + $0x1f58] sm:$0xff]
        %v2234 = vld [vmem:[%s325 + $0x1f60] sm:$0xff]
        %v2235 = vld [vmem:[%s325 + $0x1f68] sm:$0xff]
        %v2236 = vld [vmem:[%s325 + $0x1f70] sm:$0xff]
        %v2237 = vld [vmem:[%s325 + $0x1f78] sm:$0xff]
        %v2238 = vld [vmem:[%s325 + $0x1fc0] sm:$0xff]
        %v2239 = vld [vmem:[%s325 + $0x1fc8] sm:$0xff]
        %v2240 = vld [vmem:[%s325 + $0x1fd0] sm:$0xff]
        %v2241 = vld [vmem:[%s325 + $0x1fd8] sm:$0xff]
        %v2242 = vld [vmem:[%s325 + $0x1fe0] sm:$0xff]
        %v2243 = vld [vmem:[%s325 + $0x1fe8] sm:$0xff]
        %v2244 = vld [vmem:[%s325 + $0x1ff0] sm:$0xff]
        %v2245 = vld [vmem:[%s325 + $0x1ff8] sm:$0xff]
        %2246 = vmatprep.subr.mxu0 %v1855
        %2247 = vmatpush1.msra.mxu0 %v1854
        %2248 = vmatprep.subr.mxu0 %v1847
        %2249 = vmatpush1.msra.mxu0 %v1846
        %2250 = vmatprep.subr.mxu0 %v1839
        %2251 = vmatpush1.msra.mxu0 %v1838
        %2252 = vmatprep.subr.mxu0 %v1831
        %2253 = vmatpush1.msra.mxu0 %v1830
        %2254 = vmatprep.subr.mxu0 %v1823
        %2255 = vmatpush1.msra.mxu0 %v1822
        %2256 = vmatprep.subr.mxu0 %v1815
        %2257 = vmatpush1.msra.mxu0 %v1814
        %2258 = vmatprep.subr.mxu0 %v1807
        %2259 = vmatpush1.msra.mxu0 %v1806
        %2260 = vmatprep.subr.mxu0 %v1799
        %2261 = vmatpush1.msra.mxu0 %v1798
        %2262 = vmatprep.subr.mxu0 %v1791
        %2263 = vmatpush1.msra.mxu0 %v1790
        %2264 = vmatprep.subr.mxu0 %v1783
        %2265 = vmatpush1.msra.mxu0 %v1782
        %2266 = vmatprep.subr.mxu0 %v1775
        %2267 = vmatpush1.msra.mxu0 %v1774
        %2268 = vmatprep.subr.mxu0 %v1767
        %2269 = vmatpush1.msra.mxu0 %v1766
        %2270 = vmatprep.subr.mxu0 %v1759
        %2271 = vmatpush1.msra.mxu0 %v1758
        %2272 = vmatprep.subr.mxu0 %v1751
        %2273 = vmatpush1.msra.mxu0 %v1750
        %2274 = vmatprep.subr.mxu0 %v1743
        %2275 = vmatpush1.msra.mxu0 %v1742
        %2276 = vmatprep.subr.mxu0 %v1735
        %2277 = vmatpush1.msra.mxu0 %v1734
        %2278 = vmatprep.subr.mxu0 %v1983
        %2279 = vmatpush2.msra.mxu0 %v1982
        %2280 = vmatprep.subr.mxu0 %v1975
        %2281 = vmatpush2.msra.mxu0 %v1974
        %2282 = vmatprep.subr.mxu0 %v1967
        %2283 = vmatpush2.msra.mxu0 %v1966
        %2284 = vmatprep.subr.mxu0 %v1959
        %2285 = vmatpush2.msra.mxu0 %v1958
        %2286 = vmatprep.subr.mxu0 %v1951
        %2287 = vmatpush2.msra.mxu0 %v1950
        %2288 = vmatprep.subr.mxu0 %v1943
        %2289 = vmatpush2.msra.mxu0 %v1942
        %2290 = vmatprep.subr.mxu0 %v1935
        %2291 = vmatpush2.msra.mxu0 %v1934
        %2292 = vmatprep.subr.mxu0 %v1927
        %2293 = vmatpush2.msra.mxu0 %v1926
        %2294 = vmatprep.subr.mxu0 %v1919
        %2295 = vmatpush2.msra.mxu0 %v1918
        %2296 = vmatprep.subr.mxu0 %v1911
        %2297 = vmatpush2.msra.mxu0 %v1910
        %2298 = vmatprep.subr.mxu0 %v1903
        %2299 = vmatpush2.msra.mxu0 %v1902
        %2300 = vmatprep.subr.mxu0 %v1895
        %2301 = vmatpush2.msra.mxu0 %v1894
        %2302 = vmatprep.subr.mxu0 %v1887
        %2303 = vmatpush2.msra.mxu0 %v1886
        %2304 = vmatprep.subr.mxu0 %v1879
        %2305 = vmatpush2.msra.mxu0 %v1878
        %2306 = vmatprep.subr.mxu0 %v1871
        %2307 = vmatpush2.msra.mxu0 %v1870
        %2308 = vmatprep.subr.mxu0 %v1863
        %2309 = vmatpush2.msra.mxu0 %v1862
        %2310 = vmatprep.mubr.f32.mxu0 %v415
        %2311 = vmatmul.mubr.f32.gmra.mxu0 %v414
        %v2312 = vpop.f32.mrf.mxu0
        %v2313 = vadd.f32 0.0, %v2312
        %v2314 = vpop.f32.mrf.mxu0
        %v2315 = vadd.f32 0.0, %v2314
        %2316 = vdwg.mxu0
        %2317 = vmatprep.subr.mxu0 %v2111
        %2318 = vmatpush1.msra.mxu0 %v2110
        %2319 = vmatprep.subr.mxu0 %v2103
        %2320 = vmatpush1.msra.mxu0 %v2102
        %2321 = vmatprep.subr.mxu0 %v2095
        %2322 = vmatpush1.msra.mxu0 %v2094
        %2323 = vmatprep.subr.mxu0 %v2087
        %2324 = vmatpush1.msra.mxu0 %v2086
        %2325 = vmatprep.subr.mxu0 %v2079
        %2326 = vmatpush1.msra.mxu0 %v2078
        %2327 = vmatprep.subr.mxu0 %v2071
        %2328 = vmatpush1.msra.mxu0 %v2070
        %2329 = vmatprep.subr.mxu0 %v2063
        %2330 = vmatpush1.msra.mxu0 %v2062
        %2331 = vmatprep.subr.mxu0 %v2055
        %2332 = vmatpush1.msra.mxu0 %v2054
        %2333 = vmatprep.subr.mxu0 %v2047
        %2334 = vmatpush1.msra.mxu0 %v2046
        %2335 = vmatprep.subr.mxu0 %v2039
        %2336 = vmatpush1.msra.mxu0 %v2038
        %2337 = vmatprep.subr.mxu0 %v2031
        %2338 = vmatpush1.msra.mxu0 %v2030
        %2339 = vmatprep.subr.mxu0 %v2023
        %2340 = vmatpush1.msra.mxu0 %v2022
        %2341 = vmatprep.subr.mxu0 %v2015
        %2342 = vmatpush1.msra.mxu0 %v2014
        %2343 = vmatprep.subr.mxu0 %v2007
        %2344 = vmatpush1.msra.mxu0 %v2006
        %2345 = vmatprep.subr.mxu0 %v1999
        %2346 = vmatpush1.msra.mxu0 %v1998
        %2347 = vmatprep.subr.mxu0 %v1991
        %2348 = vmatpush1.msra.mxu0 %v1990
        %2349 = vmatprep.subr.mxu0 %v2239
        %2350 = vmatpush2.msra.mxu0 %v2238
        %2351 = vmatprep.subr.mxu0 %v2231
        %2352 = vmatpush2.msra.mxu0 %v2230
        %2353 = vmatprep.subr.mxu0 %v2223
        %2354 = vmatpush2.msra.mxu0 %v2222
        %2355 = vmatprep.subr.mxu0 %v2215
        %2356 = vmatpush2.msra.mxu0 %v2214
        %2357 = vmatprep.subr.mxu0 %v2207
        %2358 = vmatpush2.msra.mxu0 %v2206
        %2359 = vmatprep.subr.mxu0 %v2199
        %2360 = vmatpush2.msra.mxu0 %v2198
        %2361 = vmatprep.subr.mxu0 %v2191
        %2362 = vmatpush2.msra.mxu0 %v2190
        %2363 = vmatprep.subr.mxu0 %v2183
        %2364 = vmatpush2.msra.mxu0 %v2182
        %2365 = vmatprep.subr.mxu0 %v2175
        %2366 = vmatpush2.msra.mxu0 %v2174
        %2367 = vmatprep.subr.mxu0 %v2167
        %2368 = vmatpush2.msra.mxu0 %v2166
        %2369 = vmatprep.subr.mxu0 %v2159
        %2370 = vmatpush2.msra.mxu0 %v2158
        %2371 = vmatprep.subr.mxu0 %v2151
        %2372 = vmatpush2.msra.mxu0 %v2150
        %2373 = vmatprep.subr.mxu0 %v2143
        %2374 = vmatpush2.msra.mxu0 %v2142
        %2375 = vmatprep.subr.mxu0 %v2135
        %2376 = vmatpush2.msra.mxu0 %v2134
        %2377 = vmatprep.subr.mxu0 %v2127
        %2378 = vmatpush2.msra.mxu0 %v2126
        %2379 = vmatprep.subr.mxu0 %v2119
        %2380 = vmatpush2.msra.mxu0 %v2118
        %2381 = vmatprep.mubr.f32.mxu0 %v417
        %2382 = vmatmul.mubr.f32.gmra.mxu0 %v416
        %v2383 = vpop.f32.mrf.mxu0
        %v2384 = vadd.f32 %v2313, %v2383
        %v2385 = vpop.f32.mrf.mxu0
        %v2386 = vadd.f32 %v2315, %v2385
        %2387 = vdwg.mxu0
        %2388 = vmatprep.subr.mxu0 %v1857
        %2389 = vmatpush1.msra.mxu0 %v1856
        %2390 = vmatprep.subr.mxu0 %v1849
        %2391 = vmatpush1.msra.mxu0 %v1848
        %2392 = vmatprep.subr.mxu0 %v1841
        %2393 = vmatpush1.msra.mxu0 %v1840
        %2394 = vmatprep.subr.mxu0 %v1833
        %2395 = vmatpush1.msra.mxu0 %v1832
        %2396 = vmatprep.subr.mxu0 %v1825
        %2397 = vmatpush1.msra.mxu0 %v1824
        %2398 = vmatprep.subr.mxu0 %v1817
        %2399 = vmatpush1.msra.mxu0 %v1816
        %2400 = vmatprep.subr.mxu0 %v1809
        %2401 = vmatpush1.msra.mxu0 %v1808
        %2402 = vmatprep.subr.mxu0 %v1801
        %2403 = vmatpush1.msra.mxu0 %v1800
        %2404 = vmatprep.subr.mxu0 %v1793
        %2405 = vmatpush1.msra.mxu0 %v1792
        %2406 = vmatprep.subr.mxu0 %v1785
        %2407 = vmatpush1.msra.mxu0 %v1784
        %2408 = vmatprep.subr.mxu0 %v1777
        %2409 = vmatpush1.msra.mxu0 %v1776
        %2410 = vmatprep.subr.mxu0 %v1769
        %2411 = vmatpush1.msra.mxu0 %v1768
        %2412 = vmatprep.subr.mxu0 %v1761
        %2413 = vmatpush1.msra.mxu0 %v1760
        %2414 = vmatprep.subr.mxu0 %v1753
        %2415 = vmatpush1.msra.mxu0 %v1752
        %2416 = vmatprep.subr.mxu0 %v1745
        %2417 = vmatpush1.msra.mxu0 %v1744
        %2418 = vmatprep.subr.mxu0 %v1737
        %2419 = vmatpush1.msra.mxu0 %v1736
        %2420 = vmatprep.subr.mxu0 %v1985
        %2421 = vmatpush2.msra.mxu0 %v1984
        %2422 = vmatprep.subr.mxu0 %v1977
        %2423 = vmatpush2.msra.mxu0 %v1976
        %2424 = vmatprep.subr.mxu0 %v1969
        %2425 = vmatpush2.msra.mxu0 %v1968
        %2426 = vmatprep.subr.mxu0 %v1961
        %2427 = vmatpush2.msra.mxu0 %v1960
        %2428 = vmatprep.subr.mxu0 %v1953
        %2429 = vmatpush2.msra.mxu0 %v1952
        %2430 = vmatprep.subr.mxu0 %v1945
        %2431 = vmatpush2.msra.mxu0 %v1944
        %2432 = vmatprep.subr.mxu0 %v1937
        %2433 = vmatpush2.msra.mxu0 %v1936
        %2434 = vmatprep.subr.mxu0 %v1929
        %2435 = vmatpush2.msra.mxu0 %v1928
        %2436 = vmatprep.subr.mxu0 %v1921
        %2437 = vmatpush2.msra.mxu0 %v1920
        %2438 = vmatprep.subr.mxu0 %v1913
        %2439 = vmatpush2.msra.mxu0 %v1912
        %2440 = vmatprep.subr.mxu0 %v1905
        %2441 = vmatpush2.msra.mxu0 %v1904
        %2442 = vmatprep.subr.mxu0 %v1897
        %2443 = vmatpush2.msra.mxu0 %v1896
        %2444 = vmatprep.subr.mxu0 %v1889
        %2445 = vmatpush2.msra.mxu0 %v1888
        %2446 = vmatprep.subr.mxu0 %v1881
        %2447 = vmatpush2.msra.mxu0 %v1880
        %2448 = vmatprep.subr.mxu0 %v1873
        %2449 = vmatpush2.msra.mxu0 %v1872
        %2450 = vmatprep.subr.mxu0 %v1865
        %2451 = vmatpush2.msra.mxu0 %v1864
        %2452 = vmatprep.mubr.f32.mxu0 %v415
        %2453 = vmatmul.mubr.f32.gmra.mxu0 %v414
        %v2454 = vpop.f32.mrf.mxu0
        %v2455 = vadd.f32 0.0, %v2454
        %v2456 = vpop.f32.mrf.mxu0
        %v2457 = vadd.f32 0.0, %v2456
        %2458 = vdwg.mxu0
        %2459 = vmatprep.subr.mxu0 %v2113
        %2460 = vmatpush1.msra.mxu0 %v2112
        %2461 = vmatprep.subr.mxu0 %v2105
        %2462 = vmatpush1.msra.mxu0 %v2104
        %2463 = vmatprep.subr.mxu0 %v2097
        %2464 = vmatpush1.msra.mxu0 %v2096
        %2465 = vmatprep.subr.mxu0 %v2089
        %2466 = vmatpush1.msra.mxu0 %v2088
        %2467 = vmatprep.subr.mxu0 %v2081
        %2468 = vmatpush1.msra.mxu0 %v2080
        %2469 = vmatprep.subr.mxu0 %v2073
        %2470 = vmatpush1.msra.mxu0 %v2072
        %2471 = vmatprep.subr.mxu0 %v2065
        %2472 = vmatpush1.msra.mxu0 %v2064
        %2473 = vmatprep.subr.mxu0 %v2057
        %2474 = vmatpush1.msra.mxu0 %v2056
        %2475 = vmatprep.subr.mxu0 %v2049
        %2476 = vmatpush1.msra.mxu0 %v2048
        %2477 = vmatprep.subr.mxu0 %v2041
        %2478 = vmatpush1.msra.mxu0 %v2040
        %2479 = vmatprep.subr.mxu0 %v2033
        %2480 = vmatpush1.msra.mxu0 %v2032
        %2481 = vmatprep.subr.mxu0 %v2025
        %2482 = vmatpush1.msra.mxu0 %v2024
        %2483 = vmatprep.subr.mxu0 %v2017
        %2484 = vmatpush1.msra.mxu0 %v2016
        %2485 = vmatprep.subr.mxu0 %v2009
        %2486 = vmatpush1.msra.mxu0 %v2008
        %2487 = vmatprep.subr.mxu0 %v2001
        %2488 = vmatpush1.msra.mxu0 %v2000
        %2489 = vmatprep.subr.mxu0 %v1993
        %2490 = vmatpush1.msra.mxu0 %v1992
        %2491 = vmatprep.subr.mxu0 %v2241
        %2492 = vmatpush2.msra.mxu0 %v2240
        %2493 = vmatprep.subr.mxu0 %v2233
        %2494 = vmatpush2.msra.mxu0 %v2232
        %2495 = vmatprep.subr.mxu0 %v2225
        %2496 = vmatpush2.msra.mxu0 %v2224
        %2497 = vmatprep.subr.mxu0 %v2217
        %2498 = vmatpush2.msra.mxu0 %v2216
        %2499 = vmatprep.subr.mxu0 %v2209
        %2500 = vmatpush2.msra.mxu0 %v2208
        %2501 = vmatprep.subr.mxu0 %v2201
        %2502 = vmatpush2.msra.mxu0 %v2200
        %2503 = vmatprep.subr.mxu0 %v2193
        %2504 = vmatpush2.msra.mxu0 %v2192
        %2505 = vmatprep.subr.mxu0 %v2185
        %2506 = vmatpush2.msra.mxu0 %v2184
        %2507 = vmatprep.subr.mxu0 %v2177
        %2508 = vmatpush2.msra.mxu0 %v2176
        %2509 = vmatprep.subr.mxu0 %v2169
        %2510 = vmatpush2.msra.mxu0 %v2168
        %2511 = vmatprep.subr.mxu0 %v2161
        %2512 = vmatpush2.msra.mxu0 %v2160
        %2513 = vmatprep.subr.mxu0 %v2153
        %2514 = vmatpush2.msra.mxu0 %v2152
        %2515 = vmatprep.subr.mxu0 %v2145
        %2516 = vmatpush2.msra.mxu0 %v2144
        %2517 = vmatprep.subr.mxu0 %v2137
        %2518 = vmatpush2.msra.mxu0 %v2136
        %2519 = vmatprep.subr.mxu0 %v2129
        %2520 = vmatpush2.msra.mxu0 %v2128
        %2521 = vmatprep.subr.mxu0 %v2121
        %2522 = vmatpush2.msra.mxu0 %v2120
        %2523 = vmatprep.mubr.f32.mxu0 %v417
        %2524 = vmatmul.mubr.f32.gmra.mxu0 %v416
        %v2525 = vpop.f32.mrf.mxu0
        %v2526 = vadd.f32 %v2455, %v2525
        %v2527 = vpop.f32.mrf.mxu0
        %v2528 = vadd.f32 %v2457, %v2527
        %2529 = vdwg.mxu0
        %2530 = vmatprep.subr.mxu0 %v1859
        %2531 = vmatpush1.msra.mxu0 %v1858
        %2532 = vmatprep.subr.mxu0 %v1851
        %2533 = vmatpush1.msra.mxu0 %v1850
        %2534 = vmatprep.subr.mxu0 %v1843
        %2535 = vmatpush1.msra.mxu0 %v1842
        %2536 = vmatprep.subr.mxu0 %v1835
        %2537 = vmatpush1.msra.mxu0 %v1834
        %2538 = vmatprep.subr.mxu0 %v1827
        %2539 = vmatpush1.msra.mxu0 %v1826
        %2540 = vmatprep.subr.mxu0 %v1819
        %2541 = vmatpush1.msra.mxu0 %v1818
        %2542 = vmatprep.subr.mxu0 %v1811
        %2543 = vmatpush1.msra.mxu0 %v1810
        %2544 = vmatprep.subr.mxu0 %v1803
        %2545 = vmatpush1.msra.mxu0 %v1802
        %2546 = vmatprep.subr.mxu0 %v1795
        %2547 = vmatpush1.msra.mxu0 %v1794
        %2548 = vmatprep.subr.mxu0 %v1787
        %2549 = vmatpush1.msra.mxu0 %v1786
        %2550 = vmatprep.subr.mxu0 %v1779
        %2551 = vmatpush1.msra.mxu0 %v1778
        %2552 = vmatprep.subr.mxu0 %v1771
        %2553 = vmatpush1.msra.mxu0 %v1770
        %2554 = vmatprep.subr.mxu0 %v1763
        %2555 = vmatpush1.msra.mxu0 %v1762
        %2556 = vmatprep.subr.mxu0 %v1755
        %2557 = vmatpush1.msra.mxu0 %v1754
        %2558 = vmatprep.subr.mxu0 %v1747
        %2559 = vmatpush1.msra.mxu0 %v1746
        %2560 = vmatprep.subr.mxu0 %v1739
        %2561 = vmatpush1.msra.mxu0 %v1738
        %2562 = vmatprep.subr.mxu0 %v1987
        %2563 = vmatpush2.msra.mxu0 %v1986
        %2564 = vmatprep.subr.mxu0 %v1979
        %2565 = vmatpush2.msra.mxu0 %v1978
        %2566 = vmatprep.subr.mxu0 %v1971
        %2567 = vmatpush2.msra.mxu0 %v1970
        %2568 = vmatprep.subr.mxu0 %v1963
        %2569 = vmatpush2.msra.mxu0 %v1962
        %2570 = vmatprep.subr.mxu0 %v1955
        %2571 = vmatpush2.msra.mxu0 %v1954
        %2572 = vmatprep.subr.mxu0 %v1947
        %2573 = vmatpush2.msra.mxu0 %v1946
        %2574 = vmatprep.subr.mxu0 %v1939
        %2575 = vmatpush2.msra.mxu0 %v1938
        %2576 = vmatprep.subr.mxu0 %v1931
        %2577 = vmatpush2.msra.mxu0 %v1930
        %2578 = vmatprep.subr.mxu0 %v1923
        %2579 = vmatpush2.msra.mxu0 %v1922
        %2580 = vmatprep.subr.mxu0 %v1915
        %2581 = vmatpush2.msra.mxu0 %v1914
        %2582 = vmatprep.subr.mxu0 %v1907
        %2583 = vmatpush2.msra.mxu0 %v1906
        %2584 = vmatprep.subr.mxu0 %v1899
        %2585 = vmatpush2.msra.mxu0 %v1898
        %2586 = vmatprep.subr.mxu0 %v1891
        %2587 = vmatpush2.msra.mxu0 %v1890
        %2588 = vmatprep.subr.mxu0 %v1883
        %2589 = vmatpush2.msra.mxu0 %v1882
        %2590 = vmatprep.subr.mxu0 %v1875
        %2591 = vmatpush2.msra.mxu0 %v1874
        %2592 = vmatprep.subr.mxu0 %v1867
        %2593 = vmatpush2.msra.mxu0 %v1866
        %2594 = vmatprep.mubr.f32.mxu0 %v415
        %2595 = vmatmul.mubr.f32.gmra.mxu0 %v414
        %v2596 = vpop.f32.mrf.mxu0
        %v2597 = vadd.f32 0.0, %v2596
        %v2598 = vpop.f32.mrf.mxu0
        %v2599 = vadd.f32 0.0, %v2598
        %2600 = vdwg.mxu0
        %2601 = vmatprep.subr.mxu0 %v2115
        %2602 = vmatpush1.msra.mxu0 %v2114
        %2603 = vmatprep.subr.mxu0 %v2107
        %2604 = vmatpush1.msra.mxu0 %v2106
        %2605 = vmatprep.subr.mxu0 %v2099
        %2606 = vmatpush1.msra.mxu0 %v2098
        %2607 = vmatprep.subr.mxu0 %v2091
        %2608 = vmatpush1.msra.mxu0 %v2090
        %2609 = vmatprep.subr.mxu0 %v2083
        %2610 = vmatpush1.msra.mxu0 %v2082
        %2611 = vmatprep.subr.mxu0 %v2075
        %2612 = vmatpush1.msra.mxu0 %v2074
        %2613 = vmatprep.subr.mxu0 %v2067
        %2614 = vmatpush1.msra.mxu0 %v2066
        %2615 = vmatprep.subr.mxu0 %v2059
        %2616 = vmatpush1.msra.mxu0 %v2058
        %2617 = vmatprep.subr.mxu0 %v2051
        %2618 = vmatpush1.msra.mxu0 %v2050
        %2619 = vmatprep.subr.mxu0 %v2043
        %2620 = vmatpush1.msra.mxu0 %v2042
        %2621 = vmatprep.subr.mxu0 %v2035
        %2622 = vmatpush1.msra.mxu0 %v2034
        %2623 = vmatprep.subr.mxu0 %v2027
        %2624 = vmatpush1.msra.mxu0 %v2026
        %2625 = vmatprep.subr.mxu0 %v2019
        %2626 = vmatpush1.msra.mxu0 %v2018
        %2627 = vmatprep.subr.mxu0 %v2011
        %2628 = vmatpush1.msra.mxu0 %v2010
        %2629 = vmatprep.subr.mxu0 %v2003
        %2630 = vmatpush1.msra.mxu0 %v2002
        %2631 = vmatprep.subr.mxu0 %v1995
        %2632 = vmatpush1.msra.mxu0 %v1994
        %2633 = vmatprep.subr.mxu0 %v2243
        %2634 = vmatpush2.msra.mxu0 %v2242
        %2635 = vmatprep.subr.mxu0 %v2235
        %2636 = vmatpush2.msra.mxu0 %v2234
        %2637 = vmatprep.subr.mxu0 %v2227
        %2638 = vmatpush2.msra.mxu0 %v2226
        %2639 = vmatprep.subr.mxu0 %v2219
        %2640 = vmatpush2.msra.mxu0 %v2218
        %2641 = vmatprep.subr.mxu0 %v2211
        %2642 = vmatpush2.msra.mxu0 %v2210
        %2643 = vmatprep.subr.mxu0 %v2203
        %2644 = vmatpush2.msra.mxu0 %v2202
        %2645 = vmatprep.subr.mxu0 %v2195
        %2646 = vmatpush2.msra.mxu0 %v2194
        %2647 = vmatprep.subr.mxu0 %v2187
        %2648 = vmatpush2.msra.mxu0 %v2186
        %2649 = vmatprep.subr.mxu0 %v2179
        %2650 = vmatpush2.msra.mxu0 %v2178
        %2651 = vmatprep.subr.mxu0 %v2171
        %2652 = vmatpush2.msra.mxu0 %v2170
        %2653 = vmatprep.subr.mxu0 %v2163
        %2654 = vmatpush2.msra.mxu0 %v2162
        %2655 = vmatprep.subr.mxu0 %v2155
        %2656 = vmatpush2.msra.mxu0 %v2154
        %2657 = vmatprep.subr.mxu0 %v2147
        %2658 = vmatpush2.msra.mxu0 %v2146
        %2659 = vmatprep.subr.mxu0 %v2139
        %2660 = vmatpush2.msra.mxu0 %v2138
        %2661 = vmatprep.subr.mxu0 %v2131
        %2662 = vmatpush2.msra.mxu0 %v2130
        %2663 = vmatprep.subr.mxu0 %v2123
        %2664 = vmatpush2.msra.mxu0 %v2122
        %2665 = vmatprep.mubr.f32.mxu0 %v417
        %2666 = vmatmul.mubr.f32.gmra.mxu0 %v416
        %v2667 = vpop.f32.mrf.mxu0
        %v2668 = vadd.f32 %v2597, %v2667
        %v2669 = vpop.f32.mrf.mxu0
        %v2670 = vadd.f32 %v2599, %v2669
        %2671 = vdwg.mxu0
        %2672 = vmatprep.subr.mxu0 %v1861
        %2673 = vmatpush1.msra.mxu0 %v1860
        %2674 = vmatprep.subr.mxu0 %v1853
        %2675 = vmatpush1.msra.mxu0 %v1852
        %2676 = vmatprep.subr.mxu0 %v1845
        %2677 = vmatpush1.msra.mxu0 %v1844
        %2678 = vmatprep.subr.mxu0 %v1837
        %2679 = vmatpush1.msra.mxu0 %v1836
        %2680 = vmatprep.subr.mxu0 %v1829
        %2681 = vmatpush1.msra.mxu0 %v1828
        %2682 = vmatprep.subr.mxu0 %v1821
        %2683 = vmatpush1.msra.mxu0 %v1820
        %2684 = vmatprep.subr.mxu0 %v1813
        %2685 = vmatpush1.msra.mxu0 %v1812
        %2686 = vmatprep.subr.mxu0 %v1805
        %2687 = vmatpush1.msra.mxu0 %v1804
        %2688 = vmatprep.subr.mxu0 %v1797
        %2689 = vmatpush1.msra.mxu0 %v1796
        %2690 = vmatprep.subr.mxu0 %v1789
        %2691 = vmatpush1.msra.mxu0 %v1788
        %2692 = vmatprep.subr.mxu0 %v1781
        %2693 = vmatpush1.msra.mxu0 %v1780
        %2694 = vmatprep.subr.mxu0 %v1773
        %2695 = vmatpush1.msra.mxu0 %v1772
        %2696 = vmatprep.subr.mxu0 %v1765
        %2697 = vmatpush1.msra.mxu0 %v1764
        %2698 = vmatprep.subr.mxu0 %v1757
        %2699 = vmatpush1.msra.mxu0 %v1756
        %2700 = vmatprep.subr.mxu0 %v1749
        %2701 = vmatpush1.msra.mxu0 %v1748
        %2702 = vmatprep.subr.mxu0 %v1741
        %2703 = vmatpush1.msra.mxu0 %v1740
        %2704 = vmatprep.subr.mxu0 %v1989
        %2705 = vmatpush2.msra.mxu0 %v1988
        %2706 = vmatprep.subr.mxu0 %v1981
        %2707 = vmatpush2.msra.mxu0 %v1980
        %2708 = vmatprep.subr.mxu0 %v1973
        %2709 = vmatpush2.msra.mxu0 %v1972
        %2710 = vmatprep.subr.mxu0 %v1965
        %2711 = vmatpush2.msra.mxu0 %v1964
        %2712 = vmatprep.subr.mxu0 %v1957
        %2713 = vmatpush2.msra.mxu0 %v1956
        %2714 = vmatprep.subr.mxu0 %v1949
        %2715 = vmatpush2.msra.mxu0 %v1948
        %2716 = vmatprep.subr.mxu0 %v1941
        %2717 = vmatpush2.msra.mxu0 %v1940
        %2718 = vmatprep.subr.mxu0 %v1933
        %2719 = vmatpush2.msra.mxu0 %v1932
        %2720 = vmatprep.subr.mxu0 %v1925
        %2721 = vmatpush2.msra.mxu0 %v1924
        %2722 = vmatprep.subr.mxu0 %v1917
        %2723 = vmatpush2.msra.mxu0 %v1916
        %2724 = vmatprep.subr.mxu0 %v1909
        %2725 = vmatpush2.msra.mxu0 %v1908
        %2726 = vmatprep.subr.mxu0 %v1901
        %2727 = vmatpush2.msra.mxu0 %v1900
        %2728 = vmatprep.subr.mxu0 %v1893
        %2729 = vmatpush2.msra.mxu0 %v1892
        %2730 = vmatprep.subr.mxu0 %v1885
        %2731 = vmatpush2.msra.mxu0 %v1884
        %2732 = vmatprep.subr.mxu0 %v1877
        %2733 = vmatpush2.msra.mxu0 %v1876
        %2734 = vmatprep.subr.mxu0 %v1869
        %2735 = vmatpush2.msra.mxu0 %v1868
        %2736 = vmatprep.mubr.f32.mxu0 %v415
        %2737 = vmatmul.mubr.f32.gmra.mxu0 %v414
        %v2738 = vpop.f32.mrf.mxu0
        %v2739 = vadd.f32 0.0, %v2738
        %v2740 = vpop.f32.mrf.mxu0
        %v2741 = vadd.f32 0.0, %v2740
        %2742 = vdwg.mxu0
        %2743 = vmatprep.subr.mxu0 %v2117
        %2744 = vmatpush1.msra.mxu0 %v2116
        %2745 = vmatprep.subr.mxu0 %v2109
        %2746 = vmatpush1.msra.mxu0 %v2108
        %2747 = vmatprep.subr.mxu0 %v2101
        %2748 = vmatpush1.msra.mxu0 %v2100
        %2749 = vmatprep.subr.mxu0 %v2093
        %2750 = vmatpush1.msra.mxu0 %v2092
        %2751 = vmatprep.subr.mxu0 %v2085
        %2752 = vmatpush1.msra.mxu0 %v2084
        %2753 = vmatprep.subr.mxu0 %v2077
        %2754 = vmatpush1.msra.mxu0 %v2076
        %2755 = vmatprep.subr.mxu0 %v2069
        %2756 = vmatpush1.msra.mxu0 %v2068
        %2757 = vmatprep.subr.mxu0 %v2061
        %2758 = vmatpush1.msra.mxu0 %v2060
        %2759 = vmatprep.subr.mxu0 %v2053
        %2760 = vmatpush1.msra.mxu0 %v2052
        %2761 = vmatprep.subr.mxu0 %v2045
        %2762 = vmatpush1.msra.mxu0 %v2044
        %2763 = vmatprep.subr.mxu0 %v2037
        %2764 = vmatpush1.msra.mxu0 %v2036
        %2765 = vmatprep.subr.mxu0 %v2029
        %2766 = vmatpush1.msra.mxu0 %v2028
        %2767 = vmatprep.subr.mxu0 %v2021
        %2768 = vmatpush1.msra.mxu0 %v2020
        %2769 = vmatprep.subr.mxu0 %v2013
        %2770 = vmatpush1.msra.mxu0 %v2012
        %2771 = vmatprep.subr.mxu0 %v2005
        %2772 = vmatpush1.msra.mxu0 %v2004
        %2773 = vmatprep.subr.mxu0 %v1997
        %2774 = vmatpush1.msra.mxu0 %v1996
        %2775 = vmatprep.subr.mxu0 %v2245
        %2776 = vmatpush2.msra.mxu0 %v2244
        %2777 = vmatprep.subr.mxu0 %v2237
        %2778 = vmatpush2.msra.mxu0 %v2236
        %2779 = vmatprep.subr.mxu0 %v2229
        %2780 = vmatpush2.msra.mxu0 %v2228
        %2781 = vmatprep.subr.mxu0 %v2221
        %2782 = vmatpush2.msra.mxu0 %v2220
        %2783 = vmatprep.subr.mxu0 %v2213
        %2784 = vmatpush2.msra.mxu0 %v2212
        %2785 = vmatprep.subr.mxu0 %v2205
        %2786 = vmatpush2.msra.mxu0 %v2204
        %2787 = vmatprep.subr.mxu0 %v2197
        %2788 = vmatpush2.msra.mxu0 %v2196
        %2789 = vmatprep.subr.mxu0 %v2189
        %2790 = vmatpush2.msra.mxu0 %v2188
        %2791 = vmatprep.subr.mxu0 %v2181
        %2792 = vmatpush2.msra.mxu0 %v2180
        %2793 = vmatprep.subr.mxu0 %v2173
        %2794 = vmatpush2.msra.mxu0 %v2172
        %2795 = vmatprep.subr.mxu0 %v2165
        %2796 = vmatpush2.msra.mxu0 %v2164
        %2797 = vmatprep.subr.mxu0 %v2157
        %2798 = vmatpush2.msra.mxu0 %v2156
        %2799 = vmatprep.subr.mxu0 %v2149
        %2800 = vmatpush2.msra.mxu0 %v2148
        %2801 = vmatprep.subr.mxu0 %v2141
        %2802 = vmatpush2.msra.mxu0 %v2140
        %2803 = vmatprep.subr.mxu0 %v2133
        %2804 = vmatpush2.msra.mxu0 %v2132
        %2805 = vmatprep.subr.mxu0 %v2125
        %2806 = vmatpush2.msra.mxu0 %v2124
        %2807 = vmatprep.mubr.f32.mxu0 %v417
        %2808 = vmatmul.mubr.f32.gmra.mxu0 %v416
        %v2809 = vpop.f32.mrf.mxu0
        %v2810 = vadd.f32 %v2739, %v2809
        %v2811 = vpop.f32.mrf.mxu0
        %v2812 = vadd.f32 %v2741, %v2811
        %2813 = vdwg.mxu0
        %v2814 = vmul.f32 %v2384, 20.0
        %v2815 = vmul.f32 %v2386, 20.0
        %v2816 = vmul.f32 %v2526, 20.0
        %v2817 = vmul.f32 %v2528, 20.0
        %v2818 = vmul.f32 %v2668, 20.0
        %v2819 = vmul.f32 %v2670, 20.0
        %v2820 = vmul.f32 %v2810, 20.0
        %v2821 = vmul.f32 %v2812, 20.0
        %s2822 = sadd.s32 %s421, 1024
        %v2823 = vstv %s2822
        %v2824 = vadd.s32 %v2823, %v1511
        %v2825 = vadd.s32 %v2823, %v1512
        %v2826 = vadd.s32 %v2823, %v1513
        %v2827 = vadd.s32 %v2823, %v1514
        %v2828 = vadd.s32 %v2823, %v1515
        %v2829 = vadd.s32 %v2823, %v1516
        %v2830 = vadd.s32 %v2823, %v1517
        %v2831 = vadd.s32 %v2823, %v1518
        %vm2832 = vcmp.lt.s32.totalorder %v2824, 2560
        %vm2833 = vcmp.lt.s32.totalorder %v2825, 2560
        %vm2834 = vcmp.lt.s32.totalorder %v2826, 2560
        %vm2835 = vcmp.lt.s32.totalorder %v2827, 2560
        %vm2836 = vcmp.lt.s32.totalorder %v2828, 2560
        %vm2837 = vcmp.lt.s32.totalorder %v2829, 2560
        %vm2838 = vcmp.lt.s32.totalorder %v2830, 2560
        %vm2839 = vcmp.lt.s32.totalorder %v2831, 2560
        %v2840 = vsel %vm2832, 1, 0
        %v2841 = vsel %vm2833, 1, 0
        %v2842 = vsel %vm2834, 1, 0
        %v2843 = vsel %vm2835, 1, 0
        %v2844 = vsel %vm2836, 1, 0
        %v2845 = vsel %vm2837, 1, 0
        %v2846 = vsel %vm2838, 1, 0
        %v2847 = vsel %vm2839, 1, 0
        %v2848 = vcvt.s32.f32 %v2840
        %v2849 = vcvt.s32.f32 %v2841
        %v2850 = vcvt.s32.f32 %v2842
        %v2851 = vcvt.s32.f32 %v2843
        %v2852 = vcvt.s32.f32 %v2844
        %v2853 = vcvt.s32.f32 %v2845
        %v2854 = vcvt.s32.f32 %v2846
        %v2855 = vcvt.s32.f32 %v2847
        %vm2856 = vcmp.eq.s32.totalorder %v2840, 1
        %vm2857 = vcmp.eq.s32.totalorder %v2841, 1
        %vm2858 = vcmp.eq.s32.totalorder %v2842, 1
        %vm2859 = vcmp.eq.s32.totalorder %v2843, 1
        %vm2860 = vcmp.eq.s32.totalorder %v2844, 1
        %vm2861 = vcmp.eq.s32.totalorder %v2845, 1
        %vm2862 = vcmp.eq.s32.totalorder %v2846, 1
        %vm2863 = vcmp.eq.s32.totalorder %v2847, 1
        %v2864 = vsel %vm2856, %v2814, -1e+30
        %v2865 = vsel %vm2857, %v2815, -1e+30
        %v2866 = vsel %vm2858, %v2816, -1e+30
        %v2867 = vsel %vm2859, %v2817, -1e+30
        %v2868 = vsel %vm2860, %v2818, -1e+30
        %v2869 = vsel %vm2861, %v2819, -1e+30
        %v2870 = vsel %vm2862, %v2820, -1e+30
        %v2871 = vsel %vm2863, %v2821, -1e+30
        %v2872 = vld [vmem:[%s334 + $0x8] sm:$0xff]
        %v2873 = vlaneseq
        %v2874 = vshrl.u32 %v2873, 7
        %v2875 = vsub.s32 0, %v2874
        %v2876 = vrot.slane %v2872, %v2875
        %v2877 = vlaneseq
        %v2878 = vshrl.u32 %v2877, 7
        %v2879 = vsub.s32 1, %v2878
        %v2880 = vrot.slane %v2872, %v2879
        %v2881 = vlaneseq
        %v2882 = vshrl.u32 %v2881, 7
        %v2883 = vsub.s32 2, %v2882
        %v2884 = vrot.slane %v2872, %v2883
        %v2885 = vlaneseq
        %v2886 = vshrl.u32 %v2885, 7
        %v2887 = vsub.s32 3, %v2886
        %v2888 = vrot.slane %v2872, %v2887
        %v2889 = vlaneseq
        %v2890 = vshrl.u32 %v2889, 7
        %v2891 = vsub.s32 4, %v2890
        %v2892 = vrot.slane %v2872, %v2891
        %v2893 = vlaneseq
        %v2894 = vshrl.u32 %v2893, 7
        %v2895 = vsub.s32 5, %v2894
        %v2896 = vrot.slane %v2872, %v2895
        %v2897 = vlaneseq
        %v2898 = vshrl.u32 %v2897, 7
        %v2899 = vsub.s32 6, %v2898
        %v2900 = vrot.slane %v2872, %v2899
        %v2901 = vlaneseq
        %v2902 = vshrl.u32 %v2901, 7
        %v2903 = vsub.s32 7, %v2902
        %v2904 = vrot.slane %v2872, %v2903
        %vm2905 = vcmp.eq.s32.totalorder %v1571, %v2876
        %vm2906 = vcmp.eq.s32.totalorder %v1571, %v2880
        %vm2907 = vcmp.eq.s32.totalorder %v1571, %v2884
        %vm2908 = vcmp.eq.s32.totalorder %v1571, %v2888
        %vm2909 = vcmp.eq.s32.totalorder %v1571, %v2892
        %vm2910 = vcmp.eq.s32.totalorder %v1571, %v2896
        %vm2911 = vcmp.eq.s32.totalorder %v1571, %v2900
        %vm2912 = vcmp.eq.s32.totalorder %v1571, %v2904
        %vm2913 = vmand %vm2905, %vm2856
        %vm2914 = vmand %vm2906, %vm2857
        %vm2915 = vmand %vm2907, %vm2858
        %vm2916 = vmand %vm2908, %vm2859
        %vm2917 = vmand %vm2909, %vm2860
        %vm2918 = vmand %vm2910, %vm2861
        %vm2919 = vmand %vm2911, %vm2862
        %vm2920 = vmand %vm2912, %vm2863
        %v2921 = vsel %vm2913, 1, 0
        %v2922 = vsel %vm2914, 1, 0
        %v2923 = vsel %vm2915, 1, 0
        %v2924 = vsel %vm2916, 1, 0
        %v2925 = vsel %vm2917, 1, 0
        %v2926 = vsel %vm2918, 1, 0
        %v2927 = vsel %vm2919, 1, 0
        %v2928 = vsel %vm2920, 1, 0
        %v2929 = vcvt.s32.f32 %v2921
        %v2930 = vcvt.s32.f32 %v2922
        %v2931 = vcvt.s32.f32 %v2923
        %v2932 = vcvt.s32.f32 %v2924
        %v2933 = vcvt.s32.f32 %v2925
        %v2934 = vcvt.s32.f32 %v2926
        %v2935 = vcvt.s32.f32 %v2927
        %v2936 = vcvt.s32.f32 %v2928
        %v2937 = vld [vmem:[#allocation2] sm:$0xff]
        %v2938 = vmax.f32 %v2864, %v2868
        %v2939 = vmax.f32 %v2865, %v2869
        %v2940 = vmax.f32 %v2866, %v2870
        %v2941 = vmax.f32 %v2867, %v2871
        %v2942 = vmax.f32 %v2938, %v2939
        %v2943 = vmax.f32 %v2940, %v2941
        %v2944 = vmax.f32 %v2942, %v2943
        %2945 = vmax.xlane.f32.xlu0 %v2944
        %v2946 = vpop.xlane.xlu0 %2945
        %v2947 = vmax.f32 %v2937, %v2946
        %2949 = vset.pattern.permute.xlu0 0
        %2950 = vperm.xlu0 %2949, %v2947
        %v2951 = vpop.permute.xlu0 %2950
        %v2953 = vsub.f32 %v2864, %v2951
        %v2954 = vsub.f32 %v2865, %v2951
        %v2955 = vsub.f32 %v2866, %v2951
        %v2956 = vsub.f32 %v2867, %v2951
        %v2957 = vsub.f32 %v2868, %v2951
        %v2958 = vsub.f32 %v2869, %v2951
        %v2959 = vsub.f32 %v2870, %v2951
        %v2960 = vsub.f32 %v2871, %v2951
        %v2961 = vmul.f32 %v2953, 1.442695
        %v2962 = vpow.pop %v2961
        %v2963 = vmul.f32 %v2954, 1.442695
        %v2964 = vpow.pop %v2963
        %v2965 = vmul.f32 %v2955, 1.442695
        %v2966 = vpow.pop %v2965
        %v2967 = vmul.f32 %v2956, 1.442695
        %v2968 = vpow.pop %v2967
        %v2969 = vmul.f32 %v2957, 1.442695
        %v2970 = vpow.pop %v2969
        %v2971 = vmul.f32 %v2958, 1.442695
        %v2972 = vpow.pop %v2971
        %v2973 = vmul.f32 %v2959, 1.442695
        %v2974 = vpow.pop %v2973
        %v2975 = vmul.f32 %v2960, 1.442695
        %v2976 = vpow.pop %v2975
        %v2977 = vmul.f32 %v2962, %v2848
        %v2978 = vmul.f32 %v2964, %v2849
        %v2979 = vmul.f32 %v2966, %v2850
        %v2980 = vmul.f32 %v2968, %v2851
        %v2981 = vmul.f32 %v2970, %v2852
        %v2982 = vmul.f32 %v2972, %v2853
        %v2983 = vmul.f32 %v2974, %v2854
        %v2984 = vmul.f32 %v2976, %v2855
        %v2985 = vsub.f32 %v2937, %v2947
        %v2986 = vmul.f32 %v2985, 1.442695
        %v2987 = vpow.pop %v2986
        %v2988 = vld [vmem:[#allocation3] sm:$0xff]
        %v2989 = vmul.f32 %v2987, %v2988
        %v2990 = vadd.f32 %v2977, %v2978
        %v2991 = vadd.f32 %v2990, %v2979
        %v2992 = vadd.f32 %v2991, %v2980
        %v2993 = vadd.f32 %v2992, %v2981
        %v2994 = vadd.f32 %v2993, %v2982
        %v2995 = vadd.f32 %v2994, %v2983
        %v2996 = vadd.f32 %v2995, %v2984
        %2997 = vadd.xlane.f32.xlu0 %v2996
        %v2998 = vpop.xlane.xlu0 %2997
        %v2999 = vadd.f32 %v2989, %v2998
        %3000 = vst.msk [vmem:[#allocation3] sm:$0xff] %vm1699, %v2999
        %3001 = vst.msk [vmem:[#allocation2] sm:$0xff] %vm1699, %v2947
        %v3002 = vld [vmem:[#allocation4] sm:$0xff]
        %v3003 = vmul.f32 %v2929, %v2864
        %v3004 = vmul.f32 %v2930, %v2865
        %v3005 = vmul.f32 %v2931, %v2866
        %v3006 = vmul.f32 %v2932, %v2867
        %v3007 = vmul.f32 %v2933, %v2868
        %v3008 = vmul.f32 %v2934, %v2869
        %v3009 = vmul.f32 %v2935, %v2870
        %v3010 = vmul.f32 %v2936, %v2871
        %v3011 = vadd.f32 %v3003, %v3004
        %v3012 = vadd.f32 %v3011, %v3005
        %v3013 = vadd.f32 %v3012, %v3006
        %v3014 = vadd.f32 %v3013, %v3007
        %v3015 = vadd.f32 %v3014, %v3008
        %v3016 = vadd.f32 %v3015, %v3009
        %v3017 = vadd.f32 %v3016, %v3010
        %3018 = vadd.xlane.f32.xlu0 %v3017
        %v3019 = vpop.xlane.xlu0 %3018
        %v3020 = vadd.f32 %v3002, %v3019
        %3021 = vst.msk [vmem:[#allocation4] sm:$0xff] %vm1699, %v3020
        %v3022 = vld [vmem:[#allocation5] sm:$0xff]
        %v3023 = vadd.f32 %v2929, %v2930
        %v3024 = vadd.f32 %v3023, %v2931
        %v3025 = vadd.f32 %v3024, %v2932
        %v3026 = vadd.f32 %v3025, %v2933
        %v3027 = vadd.f32 %v3026, %v2934
        %v3028 = vadd.f32 %v3027, %v2935
        %v3029 = vadd.f32 %v3028, %v2936
        %3030 = vadd.xlane.f32.xlu0 %v3029
        %v3031 = vpop.xlane.xlu0 %3030
        %v3032 = vadd.f32 %v3022, %v3031
        %3033 = vst.msk [vmem:[#allocation5] sm:$0xff] %vm1699, %v3032
        %p3034 = scmp.eq.s32.totalorder %s27, 1
        // Predicated region
        $region53: #{tpu_custom_call.1} parent=35 // pred_check
          %p3035 = pneg %p3034
        $region54: #{tpu_custom_call.1} parent=35 // pred_check_branch
          %3037 = sbr.rel (%p3035) target = $region56
        $region55: #{tpu_custom_call.1} parent=35 // pred_region
          %v3038 = vld [vmem:[#allocation2] sm:$0xff]
          %v3039 = vld [vmem:[#allocation3] sm:$0xff]
          %v3040 = vlog2.pop %v3039
          %v3041 = vmul.f32 %v3040, 0.6931472
          %v3042 = vadd.f32 %v3038, %v3041
          %3043 = vst.msk [vmem:[%s396] sm:$0xff] %vm1699, %v3042
          %v3044 = vld [vmem:[#allocation4] sm:$0xff]
          %3045 = vst.msk [vmem:[%s400] sm:$0xff] %vm1699, %v3044
          %v3046 = vld [vmem:[#allocation5] sm:$0xff]
          %3047 = vst.msk [vmem:[%s404] sm:$0xff] %vm1699, %v3046
        $region56: #{tpu_custom_call.1} parent=35 // pred_fallthru
          _
        %p3048 = scmp.lt.s32.totalorder %s26, 0
        %s3049 = scalar_select %p3048, %s26, 0
        %s3050 = smul.addr %s3049, 8
        %s3051 = scalar_lea.vmem %s4, %s3050
        %p3052 = scmp.lt.s32.totalorder %s26, 0
        %s3053 = scalar_select %p3052, %s26, 0
        %s3054 = smul.addr %s3053, 8
        %s3055 = scalar_lea.vmem %s5, %s3054
        %p3056 = scmp.lt.s32.totalorder %s26, 0
        %s3057 = scalar_select %p3056, %s26, 0
        %s3058 = smul.addr %s3057, 8
        %s3059 = scalar_lea.vmem %s6, %s3058
        // Predicated region
        $region57: #{tpu_custom_call.1} parent=35 // pred_check
          %p3060 = pneg %p162
        $region58: #{tpu_custom_call.1} parent=35 // pred_check_branch
          %3062 = sbr.rel (%p3060) target = $region60
        $region59: #{tpu_custom_call.1} parent=35 // pred_region
          _
        $region60: #{tpu_custom_call.1} parent=35 // pred_fallthru
          _
        // Predicated region
        $region61: #{tpu_custom_call.1} parent=35 // pred_check
          %p3063 = pneg %p188
        $region62: #{tpu_custom_call.1} parent=35 // pred_check_branch
          %3065 = sbr.rel (%p3063) target = $region64
        $region63: #{tpu_custom_call.1} parent=35 // pred_region
          _
        $region64: #{tpu_custom_call.1} parent=35 // pred_fallthru
          _
        // Predicated region
        $region65: #{tpu_custom_call.1} parent=35 // pred_check
          %p3066 = pneg %p214
        $region66: #{tpu_custom_call.1} parent=35 // pred_check_branch
          %3068 = sbr.rel (%p3066) target = $region68
        $region67: #{tpu_custom_call.1} parent=35 // pred_region
          _
        $region68: #{tpu_custom_call.1} parent=35 // pred_fallthru
          _
        // Predicated region
        $region69: #{tpu_custom_call.1} parent=35 // pred_check
          %p3069 = pneg %p162
        $region70: #{tpu_custom_call.1} parent=35 // pred_check_branch
          %3071 = sbr.rel (%p3069) target = $region72
        $region71: #{tpu_custom_call.1} parent=35 // pred_region
          %p3072 = scmp.lt.s32.totalorder %s26, 0
          %s3073 = scalar_select %p3072, %s26, 0
          %s3074 = smul.addr %s3073, 8
          %s3075 = scalar_lea.vmem %s4, %s3074
        $region72: #{tpu_custom_call.1} parent=35 // pred_fallthru
          _
        // Predicated region
        $region73: #{tpu_custom_call.1} parent=35 // pred_check
          %p3076 = pneg %p188
        $region74: #{tpu_custom_call.1} parent=35 // pred_check_branch
          %3078 = sbr.rel (%p3076) target = $region76
        $region75: #{tpu_custom_call.1} parent=35 // pred_region
          %p3079 = scmp.lt.s32.totalorder %s26, 0
          %s3080 = scalar_select %p3079, %s26, 0
          %s3081 = smul.addr %s3080, 8
          %s3082 = scalar_lea.vmem %s5, %s3081
        $region76: #{tpu_custom_call.1} parent=35 // pred_fallthru
          _
        // Predicated region
        $region77: #{tpu_custom_call.1} parent=35 // pred_check
          %p3083 = pneg %p214
        $region78: #{tpu_custom_call.1} parent=35 // pred_check_branch
          %3085 = sbr.rel (%p3083) target = $region80
        $region79: #{tpu_custom_call.1} parent=35 // pred_region
          %p3086 = scmp.lt.s32.totalorder %s26, 0
          %s3087 = scalar_select %p3086, %s26, 0
          %s3088 = smul.addr %s3087, 8
          %s3089 = scalar_lea.vmem %s6, %s3088
        $region80: #{tpu_custom_call.1} parent=35 // pred_fallthru
          _
      $region36: #{tpu_custom_call.1} parent=5 // pred_fallthru
        _
      %p3090 = scmp.le.s32.totalorder 2, %s17
      // Predicated region
      $region81: #{tpu_custom_call.1} parent=5 // pred_check
        %p3091 = pneg %p3090
      $region82: #{tpu_custom_call.1} parent=5 // pred_check_branch
        %3093 = sbr.rel (%p3091) target = $region84
      $region83: #{tpu_custom_call.1} parent=5 // pred_region
        %s3094 = ssub.s32 %s17, 2
      $region84: #{tpu_custom_call.1} parent=5 // pred_fallthru
        _
    $region6: #{tpu_custom_call.1} parent=1 // loop_footer
      %s21 = sadd.s32 1, %s17
    $region7: #{tpu_custom_call.1} parent=1 // loop_footer_branch
      %16 = sbr.rel target = $region3
    $region8: #{tpu_custom_call.1} parent=1 // loop_exit
      _
    %3095 = vsyncpa [#allocation7], 1
    %s3096 = scalar_lea.sflag [#allocation7], 1
    %3097 = vsyncpa %s3096, 1
    %3098 = vsyncpa [#allocation9], 1
    %s3099 = scalar_lea.sflag [#allocation9], 1
    %3100 = vsyncpa %s3099, 1

</llo_original>
